<compile_context>
chip_gen: v6e
topology: v6e:2x2x1
jax: 0.10.0
libtpu: 0.0.40
codegen_flags: <defaults>
</compile_context>

<pallas_src>
import jax
import jax.numpy as jnp
from jax import lax
from jax.experimental import pallas as pl
from jax.experimental.pallas import tpu as pltpu


def _round_up(x, m):
    return ((x + m - 1) // m) * m


# ----------------------------------------------------------------------------
# Shared tiled matmul + bias kernel (used for the hoisted input projection and
# the final FC).  f32 accumulator scratch, init/finalize via pl.when.
# ----------------------------------------------------------------------------
def _matmul_bias_kernel(x_ref, w_ref, b_ref, o_ref, acc_ref):
    k = pl.program_id(2)

    @pl.when(k == 0)
    def _():
        acc_ref[...] = jnp.zeros_like(acc_ref)

    acc_ref[...] += jnp.dot(
        x_ref[...], w_ref[...], preferred_element_type=jnp.float32
    )

    @pl.when(k == pl.num_programs(2) - 1)
    def _():
        o_ref[...] = (acc_ref[...] + b_ref[...]).astype(o_ref.dtype)


def matmul_bias(x, w, b, *, out_dtype=jnp.float32, tm=256, tn=512, tk=256):
    """(M,K) @ (K,N) + b(1,N), zero-padded to tile multiples, result sliced back."""
    M, K = x.shape
    Kw, N = w.shape
    assert K == Kw

    tm = min(tm, _round_up(M, 8))
    tn = min(tn, _round_up(N, 128))
    tk = min(tk, _round_up(K, 128))
    Mp = _round_up(M, tm)
    Np = _round_up(N, tn)
    Kp = _round_up(K, tk)

    xp = jnp.pad(x, ((0, Mp - M), (0, Kp - K)))
    wp = jnp.pad(w, ((0, Kp - K), (0, Np - N)))
    bp = jnp.pad(b.astype(jnp.float32), ((0, 0), (0, Np - N)))

    out = pl.pallas_call(
        _matmul_bias_kernel,
        out_shape=jax.ShapeDtypeStruct((Mp, Np), out_dtype),
        grid_spec=pltpu.PrefetchScalarGridSpec(
            num_scalar_prefetch=0,
            grid=(Mp // tm, Np // tn, Kp // tk),
            in_specs=[
                pl.BlockSpec((tm, tk), lambda i, j, k: (i, k)),
                pl.BlockSpec((tk, tn), lambda i, j, k: (k, j)),
                pl.BlockSpec((1, tn), lambda i, j, k: (0, j)),
            ],
            out_specs=pl.BlockSpec((tm, tn), lambda i, j, k: (i, j)),
            scratch_shapes=[pltpu.VMEM((tm, tn), jnp.float32)],
        ),
        compiler_params=pltpu.CompilerParams(
            dimension_semantics=("parallel", "parallel", "arbitrary"),
        ),
    )(xp, wp, bp)
    return out[:M, :N]


# ----------------------------------------------------------------------------
# LSTM recurrence kernel: one grid step per chunk of timesteps.  The input
# projection (x @ W_ih + b_ih + b_hh) is precomputed and arrives as gates_x;
# only h_prev @ W_hh remains in the serial per-step chain.
# PyTorch gate order inside the 4H axis: [i, f, g, o].
# ----------------------------------------------------------------------------
def _lstm_kernel(gx_ref, whh_ref, out_ref, h_sc, c_sc):
    @pl.when(pl.program_id(0) == 0)
    def _():
        h_sc[...] = jnp.zeros_like(h_sc)
        c_sc[...] = jnp.zeros_like(c_sc)

    tc = out_ref.shape[0]          # timesteps in this chunk (static)
    h_dim = out_ref.shape[-1]      # padded hidden size (multiple of 128)

    def step(t, carry):
        h_prev, c_prev = carry                                   # f32 (B, Hp)
        gates = gx_ref[t] + jnp.dot(                              # (B, 4Hp) f32
            h_prev.astype(whh_ref.dtype), whh_ref[...],
            preferred_element_type=jnp.float32,
        )
        # Gate slices are whole 128-lane vregs (Hp is a multiple of 128).
        i_g = jax.nn.sigmoid(gates[:, 0 * h_dim:1 * h_dim])
        f_g = jax.nn.sigmoid(gates[:, 1 * h_dim:2 * h_dim])
        g_g = jnp.tanh(gates[:, 2 * h_dim:3 * h_dim])
        o_g = jax.nn.sigmoid(gates[:, 3 * h_dim:4 * h_dim])
        c_new = f_g * c_prev + i_g * g_g
        h_new = o_g * jnp.tanh(c_new)
        out_ref[t] = h_new.astype(out_ref.dtype)
        return h_new, c_new

    h_last, c_last = lax.fori_loop(
        0, tc, step, (h_sc[...], c_sc[...]), unroll=True
    )
    h_sc[...] = h_last
    c_sc[...] = c_last


def lstm_forward(gates_x, w_hh_t, *, chunk):
    """gates_x: (T_pad, B_pad, 4*H_pad) f32 (already x@W_ih + bias).
       w_hh_t:  (H_pad, 4*H_pad) bf16.  Returns (T_pad, B_pad, H_pad) bf16."""
    Tp, Bp, G4 = gates_x.shape
    Hp = w_hh_t.shape[0]
    assert Tp % chunk == 0

    return pl.pallas_call(
        _lstm_kernel,
        out_shape=jax.ShapeDtypeStruct((Tp, Bp, Hp), jnp.bfloat16),
        grid_spec=pltpu.PrefetchScalarGridSpec(
            num_scalar_prefetch=0,
            grid=(Tp // chunk,),
            in_specs=[
                pl.BlockSpec((chunk, Bp, G4), lambda c: (c, 0, 0)),
                pl.BlockSpec((Hp, G4), lambda c: (0, 0)),
            ],
            out_specs=pl.BlockSpec((chunk, Bp, Hp), lambda c: (c, 0, 0)),
            scratch_shapes=[
                pltpu.VMEM((Bp, Hp), jnp.float32),   # h state (persists over chunks)
                pltpu.VMEM((Bp, Hp), jnp.float32),   # c state
            ],
        ),
        compiler_params=pltpu.CompilerParams(
            dimension_semantics=("arbitrary",),      # recurrence -> sequential
        ),
    )(gates_x, w_hh_t)


# ----------------------------------------------------------------------------
# Full DecoderRNN forward (eval mode).
# ----------------------------------------------------------------------------
@jax.jit
def decoder_rnn_forward(params, features, captions):
    """features: (B, E) f32, captions: (B, S) int32 -> logits (B, S, V) f32."""
    B, E = features.shape

    captions = captions[:, :-1]                                      # (B, S-1)
    embeds = jnp.take(params["embed_w"], captions, axis=0)           # (B, S-1, E)
    lstm_in = jnp.concatenate([features[:, None, :], embeds], 1)     # (B, T, E)
    T = lstm_in.shape[1]

    # pad batch to a sublane multiple; padded rows are sliced off at the end
    Bp = _round_up(B, 8)
    lstm_in = jnp.pad(lstm_in, ((0, Bp - B), (0, 0), (0, 0)))

    # ---- hoisted input projection: one big MXU matmul for all timesteps ----
    x_tbe = jnp.transpose(lstm_in, (1, 0, 2)).astype(jnp.bfloat16)   # (T, Bp, E)
    gates_x = matmul_bias(
        x_tbe.reshape(T * Bp, E), params["w_ih_t"], params["lstm_b"],
        out_dtype=jnp.float32,
    )                                                                # (T*Bp, 4Hp)
    G4 = gates_x.shape[-1]
    gates_x = gates_x.reshape(T, Bp, G4)

    # ---- recurrent part: chunked over time inside one Pallas call ----
    chunk = min(T, 32)
    Tp = _round_up(T, chunk)
    if Tp != T:
        gates_x = jnp.pad(gates_x, ((0, Tp - T), (0, 0), (0, 0)))
    lstm_out = lstm_forward(gates_x, params["w_hh_t"], chunk=chunk)  # (Tp,Bp,Hp) bf16

    # dropout: eval mode => identity
    # TODO(synk): training-mode dropout (PRNG mask + 1/(1-p) scale) not implemented.

    # ---- final FC, fed batch-major so the V-wide logits need no transpose ----
    Hp = lstm_out.shape[-1]
    lstm_bth = jnp.transpose(lstm_out[:T], (1, 0, 2)).reshape(Bp * T, Hp)
    logits_flat = matmul_bias(
        lstm_bth, params["fc_w_t"], params["fc_b"], out_dtype=jnp.float32
    )                                                                # (Bp*T, V)
    V = logits_flat.shape[-1]
    return logits_flat.reshape(Bp, T, V)[:B]                         # (B, T, V)


# ----------------------------------------------------------------------------
# Parameters: f32 reference layout, then pad hidden dim per gate to a lane
# multiple and cast MXU operands to bf16 (accumulation stays f32).
# ----------------------------------------------------------------------------
def init_params(key, embed_size, hidden_size, vocab_size):
    k = jax.random.split(key, 7)
    s = 0.1
    return {
        "embed_w": s * jax.random.normal(k[0], (vocab_size, embed_size), jnp.float32),
        # PyTorch stores W_ih as (4H, E); we keep transposed copies for x @ W.
        "w_ih_t": s * jax.random.normal(k[1], (embed_size, 4 * hidden_size), jnp.float32),
        "w_hh_t": s * jax.random.normal(k[2], (hidden_size, 4 * hidden_size), jnp.float32),
        # combined b_ih + b_hh, kept 2-D (1, 4H)
        "lstm_b": (s * jax.random.normal(k[3], (4 * hidden_size,), jnp.float32)
                   + s * jax.random.normal(k[4], (4 * hidden_size,), jnp.float32))[None, :],
        "fc_w_t": s * jax.random.normal(k[5], (hidden_size, vocab_size), jnp.float32),
        "fc_b": s * jax.random.normal(k[6], (1, vocab_size), jnp.float32),
    }


def prepare_params(p, hidden_size):
    H = hidden_size
    Hp = _round_up(H, 128)

    def pad_gate_cols(w):                       # (..., 4H) -> (..., 4*Hp), per gate
        lead = w.shape[:-1]
        w4 = w.reshape(lead + (4, H))
        w4 = jnp.pad(w4, [(0, 0)] * len(lead) + [(0, 0), (0, Hp - H)])
        return w4.reshape(lead + (4 * Hp,))

    w_hh_t = jnp.pad(pad_gate_cols(p["w_hh_t"]), ((0, Hp - H), (0, 0)))

    return {
        "embed_w": p["embed_w"],                                        # f32, XLA gather
        "w_ih_t": pad_gate_cols(p["w_ih_t"]).astype(jnp.bfloat16),      # (E, 4Hp)
        "w_hh_t": w_hh_t.astype(jnp.bfloat16),                          # (Hp, 4Hp)
        "lstm_b": pad_gate_cols(p["lstm_b"]),                           # (1, 4Hp) f32
        "fc_w_t": jnp.pad(p["fc_w_t"], ((0, Hp - H), (0, 0))).astype(jnp.bfloat16),
        "fc_b": p["fc_b"],                                              # (1, V) f32
    }


if __name__ == "__main__":
    B = 2            # batch
    S = 8            # caption length (LSTM sees 8 steps: 1 feature + 7 tokens)
    E = 32           # embed_size
    H = 32           # hidden_size
    V = 128          # vocab_size

    key = jax.random.PRNGKey(0)
    kp, kf, kc = jax.random.split(key, 3)

    params = prepare_params(init_params(kp, E, H, V), H)
    features = jax.random.normal(kf, (B, E), jnp.float32)
    captions = jax.random.randint(kc, (B, S), 0, V, dtype=jnp.int32)

    logits = decoder_rnn_forward(params, features, captions)
    jax.block_until_ready(logits)

    assert logits.shape == (B, S, V), logits.shape
    assert bool(jnp.all(jnp.isfinite(logits)))
    print("KERNEL_OK")
</pallas_src>

<mosaic_0001>
module attributes {stable_mosaic.version = 11 : i64} {
  func.func @_matmul_bias_kernel(%arg0: i32, %arg1: i32, %arg2: i32, %arg3: memref<64x128xbf16, #tpu.memory_space<vmem>>, %arg4: memref<128x512xbf16, #tpu.memory_space<vmem>>, %arg5: memref<1x512xf32, #tpu.memory_space<vmem>>, %arg6: memref<64x512xf32, #tpu.memory_space<vmem>>, %arg7: memref<64x512xf32, #tpu.memory_space<vmem>>) attributes {dimension_semantics = [#tpu.dimension_semantics<parallel>, #tpu.dimension_semantics<parallel>, #tpu.dimension_semantics<arbitrary>], iteration_bounds = array<i64: 1, 1, 1>, scalar_prefetch = 0 : i64, scratch_operands = 1 : i64, tpu.core_type = #tpu.core_type<tc>, window_params = [{transform_indices = @transform_0, window_bounds = array<i64: 64, 128>}, {transform_indices = @transform_1, window_bounds = array<i64: 128, 512>}, {transform_indices = @transform_2, window_bounds = array<i64: 1, 512>}, {transform_indices = @transform_3, window_bounds = array<i64: 64, 512>}]} {
    %c0_i32 = arith.constant 0 : i32
    %0 = arith.cmpi eq, %arg2, %c0_i32 : i32
    %1 = arith.extui %0 : i1 to i32
    %c0_i32_0 = arith.constant 0 : i32
    %2 = arith.cmpi ne, %1, %c0_i32_0 : i32
    scf.if %2 {
      %cst_10 = arith.constant 0.000000e+00 : f32
      %12 = vector.broadcast %cst_10 : f32 to vector<64x512xf32>
      %c0_11 = arith.constant 0 : index
      %c0_12 = arith.constant 0 : index
      %13 = vector.load %arg7[%c0_11, %c0_12] : memref<64x512xf32, #tpu.memory_space<vmem>>, vector<64x512xf32>
      tpu.vector_store %arg7[%c0_11, %c0_12], %12 {strides = array<i32>} : memref<64x512xf32, #tpu.memory_space<vmem>>, vector<64x512xf32>,
    } else {
    }
    %c0 = arith.constant 0 : index
    %c0_1 = arith.constant 0 : index
    %3 = vector.load %arg7[%c0, %c0_1] : memref<64x512xf32, #tpu.memory_space<vmem>>, vector<64x512xf32>
    %c0_2 = arith.constant 0 : index
    %c0_3 = arith.constant 0 : index
    %4 = vector.load %arg3[%c0_2, %c0_3] : memref<64x128xbf16, #tpu.memory_space<vmem>>, vector<64x128xbf16>
    %c0_4 = arith.constant 0 : index
    %c0_5 = arith.constant 0 : index
    %5 = vector.load %arg4[%c0_4, %c0_5] : memref<128x512xbf16, #tpu.memory_space<vmem>>, vector<128x512xbf16>
    %cst = arith.constant dense<0.000000e+00> : vector<64x512xf32>
    %6 = tpu.matmul %4, %5, %cst {dimension_numbers = #tpu.dot_dimension_numbers<[1], [0], [0], [1], [0, 0, 1, 1], [], []>} : vector<64x128xbf16>, vector<128x512xbf16>, vector<64x512xf32> -> vector<64x512xf32>
    %7 = arith.addf %3, %6 : vector<64x512xf32>
    %c0_6 = arith.constant 0 : index
    %c0_7 = arith.constant 0 : index
    %8 = vector.load %arg7[%c0_6, %c0_7] : memref<64x512xf32, #tpu.memory_space<vmem>>, vector<64x512xf32>
    tpu.vector_store %arg7[%c0_6, %c0_7], %7 {strides = array<i32>} : memref<64x512xf32, #tpu.memory_space<vmem>>, vector<64x512xf32>,
    %c0_i32_8 = arith.constant 0 : i32
    %9 = arith.cmpi eq, %arg2, %c0_i32_8 : i32
    %10 = arith.extui %9 : i1 to i32
    %c0_i32_9 = arith.constant 0 : i32
    %11 = arith.cmpi ne, %10, %c0_i32_9 : i32
    scf.if %11 {
      %c0_10 = arith.constant 0 : index
      %c0_11 = arith.constant 0 : index
      %12 = vector.load %arg7[%c0_10, %c0_11] : memref<64x512xf32, #tpu.memory_space<vmem>>, vector<64x512xf32>
      %c0_12 = arith.constant 0 : index
      %c0_13 = arith.constant 0 : index
      %13 = vector.load %arg5[%c0_12, %c0_13] : memref<1x512xf32, #tpu.memory_space<vmem>>, vector<1x512xf32>
      %14 = vector.broadcast %13 : vector<1x512xf32> to vector<64x512xf32>
      %15 = arith.addf %12, %14 : vector<64x512xf32>
      %c0_14 = arith.constant 0 : index
      %c0_15 = arith.constant 0 : index
      %16 = vector.load %arg6[%c0_14, %c0_15] : memref<64x512xf32, #tpu.memory_space<vmem>>, vector<64x512xf32>
      tpu.vector_store %arg6[%c0_14, %c0_15], %15 {strides = array<i32>} : memref<64x512xf32, #tpu.memory_space<vmem>>, vector<64x512xf32>,
    } else {
    }
    return
  }
  func.func @transform_0(%arg0: i32, %arg1: i32, %arg2: i32) -> (i32, i32) {
    %c0_i32 = arith.constant 0 : i32
    return %arg0, %arg2 : i32, i32
  }
  func.func @transform_1(%arg0: i32, %arg1: i32, %arg2: i32) -> (i32, i32) {
    %c0_i32 = arith.constant 0 : i32
    return %arg2, %arg1 : i32, i32
  }
  func.func @transform_2(%arg0: i32, %arg1: i32, %arg2: i32) -> (i32, i32) {
    %c0_i32 = arith.constant 0 : i32
    %c0_i32_0 = arith.constant 0 : i32
    return %c0_i32, %arg1 : i32, i32
  }
  func.func @transform_3(%arg0: i32, %arg1: i32, %arg2: i32) -> (i32, i32) {
    %c0_i32 = arith.constant 0 : i32
    return %arg0, %arg1 : i32, i32
  }
}

module attributes {stable_mosaic.version = 11 : i64} {
  func.func @_matmul_bias_kernel(%arg0: i32, %arg1: i32, %arg2: i32, %arg3: memref<64x128xbf16, #tpu.memory_space<vmem>>, %arg4: memref<128x128xbf16, #tpu.memory_space<vmem>>, %arg5: memref<1x128xf32, #tpu.memory_space<vmem>>, %arg6: memref<64x128xf32, #tpu.memory_space<vmem>>, %arg7: memref<64x128xf32, #tpu.memory_space<vmem>>) attributes {dimension_semantics = [#tpu.dimension_semantics<parallel>, #tpu.dimension_semantics<parallel>, #tpu.dimension_semantics<arbitrary>], iteration_bounds = array<i64: 1, 1, 1>, scalar_prefetch = 0 : i64, scratch_operands = 1 : i64, tpu.core_type = #tpu.core_type<tc>, window_params = [{transform_indices = @transform_0, window_bounds = array<i64: 64, 128>}, {transform_indices = @transform_1, window_bounds = array<i64: 128, 128>}, {transform_indices = @transform_2, window_bounds = array<i64: 1, 128>}, {transform_indices = @transform_3, window_bounds = array<i64: 64, 128>}]} {
    %c0_i32 = arith.constant 0 : i32
    %0 = arith.cmpi eq, %arg2, %c0_i32 : i32
    %1 = arith.extui %0 : i1 to i32
    %c0_i32_0 = arith.constant 0 : i32
    %2 = arith.cmpi ne, %1, %c0_i32_0 : i32
    scf.if %2 {
      %cst_10 = arith.constant 0.000000e+00 : f32
      %12 = vector.broadcast %cst_10 : f32 to vector<64x128xf32>
      %c0_11 = arith.constant 0 : index
      %c0_12 = arith.constant 0 : index
      %13 = vector.load %arg7[%c0_11, %c0_12] : memref<64x128xf32, #tpu.memory_space<vmem>>, vector<64x128xf32>
      tpu.vector_store %arg7[%c0_11, %c0_12], %12 {strides = array<i32>} : memref<64x128xf32, #tpu.memory_space<vmem>>, vector<64x128xf32>,
    } else {
    }
    %c0 = arith.constant 0 : index
    %c0_1 = arith.constant 0 : index
    %3 = vector.load %arg7[%c0, %c0_1] : memref<64x128xf32, #tpu.memory_space<vmem>>, vector<64x128xf32>
    %c0_2 = arith.constant 0 : index
    %c0_3 = arith.constant 0 : index
    %4 = vector.load %arg3[%c0_2, %c0_3] : memref<64x128xbf16, #tpu.memory_space<vmem>>, vector<64x128xbf16>
    %c0_4 = arith.constant 0 : index
    %c0_5 = arith.constant 0 : index
    %5 = vector.load %arg4[%c0_4, %c0_5] : memref<128x128xbf16, #tpu.memory_space<vmem>>, vector<128x128xbf16>
    %cst = arith.constant dense<0.000000e+00> : vector<64x128xf32>
    %6 = tpu.matmul %4, %5, %cst {dimension_numbers = #tpu.dot_dimension_numbers<[1], [0], [0], [1], [0, 0, 1, 1], [], []>} : vector<64x128xbf16>, vector<128x128xbf16>, vector<64x128xf32> -> vector<64x128xf32>
    %7 = arith.addf %3, %6 : vector<64x128xf32>
    %c0_6 = arith.constant 0 : index
    %c0_7 = arith.constant 0 : index
    %8 = vector.load %arg7[%c0_6, %c0_7] : memref<64x128xf32, #tpu.memory_space<vmem>>, vector<64x128xf32>
    tpu.vector_store %arg7[%c0_6, %c0_7], %7 {strides = array<i32>} : memref<64x128xf32, #tpu.memory_space<vmem>>, vector<64x128xf32>,
    %c0_i32_8 = arith.constant 0 : i32
    %9 = arith.cmpi eq, %arg2, %c0_i32_8 : i32
    %10 = arith.extui %9 : i1 to i32
    %c0_i32_9 = arith.constant 0 : i32
    %11 = arith.cmpi ne, %10, %c0_i32_9 : i32
    scf.if %11 {
      %c0_10 = arith.constant 0 : index
      %c0_11 = arith.constant 0 : index
      %12 = vector.load %arg7[%c0_10, %c0_11] : memref<64x128xf32, #tpu.memory_space<vmem>>, vector<64x128xf32>
      %c0_12 = arith.constant 0 : index
      %c0_13 = arith.constant 0 : index
      %13 = vector.load %arg5[%c0_12, %c0_13] : memref<1x128xf32, #tpu.memory_space<vmem>>, vector<1x128xf32>
      %14 = vector.broadcast %13 : vector<1x128xf32> to vector<64x128xf32>
      %15 = arith.addf %12, %14 : vector<64x128xf32>
      %c0_14 = arith.constant 0 : index
      %c0_15 = arith.constant 0 : index
      %16 = vector.load %arg6[%c0_14, %c0_15] : memref<64x128xf32, #tpu.memory_space<vmem>>, vector<64x128xf32>
      tpu.vector_store %arg6[%c0_14, %c0_15], %15 {strides = array<i32>} : memref<64x128xf32, #tpu.memory_space<vmem>>, vector<64x128xf32>,
    } else {
    }
    return
  }
  func.func @transform_0(%arg0: i32, %arg1: i32, %arg2: i32) -> (i32, i32) {
    %c0_i32 = arith.constant 0 : i32
    return %arg0, %arg2 : i32, i32
  }
  func.func @transform_1(%arg0: i32, %arg1: i32, %arg2: i32) -> (i32, i32) {
    %c0_i32 = arith.constant 0 : i32
    return %arg2, %arg1 : i32, i32
  }
  func.func @transform_2(%arg0: i32, %arg1: i32, %arg2: i32) -> (i32, i32) {
    %c0_i32 = arith.constant 0 : i32
    %c0_i32_0 = arith.constant 0 : i32
    return %c0_i32, %arg1 : i32, i32
  }
  func.func @transform_3(%arg0: i32, %arg1: i32, %arg2: i32) -> (i32, i32) {
    %c0_i32 = arith.constant 0 : i32
    return %arg0, %arg1 : i32, i32
  }
}

module attributes {stable_mosaic.version = 11 : i64} {
  func.func @_lstm_kernel(%arg0: i32, %arg1: memref<8x8x512xf32, #tpu.memory_space<vmem>>, %arg2: memref<128x512xbf16, #tpu.memory_space<vmem>>, %arg3: memref<8x8x128xbf16, #tpu.memory_space<vmem>>, %arg4: memref<8x128xf32, #tpu.memory_space<vmem>>, %arg5: memref<8x128xf32, #tpu.memory_space<vmem>>) attributes {dimension_semantics = [#tpu.dimension_semantics<arbitrary>], iteration_bounds = array<i64: 1>, scalar_prefetch = 0 : i64, scratch_operands = 2 : i64, tpu.core_type = #tpu.core_type<tc>, window_params = [{transform_indices = @transform_0, window_bounds = array<i64: 8, 8, 512>}, {pipeline_mode = #tpu.pipeline_mode<synchronous>, transform_indices = @transform_1, window_bounds = array<i64: 128, 512>}, {transform_indices = @transform_2, window_bounds = array<i64: 8, 8, 128>}]} {
    %c0_i32 = arith.constant 0 : i32
    %0 = arith.cmpi eq, %arg0, %c0_i32 : i32
    %1 = arith.extui %0 : i1 to i32
    %c0_i32_0 = arith.constant 0 : i32
    %2 = arith.cmpi ne, %1, %c0_i32_0 : i32
    scf.if %2 {
      %cst_88 = arith.constant 0.000000e+00 : f32
      %303 = vector.broadcast %cst_88 : f32 to vector<8x128xf32>
      %c0_89 = arith.constant 0 : index
      %c0_90 = arith.constant 0 : index
      %304 = vector.load %arg4[%c0_89, %c0_90] : memref<8x128xf32, #tpu.memory_space<vmem>>, vector<8x128xf32>
      tpu.vector_store %arg4[%c0_89, %c0_90], %303 {strides = array<i32>} : memref<8x128xf32, #tpu.memory_space<vmem>>, vector<8x128xf32>,
      %cst_91 = arith.constant 0.000000e+00 : f32
      %305 = vector.broadcast %cst_91 : f32 to vector<8x128xf32>
      %c0_92 = arith.constant 0 : index
      %c0_93 = arith.constant 0 : index
      %306 = vector.load %arg5[%c0_92, %c0_93] : memref<8x128xf32, #tpu.memory_space<vmem>>, vector<8x128xf32>
      tpu.vector_store %arg5[%c0_92, %c0_93], %305 {strides = array<i32>} : memref<8x128xf32, #tpu.memory_space<vmem>>, vector<8x128xf32>,
    } else {
    }
    %c0 = arith.constant 0 : index
    %c0_1 = arith.constant 0 : index
    %3 = vector.load %arg4[%c0, %c0_1] : memref<8x128xf32, #tpu.memory_space<vmem>>, vector<8x128xf32>
    %c0_2 = arith.constant 0 : index
    %c0_3 = arith.constant 0 : index
    %4 = vector.load %arg5[%c0_2, %c0_3] : memref<8x128xf32, #tpu.memory_space<vmem>>, vector<8x128xf32>
    %c0_i32_4 = arith.constant 0 : i32
    %5 = arith.index_cast %c0_i32_4 : i32 to index
    %c0_5 = arith.constant 0 : index
    %c0_6 = arith.constant 0 : index
    %6 = vector.load %arg1[%5, %c0_5, %c0_6] : memref<8x8x512xf32, #tpu.memory_space<vmem>>, vector<1x8x512xf32>
    %7 = vector.shape_cast %6 : vector<1x8x512xf32> to vector<8x512xf32>
    %8 = arith.truncf %3 : vector<8x128xf32> to vector<8x128xbf16>
    %c0_7 = arith.constant 0 : index
    %c0_8 = arith.constant 0 : index
    %9 = vector.load %arg2[%c0_7, %c0_8] : memref<128x512xbf16, #tpu.memory_space<vmem>>, vector<128x512xbf16>
    %cst = arith.constant dense<0.000000e+00> : vector<8x512xf32>
    %10 = tpu.matmul %8, %9, %cst {dimension_numbers = #tpu.dot_dimension_numbers<[1], [0], [0], [1], [0, 0, 1, 1], [], []>} : vector<8x128xbf16>, vector<128x512xbf16>, vector<8x512xf32> -> vector<8x512xf32>
    %11 = arith.addf %7, %10 : vector<8x512xf32>
    %12 = vector.extract_strided_slice %11 {offsets = [0, 0], sizes = [8, 128], strides = [1, 1]} : vector<8x512xf32> to vector<8x128xf32>
    %13 = arith.negf %12 : vector<8x128xf32>
    %14 = math.exp %13 : vector<8x128xf32>
    %cst_9 = arith.constant 1.000000e+00 : f32
    %15 = vector.broadcast %cst_9 : f32 to vector<8x128xf32>
    %16 = arith.addf %15, %14 : vector<8x128xf32>
    %17 = arith.divf %15, %16 : vector<8x128xf32>
    %18 = vector.extract_strided_slice %11 {offsets = [0, 128], sizes = [8, 128], strides = [1, 1]} : vector<8x512xf32> to vector<8x128xf32>
    %19 = arith.negf %18 : vector<8x128xf32>
    %20 = math.exp %19 : vector<8x128xf32>
    %cst_10 = arith.constant 1.000000e+00 : f32
    %21 = vector.broadcast %cst_10 : f32 to vector<8x128xf32>
    %22 = arith.addf %21, %20 : vector<8x128xf32>
    %23 = arith.divf %21, %22 : vector<8x128xf32>
    %24 = vector.extract_strided_slice %11 {offsets = [0, 256], sizes = [8, 128], strides = [1, 1]} : vector<8x512xf32> to vector<8x128xf32>
    %25 = math.tanh %24 : vector<8x128xf32>
    %26 = vector.extract_strided_slice %11 {offsets = [0, 384], sizes = [8, 128], strides = [1, 1]} : vector<8x512xf32> to vector<8x128xf32>
    %27 = arith.negf %26 : vector<8x128xf32>
    %28 = math.exp %27 : vector<8x128xf32>
    %cst_11 = arith.constant 1.000000e+00 : f32
    %29 = vector.broadcast %cst_11 : f32 to vector<8x128xf32>
    %30 = arith.addf %29, %28 : vector<8x128xf32>
    %31 = arith.divf %29, %30 : vector<8x128xf32>
    %32 = arith.mulf %23, %4 : vector<8x128xf32>
    %33 = arith.mulf %17, %25 : vector<8x128xf32>
    %34 = arith.addf %32, %33 : vector<8x128xf32>
    %35 = math.tanh %34 : vector<8x128xf32>
    %36 = arith.mulf %31, %35 : vector<8x128xf32>
    %37 = arith.truncf %36 : vector<8x128xf32> to vector<8x128xbf16>
    %38 = arith.index_cast %c0_i32_4 : i32 to index
    %c0_12 = arith.constant 0 : index
    %c0_13 = arith.constant 0 : index
    %39 = vector.load %arg3[%38, %c0_12, %c0_13] : memref<8x8x128xbf16, #tpu.memory_space<vmem>>, vector<1x8x128xbf16>
    %40 = vector.shape_cast %39 : vector<1x8x128xbf16> to vector<8x128xbf16>
    %41 = vector.shape_cast %37 : vector<8x128xbf16> to vector<1x8x128xbf16>
    tpu.vector_store %arg3[%38, %c0_12, %c0_13], %41 {strides = array<i32>} : memref<8x8x128xbf16, #tpu.memory_space<vmem>>, vector<1x8x128xbf16>,
    %c1_i32 = arith.constant 1 : i32
    %42 = arith.index_cast %c1_i32 : i32 to index
    %c0_14 = arith.constant 0 : index
    %c0_15 = arith.constant 0 : index
    %43 = vector.load %arg1[%42, %c0_14, %c0_15] : memref<8x8x512xf32, #tpu.memory_space<vmem>>, vector<1x8x512xf32>
    %44 = vector.shape_cast %43 : vector<1x8x512xf32> to vector<8x512xf32>
    %45 = arith.truncf %36 : vector<8x128xf32> to vector<8x128xbf16>
    %c0_16 = arith.constant 0 : index
    %c0_17 = arith.constant 0 : index
    %46 = vector.load %arg2[%c0_16, %c0_17] : memref<128x512xbf16, #tpu.memory_space<vmem>>, vector<128x512xbf16>
    %cst_18 = arith.constant dense<0.000000e+00> : vector<8x512xf32>
    %47 = tpu.matmul %45, %46, %cst_18 {dimension_numbers = #tpu.dot_dimension_numbers<[1], [0], [0], [1], [0, 0, 1, 1], [], []>} : vector<8x128xbf16>, vector<128x512xbf16>, vector<8x512xf32> -> vector<8x512xf32>
    %48 = arith.addf %44, %47 : vector<8x512xf32>
    %49 = vector.extract_strided_slice %48 {offsets = [0, 0], sizes = [8, 128], strides = [1, 1]} : vector<8x512xf32> to vector<8x128xf32>
    %50 = arith.negf %49 : vector<8x128xf32>
    %51 = math.exp %50 : vector<8x128xf32>
    %cst_19 = arith.constant 1.000000e+00 : f32
    %52 = vector.broadcast %cst_19 : f32 to vector<8x128xf32>
    %53 = arith.addf %52, %51 : vector<8x128xf32>
    %54 = arith.divf %52, %53 : vector<8x128xf32>
    %55 = vector.extract_strided_slice %48 {offsets = [0, 128], sizes = [8, 128], strides = [1, 1]} : vector<8x512xf32> to vector<8x128xf32>
    %56 = arith.negf %55 : vector<8x128xf32>
    %57 = math.exp %56 : vector<8x128xf32>
    %cst_20 = arith.constant 1.000000e+00 : f32
    %58 = vector.broadcast %cst_20 : f32 to vector<8x128xf32>
    %59 = arith.addf %58, %57 : vector<8x128xf32>
    %60 = arith.divf %58, %59 : vector<8x128xf32>
    %61 = vector.extract_strided_slice %48 {offsets = [0, 256], sizes = [8, 128], strides = [1, 1]} : vector<8x512xf32> to vector<8x128xf32>
    %62 = math.tanh %61 : vector<8x128xf32>
    %63 = vector.extract_strided_slice %48 {offsets = [0, 384], sizes = [8, 128], strides = [1, 1]} : vector<8x512xf32> to vector<8x128xf32>
    %64 = arith.negf %63 : vector<8x128xf32>
    %65 = math.exp %64 : vector<8x128xf32>
    %cst_21 = arith.constant 1.000000e+00 : f32
    %66 = vector.broadcast %cst_21 : f32 to vector<8x128xf32>
    %67 = arith.addf %66, %65 : vector<8x128xf32>
    %68 = arith.divf %66, %67 : vector<8x128xf32>
    %69 = arith.mulf %60, %34 : vector<8x128xf32>
    %70 = arith.mulf %54, %62 : vector<8x128xf32>
    %71 = arith.addf %69, %70 : vector<8x128xf32>
    %72 = math.tanh %71 : vector<8x128xf32>
    %73 = arith.mulf %68, %72 : vector<8x128xf32>
    %74 = arith.truncf %73 : vector<8x128xf32> to vector<8x128xbf16>
    %75 = arith.index_cast %c1_i32 : i32 to index
    %c0_22 = arith.constant 0 : index
    %c0_23 = arith.constant 0 : index
    %76 = vector.load %arg3[%75, %c0_22, %c0_23] : memref<8x8x128xbf16, #tpu.memory_space<vmem>>, vector<1x8x128xbf16>
    %77 = vector.shape_cast %76 : vector<1x8x128xbf16> to vector<8x128xbf16>
    %78 = vector.shape_cast %74 : vector<8x128xbf16> to vector<1x8x128xbf16>
    tpu.vector_store %arg3[%75, %c0_22, %c0_23], %78 {strides = array<i32>} : memref<8x8x128xbf16, #tpu.memory_space<vmem>>, vector<1x8x128xbf16>,
    %c2_i32 = arith.constant 2 : i32
    %79 = arith.index_cast %c2_i32 : i32 to index
    %c0_24 = arith.constant 0 : index
    %c0_25 = arith.constant 0 : index
    %80 = vector.load %arg1[%79, %c0_24, %c0_25] : memref<8x8x512xf32, #tpu.memory_space<vmem>>, vector<1x8x512xf32>
    %81 = vector.shape_cast %80 : vector<1x8x512xf32> to vector<8x512xf32>
    %82 = arith.truncf %73 : vector<8x128xf32> to vector<8x128xbf16>
    %c0_26 = arith.constant 0 : index
    %c0_27 = arith.constant 0 : index
    %83 = vector.load %arg2[%c0_26, %c0_27] : memref<128x512xbf16, #tpu.memory_space<vmem>>, vector<128x512xbf16>
    %cst_28 = arith.constant dense<0.000000e+00> : vector<8x512xf32>
    %84 = tpu.matmul %82, %83, %cst_28 {dimension_numbers = #tpu.dot_dimension_numbers<[1], [0], [0], [1], [0, 0, 1, 1], [], []>} : vector<8x128xbf16>, vector<128x512xbf16>, vector<8x512xf32> -> vector<8x512xf32>
    %85 = arith.addf %81, %84 : vector<8x512xf32>
    %86 = vector.extract_strided_slice %85 {offsets = [0, 0], sizes = [8, 128], strides = [1, 1]} : vector<8x512xf32> to vector<8x128xf32>
    %87 = arith.negf %86 : vector<8x128xf32>
    %88 = math.exp %87 : vector<8x128xf32>
    %cst_29 = arith.constant 1.000000e+00 : f32
    %89 = vector.broadcast %cst_29 : f32 to vector<8x128xf32>
    %90 = arith.addf %89, %88 : vector<8x128xf32>
    %91 = arith.divf %89, %90 : vector<8x128xf32>
    %92 = vector.extract_strided_slice %85 {offsets = [0, 128], sizes = [8, 128], strides = [1, 1]} : vector<8x512xf32> to vector<8x128xf32>
    %93 = arith.negf %92 : vector<8x128xf32>
    %94 = math.exp %93 : vector<8x128xf32>
    %cst_30 = arith.constant 1.000000e+00 : f32
    %95 = vector.broadcast %cst_30 : f32 to vector<8x128xf32>
    %96 = arith.addf %95, %94 : vector<8x128xf32>
    %97 = arith.divf %95, %96 : vector<8x128xf32>
    %98 = vector.extract_strided_slice %85 {offsets = [0, 256], sizes = [8, 128], strides = [1, 1]} : vector<8x512xf32> to vector<8x128xf32>
    %99 = math.tanh %98 : vector<8x128xf32>
    %100 = vector.extract_strided_slice %85 {offsets = [0, 384], sizes = [8, 128], strides = [1, 1]} : vector<8x512xf32> to vector<8x128xf32>
    %101 = arith.negf %100 : vector<8x128xf32>
    %102 = math.exp %101 : vector<8x128xf32>
    %cst_31 = arith.constant 1.000000e+00 : f32
    %103 = vector.broadcast %cst_31 : f32 to vector<8x128xf32>
    %104 = arith.addf %103, %102 : vector<8x128xf32>
    %105 = arith.divf %103, %104 : vector<8x128xf32>
    %106 = arith.mulf %97, %71 : vector<8x128xf32>
    %107 = arith.mulf %91, %99 : vector<8x128xf32>
    %108 = arith.addf %106, %107 : vector<8x128xf32>
    %109 = math.tanh %108 : vector<8x128xf32>
    %110 = arith.mulf %105, %109 : vector<8x128xf32>
    %111 = arith.truncf %110 : vector<8x128xf32> to vector<8x128xbf16>
    %112 = arith.index_cast %c2_i32 : i32 to index
    %c0_32 = arith.constant 0 : index
    %c0_33 = arith.constant 0 : index
    %113 = vector.load %arg3[%112, %c0_32, %c0_33] : memref<8x8x128xbf16, #tpu.memory_space<vmem>>, vector<1x8x128xbf16>
    %114 = vector.shape_cast %113 : vector<1x8x128xbf16> to vector<8x128xbf16>
    %115 = vector.shape_cast %111 : vector<8x128xbf16> to vector<1x8x128xbf16>
    tpu.vector_store %arg3[%112, %c0_32, %c0_33], %115 {strides = array<i32>} : memref<8x8x128xbf16, #tpu.memory_space<vmem>>, vector<1x8x128xbf16>,
    %c3_i32 = arith.constant 3 : i32
    %116 = arith.index_cast %c3_i32 : i32 to index
    %c0_34 = arith.constant 0 : index
    %c0_35 = arith.constant 0 : index
    %117 = vector.load %arg1[%116, %c0_34, %c0_35] : memref<8x8x512xf32, #tpu.memory_space<vmem>>, vector<1x8x512xf32>
    %118 = vector.shape_cast %117 : vector<1x8x512xf32> to vector<8x512xf32>
    %119 = arith.truncf %110 : vector<8x128xf32> to vector<8x128xbf16>
    %c0_36 = arith.constant 0 : index
    %c0_37 = arith.constant 0 : index
    %120 = vector.load %arg2[%c0_36, %c0_37] : memref<128x512xbf16, #tpu.memory_space<vmem>>, vector<128x512xbf16>
    %cst_38 = arith.constant dense<0.000000e+00> : vector<8x512xf32>
    %121 = tpu.matmul %119, %120, %cst_38 {dimension_numbers = #tpu.dot_dimension_numbers<[1], [0], [0], [1], [0, 0, 1, 1], [], []>} : vector<8x128xbf16>, vector<128x512xbf16>, vector<8x512xf32> -> vector<8x512xf32>
    %122 = arith.addf %118, %121 : vector<8x512xf32>
    %123 = vector.extract_strided_slice %122 {offsets = [0, 0], sizes = [8, 128], strides = [1, 1]} : vector<8x512xf32> to vector<8x128xf32>
    %124 = arith.negf %123 : vector<8x128xf32>
    %125 = math.exp %124 : vector<8x128xf32>
    %cst_39 = arith.constant 1.000000e+00 : f32
    %126 = vector.broadcast %cst_39 : f32 to vector<8x128xf32>
    %127 = arith.addf %126, %125 : vector<8x128xf32>
    %128 = arith.divf %126, %127 : vector<8x128xf32>
    %129 = vector.extract_strided_slice %122 {offsets = [0, 128], sizes = [8, 128], strides = [1, 1]} : vector<8x512xf32> to vector<8x128xf32>
    %130 = arith.negf %129 : vector<8x128xf32>
    %131 = math.exp %130 : vector<8x128xf32>
    %cst_40 = arith.constant 1.000000e+00 : f32
    %132 = vector.broadcast %cst_40 : f32 to vector<8x128xf32>
    %133 = arith.addf %132, %131 : vector<8x128xf32>
    %134 = arith.divf %132, %133 : vector<8x128xf32>
    %135 = vector.extract_strided_slice %122 {offsets = [0, 256], sizes = [8, 128], strides = [1, 1]} : vector<8x512xf32> to vector<8x128xf32>
    %136 = math.tanh %135 : vector<8x128xf32>
    %137 = vector.extract_strided_slice %122 {offsets = [0, 384], sizes = [8, 128], strides = [1, 1]} : vector<8x512xf32> to vector<8x128xf32>
    %138 = arith.negf %137 : vector<8x128xf32>
    %139 = math.exp %138 : vector<8x128xf32>
    %cst_41 = arith.constant 1.000000e+00 : f32
    %140 = vector.broadcast %cst_41 : f32 to vector<8x128xf32>
    %141 = arith.addf %140, %139 : vector<8x128xf32>
    %142 = arith.divf %140, %141 : vector<8x128xf32>
    %143 = arith.mulf %134, %108 : vector<8x128xf32>
    %144 = arith.mulf %128, %136 : vector<8x128xf32>
    %145 = arith.addf %143, %144 : vector<8x128xf32>
    %146 = math.tanh %145 : vector<8x128xf32>
    %147 = arith.mulf %142, %146 : vector<8x128xf32>
    %148 = arith.truncf %147 : vector<8x128xf32> to vector<8x128xbf16>
    %149 = arith.index_cast %c3_i32 : i32 to index
    %c0_42 = arith.constant 0 : index
    %c0_43 = arith.constant 0 : index
    %150 = vector.load %arg3[%149, %c0_42, %c0_43] : memref<8x8x128xbf16, #tpu.memory_space<vmem>>, vector<1x8x128xbf16>
    %151 = vector.shape_cast %150 : vector<1x8x128xbf16> to vector<8x128xbf16>
    %152 = vector.shape_cast %148 : vector<8x128xbf16> to vector<1x8x128xbf16>
    tpu.vector_store %arg3[%149, %c0_42, %c0_43], %152 {strides = array<i32>} : memref<8x8x128xbf16, #tpu.memory_space<vmem>>, vector<1x8x128xbf16>,
    %c4_i32 = arith.constant 4 : i32
    %153 = arith.index_cast %c4_i32 : i32 to index
    %c0_44 = arith.constant 0 : index
    %c0_45 = arith.constant 0 : index
    %154 = vector.load %arg1[%153, %c0_44, %c0_45] : memref<8x8x512xf32, #tpu.memory_space<vmem>>, vector<1x8x512xf32>
    %155 = vector.shape_cast %154 : vector<1x8x512xf32> to vector<8x512xf32>
    %156 = arith.truncf %147 : vector<8x128xf32> to vector<8x128xbf16>
    %c0_46 = arith.constant 0 : index
    %c0_47 = arith.constant 0 : index
    %157 = vector.load %arg2[%c0_46, %c0_47] : memref<128x512xbf16, #tpu.memory_space<vmem>>, vector<128x512xbf16>
    %cst_48 = arith.constant dense<0.000000e+00> : vector<8x512xf32>
    %158 = tpu.matmul %156, %157, %cst_48 {dimension_numbers = #tpu.dot_dimension_numbers<[1], [0], [0], [1], [0, 0, 1, 1], [], []>} : vector<8x128xbf16>, vector<128x512xbf16>, vector<8x512xf32> -> vector<8x512xf32>
    %159 = arith.addf %155, %158 : vector<8x512xf32>
    %160 = vector.extract_strided_slice %159 {offsets = [0, 0], sizes = [8, 128], strides = [1, 1]} : vector<8x512xf32> to vector<8x128xf32>
    %161 = arith.negf %160 : vector<8x128xf32>
    %162 = math.exp %161 : vector<8x128xf32>
    %cst_49 = arith.constant 1.000000e+00 : f32
    %163 = vector.broadcast %cst_49 : f32 to vector<8x128xf32>
    %164 = arith.addf %163, %162 : vector<8x128xf32>
    %165 = arith.divf %163, %164 : vector<8x128xf32>
    %166 = vector.extract_strided_slice %159 {offsets = [0, 128], sizes = [8, 128], strides = [1, 1]} : vector<8x512xf32> to vector<8x128xf32>
    %167 = arith.negf %166 : vector<8x128xf32>
    %168 = math.exp %167 : vector<8x128xf32>
    %cst_50 = arith.constant 1.000000e+00 : f32
    %169 = vector.broadcast %cst_50 : f32 to vector<8x128xf32>
    %170 = arith.addf %169, %168 : vector<8x128xf32>
    %171 = arith.divf %169, %170 : vector<8x128xf32>
    %172 = vector.extract_strided_slice %159 {offsets = [0, 256], sizes = [8, 128], strides = [1, 1]} : vector<8x512xf32> to vector<8x128xf32>
    %173 = math.tanh %172 : vector<8x128xf32>
    %174 = vector.extract_strided_slice %159 {offsets = [0, 384], sizes = [8, 128], strides = [1, 1]} : vector<8x512xf32> to vector<8x128xf32>
    %175 = arith.negf %174 : vector<8x128xf32>
    %176 = math.exp %175 : vector<8x128xf32>
    %cst_51 = arith.constant 1.000000e+00 : f32
    %177 = vector.broadcast %cst_51 : f32 to vector<8x128xf32>
    %178 = arith.addf %177, %176 : vector<8x128xf32>
    %179 = arith.divf %177, %178 : vector<8x128xf32>
    %180 = arith.mulf %171, %145 : vector<8x128xf32>
    %181 = arith.mulf %165, %173 : vector<8x128xf32>
    %182 = arith.addf %180, %181 : vector<8x128xf32>
    %183 = math.tanh %182 : vector<8x128xf32>
    %184 = arith.mulf %179, %183 : vector<8x128xf32>
    %185 = arith.truncf %184 : vector<8x128xf32> to vector<8x128xbf16>
    %186 = arith.index_cast %c4_i32 : i32 to index
    %c0_52 = arith.constant 0 : index
    %c0_53 = arith.constant 0 : index
    %187 = vector.load %arg3[%186, %c0_52, %c0_53] : memref<8x8x128xbf16, #tpu.memory_space<vmem>>, vector<1x8x128xbf16>
    %188 = vector.shape_cast %187 : vector<1x8x128xbf16> to vector<8x128xbf16>
    %189 = vector.shape_cast %185 : vector<8x128xbf16> to vector<1x8x128xbf16>
    tpu.vector_store %arg3[%186, %c0_52, %c0_53], %189 {strides = array<i32>} : memref<8x8x128xbf16, #tpu.memory_space<vmem>>, vector<1x8x128xbf16>,
    %c5_i32 = arith.constant 5 : i32
    %190 = arith.index_cast %c5_i32 : i32 to index
    %c0_54 = arith.constant 0 : index
    %c0_55 = arith.constant 0 : index
    %191 = vector.load %arg1[%190, %c0_54, %c0_55] : memref<8x8x512xf32, #tpu.memory_space<vmem>>, vector<1x8x512xf32>
    %192 = vector.shape_cast %191 : vector<1x8x512xf32> to vector<8x512xf32>
    %193 = arith.truncf %184 : vector<8x128xf32> to vector<8x128xbf16>
    %c0_56 = arith.constant 0 : index
    %c0_57 = arith.constant 0 : index
    %194 = vector.load %arg2[%c0_56, %c0_57] : memref<128x512xbf16, #tpu.memory_space<vmem>>, vector<128x512xbf16>
    %cst_58 = arith.constant dense<0.000000e+00> : vector<8x512xf32>
    %195 = tpu.matmul %193, %194, %cst_58 {dimension_numbers = #tpu.dot_dimension_numbers<[1], [0], [0], [1], [0, 0, 1, 1], [], []>} : vector<8x128xbf16>, vector<128x512xbf16>, vector<8x512xf32> -> vector<8x512xf32>
    %196 = arith.addf %192, %195 : vector<8x512xf32>
    %197 = vector.extract_strided_slice %196 {offsets = [0, 0], sizes = [8, 128], strides = [1, 1]} : vector<8x512xf32> to vector<8x128xf32>
    %198 = arith.negf %197 : vector<8x128xf32>
    %199 = math.exp %198 : vector<8x128xf32>
    %cst_59 = arith.constant 1.000000e+00 : f32
    %200 = vector.broadcast %cst_59 : f32 to vector<8x128xf32>
    %201 = arith.addf %200, %199 : vector<8x128xf32>
    %202 = arith.divf %200, %201 : vector<8x128xf32>
    %203 = vector.extract_strided_slice %196 {offsets = [0, 128], sizes = [8, 128], strides = [1, 1]} : vector<8x512xf32> to vector<8x128xf32>
    %204 = arith.negf %203 : vector<8x128xf32>
    %205 = math.exp %204 : vector<8x128xf32>
    %cst_60 = arith.constant 1.000000e+00 : f32
    %206 = vector.broadcast %cst_60 : f32 to vector<8x128xf32>
    %207 = arith.addf %206, %205 : vector<8x128xf32>
    %208 = arith.divf %206, %207 : vector<8x128xf32>
    %209 = vector.extract_strided_slice %196 {offsets = [0, 256], sizes = [8, 128], strides = [1, 1]} : vector<8x512xf32> to vector<8x128xf32>
    %210 = math.tanh %209 : vector<8x128xf32>
    %211 = vector.extract_strided_slice %196 {offsets = [0, 384], sizes = [8, 128], strides = [1, 1]} : vector<8x512xf32> to vector<8x128xf32>
    %212 = arith.negf %211 : vector<8x128xf32>
    %213 = math.exp %212 : vector<8x128xf32>
    %cst_61 = arith.constant 1.000000e+00 : f32
    %214 = vector.broadcast %cst_61 : f32 to vector<8x128xf32>
    %215 = arith.addf %214, %213 : vector<8x128xf32>
    %216 = arith.divf %214, %215 : vector<8x128xf32>
    %217 = arith.mulf %208, %182 : vector<8x128xf32>
    %218 = arith.mulf %202, %210 : vector<8x128xf32>
    %219 = arith.addf %217, %218 : vector<8x128xf32>
    %220 = math.tanh %219 : vector<8x128xf32>
    %221 = arith.mulf %216, %220 : vector<8x128xf32>
    %222 = arith.truncf %221 : vector<8x128xf32> to vector<8x128xbf16>
    %223 = arith.index_cast %c5_i32 : i32 to index
    %c0_62 = arith.constant 0 : index
    %c0_63 = arith.constant 0 : index
    %224 = vector.load %arg3[%223, %c0_62, %c0_63] : memref<8x8x128xbf16, #tpu.memory_space<vmem>>, vector<1x8x128xbf16>
    %225 = vector.shape_cast %224 : vector<1x8x128xbf16> to vector<8x128xbf16>
    %226 = vector.shape_cast %222 : vector<8x128xbf16> to vector<1x8x128xbf16>
    tpu.vector_store %arg3[%223, %c0_62, %c0_63], %226 {strides = array<i32>} : memref<8x8x128xbf16, #tpu.memory_space<vmem>>, vector<1x8x128xbf16>,
    %c6_i32 = arith.constant 6 : i32
    %227 = arith.index_cast %c6_i32 : i32 to index
    %c0_64 = arith.constant 0 : index
    %c0_65 = arith.constant 0 : index
    %228 = vector.load %arg1[%227, %c0_64, %c0_65] : memref<8x8x512xf32, #tpu.memory_space<vmem>>, vector<1x8x512xf32>
    %229 = vector.shape_cast %228 : vector<1x8x512xf32> to vector<8x512xf32>
    %230 = arith.truncf %221 : vector<8x128xf32> to vector<8x128xbf16>
    %c0_66 = arith.constant 0 : index
    %c0_67 = arith.constant 0 : index
    %231 = vector.load %arg2[%c0_66, %c0_67] : memref<128x512xbf16, #tpu.memory_space<vmem>>, vector<128x512xbf16>
    %cst_68 = arith.constant dense<0.000000e+00> : vector<8x512xf32>
    %232 = tpu.matmul %230, %231, %cst_68 {dimension_numbers = #tpu.dot_dimension_numbers<[1], [0], [0], [1], [0, 0, 1, 1], [], []>} : vector<8x128xbf16>, vector<128x512xbf16>, vector<8x512xf32> -> vector<8x512xf32>
    %233 = arith.addf %229, %232 : vector<8x512xf32>
    %234 = vector.extract_strided_slice %233 {offsets = [0, 0], sizes = [8, 128], strides = [1, 1]} : vector<8x512xf32> to vector<8x128xf32>
    %235 = arith.negf %234 : vector<8x128xf32>
    %236 = math.exp %235 : vector<8x128xf32>
    %cst_69 = arith.constant 1.000000e+00 : f32
    %237 = vector.broadcast %cst_69 : f32 to vector<8x128xf32>
    %238 = arith.addf %237, %236 : vector<8x128xf32>
    %239 = arith.divf %237, %238 : vector<8x128xf32>
    %240 = vector.extract_strided_slice %233 {offsets = [0, 128], sizes = [8, 128], strides = [1, 1]} : vector<8x512xf32> to vector<8x128xf32>
    %241 = arith.negf %240 : vector<8x128xf32>
    %242 = math.exp %241 : vector<8x128xf32>
    %cst_70 = arith.constant 1.000000e+00 : f32
    %243 = vector.broadcast %cst_70 : f32 to vector<8x128xf32>
    %244 = arith.addf %243, %242 : vector<8x128xf32>
    %245 = arith.divf %243, %244 : vector<8x128xf32>
    %246 = vector.extract_strided_slice %233 {offsets = [0, 256], sizes = [8, 128], strides = [1, 1]} : vector<8x512xf32> to vector<8x128xf32>
    %247 = math.tanh %246 : vector<8x128xf32>
    %248 = vector.extract_strided_slice %233 {offsets = [0, 384], sizes = [8, 128], strides = [1, 1]} : vector<8x512xf32> to vector<8x128xf32>
    %249 = arith.negf %248 : vector<8x128xf32>
    %250 = math.exp %249 : vector<8x128xf32>
    %cst_71 = arith.constant 1.000000e+00 : f32
    %251 = vector.broadcast %cst_71 : f32 to vector<8x128xf32>
    %252 = arith.addf %251, %250 : vector<8x128xf32>
    %253 = arith.divf %251, %252 : vector<8x128xf32>
    %254 = arith.mulf %245, %219 : vector<8x128xf32>
    %255 = arith.mulf %239, %247 : vector<8x128xf32>
    %256 = arith.addf %254, %255 : vector<8x128xf32>
    %257 = math.tanh %256 : vector<8x128xf32>
    %258 = arith.mulf %253, %257 : vector<8x128xf32>
    %259 = arith.truncf %258 : vector<8x128xf32> to vector<8x128xbf16>
    %260 = arith.index_cast %c6_i32 : i32 to index
    %c0_72 = arith.constant 0 : index
    %c0_73 = arith.constant 0 : index
    %261 = vector.load %arg3[%260, %c0_72, %c0_73] : memref<8x8x128xbf16, #tpu.memory_space<vmem>>, vector<1x8x128xbf16>
    %262 = vector.shape_cast %261 : vector<1x8x128xbf16> to vector<8x128xbf16>
    %263 = vector.shape_cast %259 : vector<8x128xbf16> to vector<1x8x128xbf16>
    tpu.vector_store %arg3[%260, %c0_72, %c0_73], %263 {strides = array<i32>} : memref<8x8x128xbf16, #tpu.memory_space<vmem>>, vector<1x8x128xbf16>,
    %c7_i32 = arith.constant 7 : i32
    %264 = arith.index_cast %c7_i32 : i32 to index
    %c0_74 = arith.constant 0 : index
    %c0_75 = arith.constant 0 : index
    %265 = vector.load %arg1[%264, %c0_74, %c0_75] : memref<8x8x512xf32, #tpu.memory_space<vmem>>, vector<1x8x512xf32>
    %266 = vector.shape_cast %265 : vector<1x8x512xf32> to vector<8x512xf32>
    %267 = arith.truncf %258 : vector<8x128xf32> to vector<8x128xbf16>
    %c0_76 = arith.constant 0 : index
    %c0_77 = arith.constant 0 : index
    %268 = vector.load %arg2[%c0_76, %c0_77] : memref<128x512xbf16, #tpu.memory_space<vmem>>, vector<128x512xbf16>
    %cst_78 = arith.constant dense<0.000000e+00> : vector<8x512xf32>
    %269 = tpu.matmul %267, %268, %cst_78 {dimension_numbers = #tpu.dot_dimension_numbers<[1], [0], [0], [1], [0, 0, 1, 1], [], []>} : vector<8x128xbf16>, vector<128x512xbf16>, vector<8x512xf32> -> vector<8x512xf32>
    %270 = arith.addf %266, %269 : vector<8x512xf32>
    %271 = vector.extract_strided_slice %270 {offsets = [0, 0], sizes = [8, 128], strides = [1, 1]} : vector<8x512xf32> to vector<8x128xf32>
    %272 = arith.negf %271 : vector<8x128xf32>
    %273 = math.exp %272 : vector<8x128xf32>
    %cst_79 = arith.constant 1.000000e+00 : f32
    %274 = vector.broadcast %cst_79 : f32 to vector<8x128xf32>
    %275 = arith.addf %274, %273 : vector<8x128xf32>
    %276 = arith.divf %274, %275 : vector<8x128xf32>
    %277 = vector.extract_strided_slice %270 {offsets = [0, 128], sizes = [8, 128], strides = [1, 1]} : vector<8x512xf32> to vector<8x128xf32>
    %278 = arith.negf %277 : vector<8x128xf32>
    %279 = math.exp %278 : vector<8x128xf32>
    %cst_80 = arith.constant 1.000000e+00 : f32
    %280 = vector.broadcast %cst_80 : f32 to vector<8x128xf32>
    %281 = arith.addf %280, %279 : vector<8x128xf32>
    %282 = arith.divf %280, %281 : vector<8x128xf32>
    %283 = vector.extract_strided_slice %270 {offsets = [0, 256], sizes = [8, 128], strides = [1, 1]} : vector<8x512xf32> to vector<8x128xf32>
    %284 = math.tanh %283 : vector<8x128xf32>
    %285 = vector.extract_strided_slice %270 {offsets = [0, 384], sizes = [8, 128], strides = [1, 1]} : vector<8x512xf32> to vector<8x128xf32>
    %286 = arith.negf %285 : vector<8x128xf32>
    %287 = math.exp %286 : vector<8x128xf32>
    %cst_81 = arith.constant 1.000000e+00 : f32
    %288 = vector.broadcast %cst_81 : f32 to vector<8x128xf32>
    %289 = arith.addf %288, %287 : vector<8x128xf32>
    %290 = arith.divf %288, %289 : vector<8x128xf32>
    %291 = arith.mulf %282, %256 : vector<8x128xf32>
    %292 = arith.mulf %276, %284 : vector<8x128xf32>
    %293 = arith.addf %291, %292 : vector<8x128xf32>
    %294 = math.tanh %293 : vector<8x128xf32>
    %295 = arith.mulf %290, %294 : vector<8x128xf32>
    %296 = arith.truncf %295 : vector<8x128xf32> to vector<8x128xbf16>
    %297 = arith.index_cast %c7_i32 : i32 to index
    %c0_82 = arith.constant 0 : index
    %c0_83 = arith.constant 0 : index
    %298 = vector.load %arg3[%297, %c0_82, %c0_83] : memref<8x8x128xbf16, #tpu.memory_space<vmem>>, vector<1x8x128xbf16>
    %299 = vector.shape_cast %298 : vector<1x8x128xbf16> to vector<8x128xbf16>
    %300 = vector.shape_cast %296 : vector<8x128xbf16> to vector<1x8x128xbf16>
    tpu.vector_store %arg3[%297, %c0_82, %c0_83], %300 {strides = array<i32>} : memref<8x8x128xbf16, #tpu.memory_space<vmem>>, vector<1x8x128xbf16>,
    %c8_i32 = arith.constant 8 : i32
    %c0_84 = arith.constant 0 : index
    %c0_85 = arith.constant 0 : index
    %301 = vector.load %arg4[%c0_84, %c0_85] : memref<8x128xf32, #tpu.memory_space<vmem>>, vector<8x128xf32>
    tpu.vector_store %arg4[%c0_84, %c0_85], %295 {strides = array<i32>} : memref<8x128xf32, #tpu.memory_space<vmem>>, vector<8x128xf32>,
    %c0_86 = arith.constant 0 : index
    %c0_87 = arith.constant 0 : index
    %302 = vector.load %arg5[%c0_86, %c0_87] : memref<8x128xf32, #tpu.memory_space<vmem>>, vector<8x128xf32>
    tpu.vector_store %arg5[%c0_86, %c0_87], %293 {strides = array<i32>} : memref<8x128xf32, #tpu.memory_space<vmem>>, vector<8x128xf32>,
    return
  }
  func.func @transform_0(%arg0: i32) -> (i32, i32, i32) {
    %c0_i32 = arith.constant 0 : i32
    %c0_i32_0 = arith.constant 0 : i32
    %c0_i32_1 = arith.constant 0 : i32
    return %arg0, %c0_i32, %c0_i32_0 : i32, i32, i32
  }
  func.func @transform_1(%arg0: i32) -> (i32, i32) {
    %c0_i32 = arith.constant 0 : i32
    %c0_i32_0 = arith.constant 0 : i32
    %c0_i32_1 = arith.constant 0 : i32
    return %c0_i32, %c0_i32_0 : i32, i32
  }
  func.func @transform_2(%arg0: i32) -> (i32, i32, i32) {
    %c0_i32 = arith.constant 0 : i32
    %c0_i32_0 = arith.constant 0 : i32
    %c0_i32_1 = arith.constant 0 : i32
    return %arg0, %c0_i32, %c0_i32_0 : i32, i32, i32
  }
}

</mosaic_0001>

<llo_original>
// kernel: decoder_rnn_forward.5
$region0: #{decoder_rnn_forward.5}
  #allocation0 [shape = 'u32[]', space=smem, size = 0x4, offset = 0x4, fixed_abs, tag = 'smem constant byte address 0x4 - core index']
  #allocation1 [shape = 'u32[144,128]{1,0:T(1,128)}', space=vmem, size = 0x12000, scoped, tag = 'internal scratch']
  #allocation2 [shape = 'f32[64,128]{1,0:T(8,128)}', space=vmem, size = 0x8000, scoped, tag = 'scratch operand']
  %s0 = inlined_call_operand.vmem [shape: bf16[64,128], index: 0, kind: input, shape index: {}]
  %s1 = inlined_call_operand.vmem [shape: bf16[128,128], index: 1, kind: input, shape index: {}]
  %s2 = inlined_call_operand.vmem [shape: f32[1,128], index: 2, kind: input, shape index: {}]
  %s3 = inlined_call_operand.vmem [shape: f32[64,128], index: 3, kind: output, shape index: {}]
  %s4 = sld [smem:[#allocation0]]
  $region30: #{decoder_rnn_forward.5} parent=0
    _
  %s6 = ssub.s32 1, %s4
  %s7 = scalar_select 0, %s6, %s4
  // Predicated region
  $region2: #{decoder_rnn_forward.5} parent=0 // pred_check
    _
  $region3: #{decoder_rnn_forward.5} parent=0 // pred_check_branch
    %9 = sbr.rel (0) target = $region5
  $region4: #{decoder_rnn_forward.5} parent=0 // pred_region
    _
  $region5: #{decoder_rnn_forward.5} parent=0 // pred_fallthru
    _
  // Predicated region
  $region6: #{decoder_rnn_forward.5} parent=0 // pred_check
    _
  $region7: #{decoder_rnn_forward.5} parent=0 // pred_check_branch
    %11 = sbr.rel (0) target = $region9
  $region8: #{decoder_rnn_forward.5} parent=0 // pred_region
    _
  $region9: #{decoder_rnn_forward.5} parent=0 // pred_fallthru
    _
  // Predicated region
  $region10: #{decoder_rnn_forward.5} parent=0 // pred_check
    _
  $region11: #{decoder_rnn_forward.5} parent=0 // pred_check_branch
    %13 = sbr.rel (0) target = $region13
  $region12: #{decoder_rnn_forward.5} parent=0 // pred_region
    _
  $region13: #{decoder_rnn_forward.5} parent=0 // pred_fallthru
    _
  %p15 = scmp.eq.s32.totalorder 0, 0
  // Predicated region
  $region14: #{decoder_rnn_forward.5} parent=0 // pred_check
    %p16 = pneg %p15
  $region15: #{decoder_rnn_forward.5} parent=0 // pred_check_branch
    %18 = sbr.rel (%p16) target = $region17
  $region16: #{decoder_rnn_forward.5} parent=0 // pred_region
    %19 = vst [vmem:[#allocation2] sm:$0xff] 0.0
    %20 = vst [vmem:[#allocation2 + $0x8] sm:$0xff] 0.0
    %21 = vst [vmem:[#allocation2 + $0x10] sm:$0xff] 0.0
    %22 = vst [vmem:[#allocation2 + $0x18] sm:$0xff] 0.0
    %23 = vst [vmem:[#allocation2 + $0x20] sm:$0xff] 0.0
    %24 = vst [vmem:[#allocation2 + $0x28] sm:$0xff] 0.0
    %25 = vst [vmem:[#allocation2 + $0x30] sm:$0xff] 0.0
    %26 = vst [vmem:[#allocation2 + $0x38] sm:$0xff] 0.0
  $region17: #{decoder_rnn_forward.5} parent=0 // pred_fallthru
    _
  %v27 = vld [vmem:[#allocation2] sm:$0xff]
  %v28 = vld [vmem:[#allocation2 + $0x8] sm:$0xff]
  %v29 = vld [vmem:[#allocation2 + $0x10] sm:$0xff]
  %v30 = vld [vmem:[#allocation2 + $0x18] sm:$0xff]
  %v31 = vld [vmem:[#allocation2 + $0x20] sm:$0xff]
  %v32 = vld [vmem:[#allocation2 + $0x28] sm:$0xff]
  %v33 = vld [vmem:[#allocation2 + $0x30] sm:$0xff]
  %v34 = vld [vmem:[#allocation2 + $0x38] sm:$0xff]
  %v35 = vld [vmem:[%s0] sm:$0xf]
  %v36 = vld [vmem:[%s0 + $0x4] sm:$0xf]
  %v37 = vld [vmem:[%s0 + $0x8] sm:$0xf]
  %v38 = vld [vmem:[%s0 + $0xc] sm:$0xf]
  %v39 = vld [vmem:[%s0 + $0x10] sm:$0xf]
  %v40 = vld [vmem:[%s0 + $0x14] sm:$0xf]
  %v41 = vld [vmem:[%s0 + $0x18] sm:$0xf]
  %v42 = vld [vmem:[%s0 + $0x1c] sm:$0xf]
  %v43 = vld [vmem:[%s1] sm:$0xf]
  %v44 = vld [vmem:[%s1 + $0x4] sm:$0xf]
  %v45 = vld [vmem:[%s1 + $0x8] sm:$0xf]
  %v46 = vld [vmem:[%s1 + $0xc] sm:$0xf]
  %v47 = vld [vmem:[%s1 + $0x10] sm:$0xf]
  %v48 = vld [vmem:[%s1 + $0x14] sm:$0xf]
  %v49 = vld [vmem:[%s1 + $0x18] sm:$0xf]
  %v50 = vld [vmem:[%s1 + $0x1c] sm:$0xf]
  %v51 = vld [vmem:[%s1 + $0x20] sm:$0xf]
  %v52 = vld [vmem:[%s1 + $0x24] sm:$0xf]
  %v53 = vld [vmem:[%s1 + $0x28] sm:$0xf]
  %v54 = vld [vmem:[%s1 + $0x2c] sm:$0xf]
  %v55 = vld [vmem:[%s1 + $0x30] sm:$0xf]
  %v56 = vld [vmem:[%s1 + $0x34] sm:$0xf]
  %v57 = vld [vmem:[%s1 + $0x38] sm:$0xf]
  %v58 = vld [vmem:[%s1 + $0x3c] sm:$0xf]
  %v67 = vunpack.c.l.b16 %v35
  %v68 = vunpack.c.l.b16 %v36
  %v69 = vunpack.c.l.b16 %v37
  %v70 = vunpack.c.l.b16 %v38
  %v71 = vunpack.c.l.b16 %v39
  %v72 = vunpack.c.l.b16 %v40
  %v73 = vunpack.c.l.b16 %v41
  %v74 = vunpack.c.l.b16 %v42
  %v75 = vpack.c.b16 %v68, %v67
  %v76 = vpack.c.b16 %v70, %v69
  %v77 = vpack.c.b16 %v72, %v71
  %v78 = vpack.c.b16 %v74, %v73
  %v99 = vunpack.c.l.b16 %v43
  %v100 = vunpack.c.l.b16 %v44
  %v101 = vunpack.c.l.b16 %v45
  %v102 = vunpack.c.l.b16 %v46
  %v103 = vunpack.c.l.b16 %v47
  %v104 = vunpack.c.l.b16 %v48
  %v105 = vunpack.c.l.b16 %v49
  %v106 = vunpack.c.l.b16 %v50
  %v107 = vunpack.c.l.b16 %v51
  %v108 = vunpack.c.l.b16 %v52
  %v109 = vunpack.c.l.b16 %v53
  %v110 = vunpack.c.l.b16 %v54
  %v111 = vunpack.c.l.b16 %v55
  %v112 = vunpack.c.l.b16 %v56
  %v113 = vunpack.c.l.b16 %v57
  %v114 = vunpack.c.l.b16 %v58
  %v115 = vpack.c.b16 %v100, %v99
  %v116 = vpack.c.b16 %v102, %v101
  %v117 = vpack.c.b16 %v104, %v103
  %v118 = vpack.c.b16 %v106, %v105
  %v119 = vpack.c.b16 %v108, %v107
  %v120 = vpack.c.b16 %v110, %v109
  %v121 = vpack.c.b16 %v112, %v111
  %v122 = vpack.c.b16 %v114, %v113
  %131 = vmatprep.subr.bf16.mxu0 0
  %132 = vmatpush1.bf16.msra.mxu0 %v122
  %133 = vmatprep.subr.bf16.mxu0 0
  %134 = vmatpush1.bf16.msra.mxu0 %v121
  %135 = vmatprep.subr.bf16.mxu0 0
  %136 = vmatpush1.bf16.msra.mxu0 %v120
  %137 = vmatprep.subr.bf16.mxu0 0
  %138 = vmatpush1.bf16.msra.mxu0 %v119
  %139 = vmatprep.subr.bf16.mxu0 0
  %140 = vmatpush1.bf16.msra.mxu0 %v118
  %141 = vmatprep.subr.bf16.mxu0 0
  %142 = vmatpush1.bf16.msra.mxu0 %v117
  %143 = vmatprep.subr.bf16.mxu0 0
  %144 = vmatpush1.bf16.msra.mxu0 %v116
  %145 = vmatprep.subr.bf16.mxu0 0
  %146 = vmatpush1.bf16.msra.mxu0 %v115
  %147 = vmatprep.subr.bf16.mxu0 0
  %148 = vmatpush2.bf16.msra.mxu0 0
  %149 = vmatprep.subr.bf16.mxu0 0
  %150 = vmatpush2.bf16.msra.mxu0 0
  %151 = vmatprep.subr.bf16.mxu0 0
  %152 = vmatpush2.bf16.msra.mxu0 0
  %153 = vmatprep.subr.bf16.mxu0 0
  %154 = vmatpush2.bf16.msra.mxu0 0
  %155 = vmatprep.subr.bf16.mxu0 0
  %156 = vmatpush2.bf16.msra.mxu0 0
  %157 = vmatprep.subr.bf16.mxu0 0
  %158 = vmatpush2.bf16.msra.mxu0 0
  %159 = vmatprep.subr.bf16.mxu0 0
  %160 = vmatpush2.bf16.msra.mxu0 0
  %161 = vmatprep.subr.bf16.mxu0 0
  %162 = vmatpush2.bf16.msra.mxu0 0
  %163 = vmatprep.mubr.bf16.mxu0 0
  %164 = vmatmul.mubr.bf16.gmra.mxu0 %v75
  %v165 = vpop.f32.mrf.mxu0
  %v166 = vadd.f32 0.0, %v165
  %v167 = vpop.f32.mrf.mxu0
  %v168 = vpop.f32.mrf.mxu0
  %v169 = vadd.f32 0.0, %v168
  %v170 = vpop.f32.mrf.mxu0
  %171 = vmatprep.mubr.bf16.mxu0 0
  %172 = vmatmul.mubr.bf16.gmra.mxu0 %v76
  %v173 = vpop.f32.mrf.mxu0
  %v174 = vadd.f32 0.0, %v173
  %v175 = vpop.f32.mrf.mxu0
  %v176 = vpop.f32.mrf.mxu0
  %v177 = vadd.f32 0.0, %v176
  %v178 = vpop.f32.mrf.mxu0
  %179 = vmatprep.mubr.bf16.mxu0 0
  %180 = vmatmul.mubr.bf16.gmra.mxu0 %v77
  %v181 = vpop.f32.mrf.mxu0
  %v182 = vadd.f32 0.0, %v181
  %v183 = vpop.f32.mrf.mxu0
  %v184 = vpop.f32.mrf.mxu0
  %v185 = vadd.f32 0.0, %v184
  %v186 = vpop.f32.mrf.mxu0
  %187 = vmatprep.mubr.bf16.mxu0 0
  %188 = vmatmul.mubr.bf16.gmra.mxu0 %v78
  %v189 = vpop.f32.mrf.mxu0
  %v190 = vadd.f32 0.0, %v189
  %v191 = vpop.f32.mrf.mxu0
  %v192 = vpop.f32.mrf.mxu0
  %v193 = vadd.f32 0.0, %v192
  %v194 = vpop.f32.mrf.mxu0
  %195 = vdwg.mxu0
  %v196 = vadd.f32 %v27, %v166
  %v197 = vadd.f32 %v28, %v169
  %v198 = vadd.f32 %v29, %v174
  %v199 = vadd.f32 %v30, %v177
  %v200 = vadd.f32 %v31, %v182
  %v201 = vadd.f32 %v32, %v185
  %v202 = vadd.f32 %v33, %v190
  %v203 = vadd.f32 %v34, %v193
  %204 = vst [vmem:[#allocation2] sm:$0xff] %v196
  %205 = vst [vmem:[#allocation2 + $0x8] sm:$0xff] %v197
  %206 = vst [vmem:[#allocation2 + $0x10] sm:$0xff] %v198
  %207 = vst [vmem:[#allocation2 + $0x18] sm:$0xff] %v199
  %208 = vst [vmem:[#allocation2 + $0x20] sm:$0xff] %v200
  %209 = vst [vmem:[#allocation2 + $0x28] sm:$0xff] %v201
  %210 = vst [vmem:[#allocation2 + $0x30] sm:$0xff] %v202
  %211 = vst [vmem:[#allocation2 + $0x38] sm:$0xff] %v203
  // Predicated region
  $region18: #{decoder_rnn_forward.5} parent=0 // pred_check
    %p212 = pneg %p15
  $region19: #{decoder_rnn_forward.5} parent=0 // pred_check_branch
    %214 = sbr.rel (%p212) target = $region21
  $region20: #{decoder_rnn_forward.5} parent=0 // pred_region
    %v215 = vld [vmem:[#allocation2] sm:$0xff]
    %v216 = vld [vmem:[#allocation2 + $0x8] sm:$0xff]
    %v217 = vld [vmem:[#allocation2 + $0x10] sm:$0xff]
    %v218 = vld [vmem:[#allocation2 + $0x18] sm:$0xff]
    %v219 = vld [vmem:[#allocation2 + $0x20] sm:$0xff]
    %v220 = vld [vmem:[#allocation2 + $0x28] sm:$0xff]
    %v221 = vld [vmem:[#allocation2 + $0x30] sm:$0xff]
    %v222 = vld [vmem:[#allocation2 + $0x38] sm:$0xff]
    %v223 = vld [vmem:[%s2] sm:$0x1]
    %v225 = vlaneseq
    %v226 = vshrl.u32 %v225, 7
    %v227 = vsub.s32 0, %v226
    %v228 = vrot.slane %v223, %v227
    %v230 = vadd.f32 %v215, %v228
    %v231 = vadd.f32 %v216, %v228
    %v232 = vadd.f32 %v217, %v228
    %v233 = vadd.f32 %v218, %v228
    %v234 = vadd.f32 %v219, %v228
    %v235 = vadd.f32 %v220, %v228
    %v236 = vadd.f32 %v221, %v228
    %v237 = vadd.f32 %v222, %v228
    %238 = vst [vmem:[%s3] sm:$0xff] %v230
    %239 = vst [vmem:[%s3 + $0x8] sm:$0xff] %v231
    %240 = vst [vmem:[%s3 + $0x10] sm:$0xff] %v232
    %241 = vst [vmem:[%s3 + $0x18] sm:$0xff] %v233
    %242 = vst [vmem:[%s3 + $0x20] sm:$0xff] %v234
    %243 = vst [vmem:[%s3 + $0x28] sm:$0xff] %v235
    %244 = vst [vmem:[%s3 + $0x30] sm:$0xff] %v236
    %245 = vst [vmem:[%s3 + $0x38] sm:$0xff] %v237
  $region21: #{decoder_rnn_forward.5} parent=0 // pred_fallthru
    _
  // Predicated region
  $region22: #{decoder_rnn_forward.5} parent=0 // pred_check
    _
  $region23: #{decoder_rnn_forward.5} parent=0 // pred_check_branch
    %247 = sbr.rel (0) target = $region25
  $region24: #{decoder_rnn_forward.5} parent=0 // pred_region
    _
  $region25: #{decoder_rnn_forward.5} parent=0 // pred_fallthru
    _
  // Predicated region
  $region26: #{decoder_rnn_forward.5} parent=0 // pred_check
    _
  $region27: #{decoder_rnn_forward.5} parent=0 // pred_check_branch
    %249 = sbr.rel (0) target = $region29
  $region28: #{decoder_rnn_forward.5} parent=0 // pred_region
    _
  $region29: #{decoder_rnn_forward.5} parent=0 // pred_fallthru
    _

// kernel: decoder_rnn_forward.3
$region0: #{decoder_rnn_forward.3}
  #allocation0 [shape = 'u32[]', space=smem, size = 0x4, offset = 0x4, fixed_abs, tag = 'smem constant byte address 0x4 - core index']
  #allocation1 [shape = 'u32[144,128]{1,0:T(1,128)}', space=vmem, size = 0x12000, scoped, tag = 'internal scratch']
  #allocation2 [shape = 'f32[64,512]{1,0:T(8,128)}', space=vmem, size = 0x20000, scoped, tag = 'scratch operand']
  %s0 = inlined_call_operand.vmem [shape: bf16[64,128], index: 0, kind: input, shape index: {}]
  %s1 = inlined_call_operand.vmem [shape: bf16[128,512], index: 1, kind: input, shape index: {}]
  %s2 = inlined_call_operand.vmem [shape: f32[1,512], index: 2, kind: input, shape index: {}]
  %s3 = inlined_call_operand.vmem [shape: f32[64,512], index: 3, kind: output, shape index: {}]
  %s4 = sld [smem:[#allocation0]]
  $region30: #{decoder_rnn_forward.3} parent=0
    _
  %s6 = ssub.s32 1, %s4
  %s7 = scalar_select 0, %s6, %s4
  // Predicated region
  $region2: #{decoder_rnn_forward.3} parent=0 // pred_check
    _
  $region3: #{decoder_rnn_forward.3} parent=0 // pred_check_branch
    %9 = sbr.rel (0) target = $region5
  $region4: #{decoder_rnn_forward.3} parent=0 // pred_region
    _
  $region5: #{decoder_rnn_forward.3} parent=0 // pred_fallthru
    _
  // Predicated region
  $region6: #{decoder_rnn_forward.3} parent=0 // pred_check
    _
  $region7: #{decoder_rnn_forward.3} parent=0 // pred_check_branch
    %11 = sbr.rel (0) target = $region9
  $region8: #{decoder_rnn_forward.3} parent=0 // pred_region
    _
  $region9: #{decoder_rnn_forward.3} parent=0 // pred_fallthru
    _
  // Predicated region
  $region10: #{decoder_rnn_forward.3} parent=0 // pred_check
    _
  $region11: #{decoder_rnn_forward.3} parent=0 // pred_check_branch
    %13 = sbr.rel (0) target = $region13
  $region12: #{decoder_rnn_forward.3} parent=0 // pred_region
    _
  $region13: #{decoder_rnn_forward.3} parent=0 // pred_fallthru
    _
  %p15 = scmp.eq.s32.totalorder 0, 0
  // Predicated region
  $region14: #{decoder_rnn_forward.3} parent=0 // pred_check
    %p16 = pneg %p15
  $region15: #{decoder_rnn_forward.3} parent=0 // pred_check_branch
    %18 = sbr.rel (%p16) target = $region17
  $region16: #{decoder_rnn_forward.3} parent=0 // pred_region
    %19 = vst [vmem:[#allocation2] sm:$0xff] 0.0
    %20 = vst [vmem:[#allocation2 + $0x8] sm:$0xff] 0.0
    %21 = vst [vmem:[#allocation2 + $0x10] sm:$0xff] 0.0
    %22 = vst [vmem:[#allocation2 + $0x18] sm:$0xff] 0.0
    %23 = vst [vmem:[#allocation2 + $0x20] sm:$0xff] 0.0
    %24 = vst [vmem:[#allocation2 + $0x28] sm:$0xff] 0.0
    %25 = vst [vmem:[#allocation2 + $0x30] sm:$0xff] 0.0
    %26 = vst [vmem:[#allocation2 + $0x38] sm:$0xff] 0.0
    %27 = vst [vmem:[#allocation2 + $0x40] sm:$0xff] 0.0
    %28 = vst [vmem:[#allocation2 + $0x48] sm:$0xff] 0.0
    %29 = vst [vmem:[#allocation2 + $0x50] sm:$0xff] 0.0
    %30 = vst [vmem:[#allocation2 + $0x58] sm:$0xff] 0.0
    %31 = vst [vmem:[#allocation2 + $0x60] sm:$0xff] 0.0
    %32 = vst [vmem:[#allocation2 + $0x68] sm:$0xff] 0.0
    %33 = vst [vmem:[#allocation2 + $0x70] sm:$0xff] 0.0
    %34 = vst [vmem:[#allocation2 + $0x78] sm:$0xff] 0.0
    %35 = vst [vmem:[#allocation2 + $0x80] sm:$0xff] 0.0
    %36 = vst [vmem:[#allocation2 + $0x88] sm:$0xff] 0.0
    %37 = vst [vmem:[#allocation2 + $0x90] sm:$0xff] 0.0
    %38 = vst [vmem:[#allocation2 + $0x98] sm:$0xff] 0.0
    %39 = vst [vmem:[#allocation2 + $0xa0] sm:$0xff] 0.0
    %40 = vst [vmem:[#allocation2 + $0xa8] sm:$0xff] 0.0
    %41 = vst [vmem:[#allocation2 + $0xb0] sm:$0xff] 0.0
    %42 = vst [vmem:[#allocation2 + $0xb8] sm:$0xff] 0.0
    %43 = vst [vmem:[#allocation2 + $0xc0] sm:$0xff] 0.0
    %44 = vst [vmem:[#allocation2 + $0xc8] sm:$0xff] 0.0
    %45 = vst [vmem:[#allocation2 + $0xd0] sm:$0xff] 0.0
    %46 = vst [vmem:[#allocation2 + $0xd8] sm:$0xff] 0.0
    %47 = vst [vmem:[#allocation2 + $0xe0] sm:$0xff] 0.0
    %48 = vst [vmem:[#allocation2 + $0xe8] sm:$0xff] 0.0
    %49 = vst [vmem:[#allocation2 + $0xf0] sm:$0xff] 0.0
    %50 = vst [vmem:[#allocation2 + $0xf8] sm:$0xff] 0.0
  $region17: #{decoder_rnn_forward.3} parent=0 // pred_fallthru
    _
  %v51 = vld [vmem:[#allocation2] sm:$0xff]
  %v52 = vld [vmem:[#allocation2 + $0x8] sm:$0xff]
  %v53 = vld [vmem:[#allocation2 + $0x10] sm:$0xff]
  %v54 = vld [vmem:[#allocation2 + $0x18] sm:$0xff]
  %v55 = vld [vmem:[#allocation2 + $0x20] sm:$0xff]
  %v56 = vld [vmem:[#allocation2 + $0x28] sm:$0xff]
  %v57 = vld [vmem:[#allocation2 + $0x30] sm:$0xff]
  %v58 = vld [vmem:[#allocation2 + $0x38] sm:$0xff]
  %v59 = vld [vmem:[#allocation2 + $0x40] sm:$0xff]
  %v60 = vld [vmem:[#allocation2 + $0x48] sm:$0xff]
  %v61 = vld [vmem:[#allocation2 + $0x50] sm:$0xff]
  %v62 = vld [vmem:[#allocation2 + $0x58] sm:$0xff]
  %v63 = vld [vmem:[#allocation2 + $0x60] sm:$0xff]
  %v64 = vld [vmem:[#allocation2 + $0x68] sm:$0xff]
  %v65 = vld [vmem:[#allocation2 + $0x70] sm:$0xff]
  %v66 = vld [vmem:[#allocation2 + $0x78] sm:$0xff]
  %v67 = vld [vmem:[#allocation2 + $0x80] sm:$0xff]
  %v68 = vld [vmem:[#allocation2 + $0x88] sm:$0xff]
  %v69 = vld [vmem:[#allocation2 + $0x90] sm:$0xff]
  %v70 = vld [vmem:[#allocation2 + $0x98] sm:$0xff]
  %v71 = vld [vmem:[#allocation2 + $0xa0] sm:$0xff]
  %v72 = vld [vmem:[#allocation2 + $0xa8] sm:$0xff]
  %v73 = vld [vmem:[#allocation2 + $0xb0] sm:$0xff]
  %v74 = vld [vmem:[#allocation2 + $0xb8] sm:$0xff]
  %v75 = vld [vmem:[#allocation2 + $0xc0] sm:$0xff]
  %v76 = vld [vmem:[#allocation2 + $0xc8] sm:$0xff]
  %v77 = vld [vmem:[#allocation2 + $0xd0] sm:$0xff]
  %v78 = vld [vmem:[#allocation2 + $0xd8] sm:$0xff]
  %v79 = vld [vmem:[#allocation2 + $0xe0] sm:$0xff]
  %v80 = vld [vmem:[#allocation2 + $0xe8] sm:$0xff]
  %v81 = vld [vmem:[#allocation2 + $0xf0] sm:$0xff]
  %v82 = vld [vmem:[#allocation2 + $0xf8] sm:$0xff]
  %v83 = vld [vmem:[%s0] sm:$0xf]
  %v84 = vld [vmem:[%s0 + $0x4] sm:$0xf]
  %v85 = vld [vmem:[%s0 + $0x8] sm:$0xf]
  %v86 = vld [vmem:[%s0 + $0xc] sm:$0xf]
  %v87 = vld [vmem:[%s0 + $0x10] sm:$0xf]
  %v88 = vld [vmem:[%s0 + $0x14] sm:$0xf]
  %v89 = vld [vmem:[%s0 + $0x18] sm:$0xf]
  %v90 = vld [vmem:[%s0 + $0x1c] sm:$0xf]
  %v91 = vld [vmem:[%s1] sm:$0xff]
  %v92 = vld [vmem:[%s1 + $0x8] sm:$0xff]
  %v93 = vld [vmem:[%s1 + $0x10] sm:$0xff]
  %v94 = vld [vmem:[%s1 + $0x18] sm:$0xff]
  %v95 = vld [vmem:[%s1 + $0x20] sm:$0xff]
  %v96 = vld [vmem:[%s1 + $0x28] sm:$0xff]
  %v97 = vld [vmem:[%s1 + $0x30] sm:$0xff]
  %v98 = vld [vmem:[%s1 + $0x38] sm:$0xff]
  %v99 = vld [vmem:[%s1 + $0x40] sm:$0xff]
  %v100 = vld [vmem:[%s1 + $0x48] sm:$0xff]
  %v101 = vld [vmem:[%s1 + $0x50] sm:$0xff]
  %v102 = vld [vmem:[%s1 + $0x58] sm:$0xff]
  %v103 = vld [vmem:[%s1 + $0x60] sm:$0xff]
  %v104 = vld [vmem:[%s1 + $0x68] sm:$0xff]
  %v105 = vld [vmem:[%s1 + $0x70] sm:$0xff]
  %v106 = vld [vmem:[%s1 + $0x78] sm:$0xff]
  %v107 = vld [vmem:[%s1 + $0x80] sm:$0xff]
  %v108 = vld [vmem:[%s1 + $0x88] sm:$0xff]
  %v109 = vld [vmem:[%s1 + $0x90] sm:$0xff]
  %v110 = vld [vmem:[%s1 + $0x98] sm:$0xff]
  %v111 = vld [vmem:[%s1 + $0xa0] sm:$0xff]
  %v112 = vld [vmem:[%s1 + $0xa8] sm:$0xff]
  %v113 = vld [vmem:[%s1 + $0xb0] sm:$0xff]
  %v114 = vld [vmem:[%s1 + $0xb8] sm:$0xff]
  %v115 = vld [vmem:[%s1 + $0xc0] sm:$0xff]
  %v116 = vld [vmem:[%s1 + $0xc8] sm:$0xff]
  %v117 = vld [vmem:[%s1 + $0xd0] sm:$0xff]
  %v118 = vld [vmem:[%s1 + $0xd8] sm:$0xff]
  %v119 = vld [vmem:[%s1 + $0xe0] sm:$0xff]
  %v120 = vld [vmem:[%s1 + $0xe8] sm:$0xff]
  %v121 = vld [vmem:[%s1 + $0xf0] sm:$0xff]
  %v122 = vld [vmem:[%s1 + $0xf8] sm:$0xff]
  %v131 = vunpack.c.l.b16 %v83
  %v132 = vunpack.c.l.b16 %v84
  %v133 = vunpack.c.l.b16 %v85
  %v134 = vunpack.c.l.b16 %v86
  %v135 = vunpack.c.l.b16 %v87
  %v136 = vunpack.c.l.b16 %v88
  %v137 = vunpack.c.l.b16 %v89
  %v138 = vunpack.c.l.b16 %v90
  %v139 = vpack.c.b16 %v132, %v131
  %v140 = vpack.c.b16 %v134, %v133
  %v141 = vpack.c.b16 %v136, %v135
  %v142 = vpack.c.b16 %v138, %v137
  %v179 = vunpack.c.l.b16 %v91
  %v180 = vunpack.c.h.b16 %v91
  %v181 = vunpack.c.l.b16 %v92
  %v182 = vunpack.c.h.b16 %v92
  %v183 = vunpack.c.l.b16 %v93
  %v184 = vunpack.c.h.b16 %v93
  %v185 = vunpack.c.l.b16 %v94
  %v186 = vunpack.c.h.b16 %v94
  %v187 = vunpack.c.l.b16 %v95
  %v188 = vunpack.c.h.b16 %v95
  %v189 = vunpack.c.l.b16 %v96
  %v190 = vunpack.c.h.b16 %v96
  %v191 = vunpack.c.l.b16 %v97
  %v192 = vunpack.c.h.b16 %v97
  %v193 = vunpack.c.l.b16 %v98
  %v194 = vunpack.c.h.b16 %v98
  %v195 = vunpack.c.l.b16 %v99
  %v196 = vunpack.c.h.b16 %v99
  %v197 = vunpack.c.l.b16 %v100
  %v198 = vunpack.c.h.b16 %v100
  %v199 = vunpack.c.l.b16 %v101
  %v200 = vunpack.c.h.b16 %v101
  %v201 = vunpack.c.l.b16 %v102
  %v202 = vunpack.c.h.b16 %v102
  %v203 = vunpack.c.l.b16 %v103
  %v204 = vunpack.c.h.b16 %v103
  %v205 = vunpack.c.l.b16 %v104
  %v206 = vunpack.c.h.b16 %v104
  %v207 = vunpack.c.l.b16 %v105
  %v208 = vunpack.c.h.b16 %v105
  %v209 = vunpack.c.l.b16 %v106
  %v210 = vunpack.c.h.b16 %v106
  %v211 = vunpack.c.l.b16 %v107
  %v212 = vunpack.c.h.b16 %v107
  %v213 = vunpack.c.l.b16 %v108
  %v214 = vunpack.c.h.b16 %v108
  %v215 = vunpack.c.l.b16 %v109
  %v216 = vunpack.c.h.b16 %v109
  %v217 = vunpack.c.l.b16 %v110
  %v218 = vunpack.c.h.b16 %v110
  %v219 = vunpack.c.l.b16 %v111
  %v220 = vunpack.c.h.b16 %v111
  %v221 = vunpack.c.l.b16 %v112
  %v222 = vunpack.c.h.b16 %v112
  %v223 = vunpack.c.l.b16 %v113
  %v224 = vunpack.c.h.b16 %v113
  %v225 = vunpack.c.l.b16 %v114
  %v226 = vunpack.c.h.b16 %v114
  %v227 = vunpack.c.l.b16 %v115
  %v228 = vunpack.c.h.b16 %v115
  %v229 = vunpack.c.l.b16 %v116
  %v230 = vunpack.c.h.b16 %v116
  %v231 = vunpack.c.l.b16 %v117
  %v232 = vunpack.c.h.b16 %v117
  %v233 = vunpack.c.l.b16 %v118
  %v234 = vunpack.c.h.b16 %v118
  %v235 = vunpack.c.l.b16 %v119
  %v236 = vunpack.c.h.b16 %v119
  %v237 = vunpack.c.l.b16 %v120
  %v238 = vunpack.c.h.b16 %v120
  %v239 = vunpack.c.l.b16 %v121
  %v240 = vunpack.c.h.b16 %v121
  %v241 = vunpack.c.l.b16 %v122
  %v242 = vunpack.c.h.b16 %v122
  %v243 = vpack.c.b16 %v183, %v179
  %v244 = vpack.c.b16 %v184, %v180
  %v245 = vpack.c.b16 %v185, %v181
  %v246 = vpack.c.b16 %v186, %v182
  %v247 = vpack.c.b16 %v191, %v187
  %v248 = vpack.c.b16 %v192, %v188
  %v249 = vpack.c.b16 %v193, %v189
  %v250 = vpack.c.b16 %v194, %v190
  %v251 = vpack.c.b16 %v199, %v195
  %v252 = vpack.c.b16 %v200, %v196
  %v253 = vpack.c.b16 %v201, %v197
  %v254 = vpack.c.b16 %v202, %v198
  %v255 = vpack.c.b16 %v207, %v203
  %v256 = vpack.c.b16 %v208, %v204
  %v257 = vpack.c.b16 %v209, %v205
  %v258 = vpack.c.b16 %v210, %v206
  %v259 = vpack.c.b16 %v215, %v211
  %v260 = vpack.c.b16 %v216, %v212
  %v261 = vpack.c.b16 %v217, %v213
  %v262 = vpack.c.b16 %v218, %v214
  %v263 = vpack.c.b16 %v223, %v219
  %v264 = vpack.c.b16 %v224, %v220
  %v265 = vpack.c.b16 %v225, %v221
  %v266 = vpack.c.b16 %v226, %v222
  %v267 = vpack.c.b16 %v231, %v227
  %v268 = vpack.c.b16 %v232, %v228
  %v269 = vpack.c.b16 %v233, %v229
  %v270 = vpack.c.b16 %v234, %v230
  %v271 = vpack.c.b16 %v239, %v235
  %v272 = vpack.c.b16 %v240, %v236
  %v273 = vpack.c.b16 %v241, %v237
  %v274 = vpack.c.b16 %v242, %v238
  %307 = vmatprep.subr.bf16.mxu0 %v272
  %308 = vmatpush1.bf16.msra.mxu0 %v271
  %309 = vmatprep.subr.bf16.mxu0 %v268
  %310 = vmatpush1.bf16.msra.mxu0 %v267
  %311 = vmatprep.subr.bf16.mxu0 %v264
  %312 = vmatpush1.bf16.msra.mxu0 %v263
  %313 = vmatprep.subr.bf16.mxu0 %v260
  %314 = vmatpush1.bf16.msra.mxu0 %v259
  %315 = vmatprep.subr.bf16.mxu0 %v256
  %316 = vmatpush1.bf16.msra.mxu0 %v255
  %317 = vmatprep.subr.bf16.mxu0 %v252
  %318 = vmatpush1.bf16.msra.mxu0 %v251
  %319 = vmatprep.subr.bf16.mxu0 %v248
  %320 = vmatpush1.bf16.msra.mxu0 %v247
  %321 = vmatprep.subr.bf16.mxu0 %v244
  %322 = vmatpush1.bf16.msra.mxu0 %v243
  %323 = vmatprep.subr.bf16.mxu0 0
  %324 = vmatpush2.bf16.msra.mxu0 0
  %325 = vmatprep.subr.bf16.mxu0 0
  %326 = vmatpush2.bf16.msra.mxu0 0
  %327 = vmatprep.subr.bf16.mxu0 0
  %328 = vmatpush2.bf16.msra.mxu0 0
  %329 = vmatprep.subr.bf16.mxu0 0
  %330 = vmatpush2.bf16.msra.mxu0 0
  %331 = vmatprep.subr.bf16.mxu0 0
  %332 = vmatpush2.bf16.msra.mxu0 0
  %333 = vmatprep.subr.bf16.mxu0 0
  %334 = vmatpush2.bf16.msra.mxu0 0
  %335 = vmatprep.subr.bf16.mxu0 0
  %336 = vmatpush2.bf16.msra.mxu0 0
  %337 = vmatprep.subr.bf16.mxu0 0
  %338 = vmatpush2.bf16.msra.mxu0 0
  %339 = vmatprep.mubr.bf16.mxu0 0
  %340 = vmatmul.mubr.bf16.gmra.mxu0 %v139
  %v341 = vpop.f32.mrf.mxu0
  %v342 = vadd.f32 0.0, %v341
  %v343 = vpop.f32.mrf.mxu0
  %v344 = vadd.f32 0.0, %v343
  %v345 = vpop.f32.mrf.mxu0
  %v346 = vadd.f32 0.0, %v345
  %v347 = vpop.f32.mrf.mxu0
  %v348 = vadd.f32 0.0, %v347
  %349 = vmatprep.mubr.bf16.mxu0 0
  %350 = vmatmul.mubr.bf16.gmra.mxu0 %v140
  %v351 = vpop.f32.mrf.mxu0
  %v352 = vadd.f32 0.0, %v351
  %v353 = vpop.f32.mrf.mxu0
  %v354 = vadd.f32 0.0, %v353
  %v355 = vpop.f32.mrf.mxu0
  %v356 = vadd.f32 0.0, %v355
  %v357 = vpop.f32.mrf.mxu0
  %v358 = vadd.f32 0.0, %v357
  %359 = vmatprep.mubr.bf16.mxu0 0
  %360 = vmatmul.mubr.bf16.gmra.mxu0 %v141
  %v361 = vpop.f32.mrf.mxu0
  %v362 = vadd.f32 0.0, %v361
  %v363 = vpop.f32.mrf.mxu0
  %v364 = vadd.f32 0.0, %v363
  %v365 = vpop.f32.mrf.mxu0
  %v366 = vadd.f32 0.0, %v365
  %v367 = vpop.f32.mrf.mxu0
  %v368 = vadd.f32 0.0, %v367
  %369 = vmatprep.mubr.bf16.mxu0 0
  %370 = vmatmul.mubr.bf16.gmra.mxu0 %v142
  %v371 = vpop.f32.mrf.mxu0
  %v372 = vadd.f32 0.0, %v371
  %v373 = vpop.f32.mrf.mxu0
  %v374 = vadd.f32 0.0, %v373
  %v375 = vpop.f32.mrf.mxu0
  %v376 = vadd.f32 0.0, %v375
  %v377 = vpop.f32.mrf.mxu0
  %v378 = vadd.f32 0.0, %v377
  %379 = vdwg.mxu0
  %380 = vmatprep.subr.bf16.mxu0 %v274
  %381 = vmatpush1.bf16.msra.mxu0 %v273
  %382 = vmatprep.subr.bf16.mxu0 %v270
  %383 = vmatpush1.bf16.msra.mxu0 %v269
  %384 = vmatprep.subr.bf16.mxu0 %v266
  %385 = vmatpush1.bf16.msra.mxu0 %v265
  %386 = vmatprep.subr.bf16.mxu0 %v262
  %387 = vmatpush1.bf16.msra.mxu0 %v261
  %388 = vmatprep.subr.bf16.mxu0 %v258
  %389 = vmatpush1.bf16.msra.mxu0 %v257
  %390 = vmatprep.subr.bf16.mxu0 %v254
  %391 = vmatpush1.bf16.msra.mxu0 %v253
  %392 = vmatprep.subr.bf16.mxu0 %v250
  %393 = vmatpush1.bf16.msra.mxu0 %v249
  %394 = vmatprep.subr.bf16.mxu0 %v246
  %395 = vmatpush1.bf16.msra.mxu0 %v245
  %396 = vmatprep.subr.bf16.mxu0 0
  %397 = vmatpush2.bf16.msra.mxu0 0
  %398 = vmatprep.subr.bf16.mxu0 0
  %399 = vmatpush2.bf16.msra.mxu0 0
  %400 = vmatprep.subr.bf16.mxu0 0
  %401 = vmatpush2.bf16.msra.mxu0 0
  %402 = vmatprep.subr.bf16.mxu0 0
  %403 = vmatpush2.bf16.msra.mxu0 0
  %404 = vmatprep.subr.bf16.mxu0 0
  %405 = vmatpush2.bf16.msra.mxu0 0
  %406 = vmatprep.subr.bf16.mxu0 0
  %407 = vmatpush2.bf16.msra.mxu0 0
  %408 = vmatprep.subr.bf16.mxu0 0
  %409 = vmatpush2.bf16.msra.mxu0 0
  %410 = vmatprep.subr.bf16.mxu0 0
  %411 = vmatpush2.bf16.msra.mxu0 0
  %412 = vmatprep.mubr.bf16.mxu0 0
  %413 = vmatmul.mubr.bf16.gmra.mxu0 %v139
  %v414 = vpop.f32.mrf.mxu0
  %v415 = vadd.f32 0.0, %v414
  %v416 = vpop.f32.mrf.mxu0
  %v417 = vadd.f32 0.0, %v416
  %v418 = vpop.f32.mrf.mxu0
  %v419 = vadd.f32 0.0, %v418
  %v420 = vpop.f32.mrf.mxu0
  %v421 = vadd.f32 0.0, %v420
  %422 = vmatprep.mubr.bf16.mxu0 0
  %423 = vmatmul.mubr.bf16.gmra.mxu0 %v140
  %v424 = vpop.f32.mrf.mxu0
  %v425 = vadd.f32 0.0, %v424
  %v426 = vpop.f32.mrf.mxu0
  %v427 = vadd.f32 0.0, %v426
  %v428 = vpop.f32.mrf.mxu0
  %v429 = vadd.f32 0.0, %v428
  %v430 = vpop.f32.mrf.mxu0
  %v431 = vadd.f32 0.0, %v430
  %432 = vmatprep.mubr.bf16.mxu0 0
  %433 = vmatmul.mubr.bf16.gmra.mxu0 %v141
  %v434 = vpop.f32.mrf.mxu0
  %v435 = vadd.f32 0.0, %v434
  %v436 = vpop.f32.mrf.mxu0
  %v437 = vadd.f32 0.0, %v436
  %v438 = vpop.f32.mrf.mxu0
  %v439 = vadd.f32 0.0, %v438
  %v440 = vpop.f32.mrf.mxu0
  %v441 = vadd.f32 0.0, %v440
  %442 = vmatprep.mubr.bf16.mxu0 0
  %443 = vmatmul.mubr.bf16.gmra.mxu0 %v142
  %v444 = vpop.f32.mrf.mxu0
  %v445 = vadd.f32 0.0, %v444
  %v446 = vpop.f32.mrf.mxu0
  %v447 = vadd.f32 0.0, %v446
  %v448 = vpop.f32.mrf.mxu0
  %v449 = vadd.f32 0.0, %v448
  %v450 = vpop.f32.mrf.mxu0
  %v451 = vadd.f32 0.0, %v450
  %452 = vdwg.mxu0
  %v453 = vadd.f32 %v51, %v342
  %v454 = vadd.f32 %v52, %v344
  %v455 = vadd.f32 %v53, %v415
  %v456 = vadd.f32 %v54, %v417
  %v457 = vadd.f32 %v55, %v346
  %v458 = vadd.f32 %v56, %v348
  %v459 = vadd.f32 %v57, %v419
  %v460 = vadd.f32 %v58, %v421
  %v461 = vadd.f32 %v59, %v352
  %v462 = vadd.f32 %v60, %v354
  %v463 = vadd.f32 %v61, %v425
  %v464 = vadd.f32 %v62, %v427
  %v465 = vadd.f32 %v63, %v356
  %v466 = vadd.f32 %v64, %v358
  %v467 = vadd.f32 %v65, %v429
  %v468 = vadd.f32 %v66, %v431
  %v469 = vadd.f32 %v67, %v362
  %v470 = vadd.f32 %v68, %v364
  %v471 = vadd.f32 %v69, %v435
  %v472 = vadd.f32 %v70, %v437
  %v473 = vadd.f32 %v71, %v366
  %v474 = vadd.f32 %v72, %v368
  %v475 = vadd.f32 %v73, %v439
  %v476 = vadd.f32 %v74, %v441
  %v477 = vadd.f32 %v75, %v372
  %v478 = vadd.f32 %v76, %v374
  %v479 = vadd.f32 %v77, %v445
  %v480 = vadd.f32 %v78, %v447
  %v481 = vadd.f32 %v79, %v376
  %v482 = vadd.f32 %v80, %v378
  %v483 = vadd.f32 %v81, %v449
  %v484 = vadd.f32 %v82, %v451
  %485 = vst [vmem:[#allocation2] sm:$0xff] %v453
  %486 = vst [vmem:[#allocation2 + $0x8] sm:$0xff] %v454
  %487 = vst [vmem:[#allocation2 + $0x10] sm:$0xff] %v455
  %488 = vst [vmem:[#allocation2 + $0x18] sm:$0xff] %v456
  %489 = vst [vmem:[#allocation2 + $0x20] sm:$0xff] %v457
  %490 = vst [vmem:[#allocation2 + $0x28] sm:$0xff] %v458
  %491 = vst [vmem:[#allocation2 + $0x30] sm:$0xff] %v459
  %492 = vst [vmem:[#allocation2 + $0x38] sm:$0xff] %v460
  %493 = vst [vmem:[#allocation2 + $0x40] sm:$0xff] %v461
  %494 = vst [vmem:[#allocation2 + $0x48] sm:$0xff] %v462
  %495 = vst [vmem:[#allocation2 + $0x50] sm:$0xff] %v463
  %496 = vst [vmem:[#allocation2 + $0x58] sm:$0xff] %v464
  %497 = vst [vmem:[#allocation2 + $0x60] sm:$0xff] %v465
  %498 = vst [vmem:[#allocation2 + $0x68] sm:$0xff] %v466
  %499 = vst [vmem:[#allocation2 + $0x70] sm:$0xff] %v467
  %500 = vst [vmem:[#allocation2 + $0x78] sm:$0xff] %v468
  %501 = vst [vmem:[#allocation2 + $0x80] sm:$0xff] %v469
  %502 = vst [vmem:[#allocation2 + $0x88] sm:$0xff] %v470
  %503 = vst [vmem:[#allocation2 + $0x90] sm:$0xff] %v471
  %504 = vst [vmem:[#allocation2 + $0x98] sm:$0xff] %v472
  %505 = vst [vmem:[#allocation2 + $0xa0] sm:$0xff] %v473
  %506 = vst [vmem:[#allocation2 + $0xa8] sm:$0xff] %v474
  %507 = vst [vmem:[#allocation2 + $0xb0] sm:$0xff] %v475
  %508 = vst [vmem:[#allocation2 + $0xb8] sm:$0xff] %v476
  %509 = vst [vmem:[#allocation2 + $0xc0] sm:$0xff] %v477
  %510 = vst [vmem:[#allocation2 + $0xc8] sm:$0xff] %v478
  %511 = vst [vmem:[#allocation2 + $0xd0] sm:$0xff] %v479
  %512 = vst [vmem:[#allocation2 + $0xd8] sm:$0xff] %v480
  %513 = vst [vmem:[#allocation2 + $0xe0] sm:$0xff] %v481
  %514 = vst [vmem:[#allocation2 + $0xe8] sm:$0xff] %v482
  %515 = vst [vmem:[#allocation2 + $0xf0] sm:$0xff] %v483
  %516 = vst [vmem:[#allocation2 + $0xf8] sm:$0xff] %v484
  // Predicated region
  $region18: #{decoder_rnn_forward.3} parent=0 // pred_check
    %p517 = pneg %p15
  $region19: #{decoder_rnn_forward.3} parent=0 // pred_check_branch
    %519 = sbr.rel (%p517) target = $region21
  $region20: #{decoder_rnn_forward.3} parent=0 // pred_region
    %v520 = vld [vmem:[#allocation2] sm:$0xff]
    %v521 = vld [vmem:[#allocation2 + $0x8] sm:$0xff]
    %v522 = vld [vmem:[#allocation2 + $0x10] sm:$0xff]
    %v523 = vld [vmem:[#allocation2 + $0x18] sm:$0xff]
    %v524 = vld [vmem:[#allocation2 + $0x20] sm:$0xff]
    %v525 = vld [vmem:[#allocation2 + $0x28] sm:$0xff]
    %v526 = vld [vmem:[#allocation2 + $0x30] sm:$0xff]
    %v527 = vld [vmem:[#allocation2 + $0x38] sm:$0xff]
    %v528 = vld [vmem:[#allocation2 + $0x40] sm:$0xff]
    %v529 = vld [vmem:[#allocation2 + $0x48] sm:$0xff]
    %v530 = vld [vmem:[#allocation2 + $0x50] sm:$0xff]
    %v531 = vld [vmem:[#allocation2 + $0x58] sm:$0xff]
    %v532 = vld [vmem:[#allocation2 + $0x60] sm:$0xff]
    %v533 = vld [vmem:[#allocation2 + $0x68] sm:$0xff]
    %v534 = vld [vmem:[#allocation2 + $0x70] sm:$0xff]
    %v535 = vld [vmem:[#allocation2 + $0x78] sm:$0xff]
    %v536 = vld [vmem:[#allocation2 + $0x80] sm:$0xff]
    %v537 = vld [vmem:[#allocation2 + $0x88] sm:$0xff]
    %v538 = vld [vmem:[#allocation2 + $0x90] sm:$0xff]
    %v539 = vld [vmem:[#allocation2 + $0x98] sm:$0xff]
    %v540 = vld [vmem:[#allocation2 + $0xa0] sm:$0xff]
    %v541 = vld [vmem:[#allocation2 + $0xa8] sm:$0xff]
    %v542 = vld [vmem:[#allocation2 + $0xb0] sm:$0xff]
    %v543 = vld [vmem:[#allocation2 + $0xb8] sm:$0xff]
    %v544 = vld [vmem:[#allocation2 + $0xc0] sm:$0xff]
    %v545 = vld [vmem:[#allocation2 + $0xc8] sm:$0xff]
    %v546 = vld [vmem:[#allocation2 + $0xd0] sm:$0xff]
    %v547 = vld [vmem:[#allocation2 + $0xd8] sm:$0xff]
    %v548 = vld [vmem:[#allocation2 + $0xe0] sm:$0xff]
    %v549 = vld [vmem:[#allocation2 + $0xe8] sm:$0xff]
    %v550 = vld [vmem:[#allocation2 + $0xf0] sm:$0xff]
    %v551 = vld [vmem:[#allocation2 + $0xf8] sm:$0xff]
    %v552 = vld [vmem:[%s2] sm:$0xf]
    %v554 = vlaneseq
    %v555 = vshrl.u32 %v554, 7
    %v556 = vsub.s32 0, %v555
    %v557 = vrot.slane %v552, %v556
    %v558 = vlaneseq
    %v559 = vshrl.u32 %v558, 7
    %v560 = vsub.s32 1, %v559
    %v561 = vrot.slane %v552, %v560
    %v562 = vlaneseq
    %v563 = vshrl.u32 %v562, 7
    %v564 = vsub.s32 2, %v563
    %v565 = vrot.slane %v552, %v564
    %v566 = vlaneseq
    %v567 = vshrl.u32 %v566, 7
    %v568 = vsub.s32 3, %v567
    %v569 = vrot.slane %v552, %v568
    %v574 = vadd.f32 %v520, %v557
    %v575 = vadd.f32 %v521, %v561
    %v576 = vadd.f32 %v522, %v565
    %v577 = vadd.f32 %v523, %v569
    %v578 = vadd.f32 %v524, %v557
    %v579 = vadd.f32 %v525, %v561
    %v580 = vadd.f32 %v526, %v565
    %v581 = vadd.f32 %v527, %v569
    %v582 = vadd.f32 %v528, %v557
    %v583 = vadd.f32 %v529, %v561
    %v584 = vadd.f32 %v530, %v565
    %v585 = vadd.f32 %v531, %v569
    %v586 = vadd.f32 %v532, %v557
    %v587 = vadd.f32 %v533, %v561
    %v588 = vadd.f32 %v534, %v565
    %v589 = vadd.f32 %v535, %v569
    %v590 = vadd.f32 %v536, %v557
    %v591 = vadd.f32 %v537, %v561
    %v592 = vadd.f32 %v538, %v565
    %v593 = vadd.f32 %v539, %v569
    %v594 = vadd.f32 %v540, %v557
    %v595 = vadd.f32 %v541, %v561
    %v596 = vadd.f32 %v542, %v565
    %v597 = vadd.f32 %v543, %v569
    %v598 = vadd.f32 %v544, %v557
    %v599 = vadd.f32 %v545, %v561
    %v600 = vadd.f32 %v546, %v565
    %v601 = vadd.f32 %v547, %v569
    %v602 = vadd.f32 %v548, %v557
    %v603 = vadd.f32 %v549, %v561
    %v604 = vadd.f32 %v550, %v565
    %v605 = vadd.f32 %v551, %v569
    %606 = vst [vmem:[%s3] sm:$0xff] %v574
    %607 = vst [vmem:[%s3 + $0x8] sm:$0xff] %v575
    %608 = vst [vmem:[%s3 + $0x10] sm:$0xff] %v576
    %609 = vst [vmem:[%s3 + $0x18] sm:$0xff] %v577
    %610 = vst [vmem:[%s3 + $0x20] sm:$0xff] %v578
    %611 = vst [vmem:[%s3 + $0x28] sm:$0xff] %v579
    %612 = vst [vmem:[%s3 + $0x30] sm:$0xff] %v580
    %613 = vst [vmem:[%s3 + $0x38] sm:$0xff] %v581
    %614 = vst [vmem:[%s3 + $0x40] sm:$0xff] %v582
    %615 = vst [vmem:[%s3 + $0x48] sm:$0xff] %v583
    %616 = vst [vmem:[%s3 + $0x50] sm:$0xff] %v584
    %617 = vst [vmem:[%s3 + $0x58] sm:$0xff] %v585
    %618 = vst [vmem:[%s3 + $0x60] sm:$0xff] %v586
    %619 = vst [vmem:[%s3 + $0x68] sm:$0xff] %v587
    %620 = vst [vmem:[%s3 + $0x70] sm:$0xff] %v588
    %621 = vst [vmem:[%s3 + $0x78] sm:$0xff] %v589
    %622 = vst [vmem:[%s3 + $0x80] sm:$0xff] %v590
    %623 = vst [vmem:[%s3 + $0x88] sm:$0xff] %v591
    %624 = vst [vmem:[%s3 + $0x90] sm:$0xff] %v592
    %625 = vst [vmem:[%s3 + $0x98] sm:$0xff] %v593
    %626 = vst [vmem:[%s3 + $0xa0] sm:$0xff] %v594
    %627 = vst [vmem:[%s3 + $0xa8] sm:$0xff] %v595
    %628 = vst [vmem:[%s3 + $0xb0] sm:$0xff] %v596
    %629 = vst [vmem:[%s3 + $0xb8] sm:$0xff] %v597
    %630 = vst [vmem:[%s3 + $0xc0] sm:$0xff] %v598
    %631 = vst [vmem:[%s3 + $0xc8] sm:$0xff] %v599
    %632 = vst [vmem:[%s3 + $0xd0] sm:$0xff] %v600
    %633 = vst [vmem:[%s3 + $0xd8] sm:$0xff] %v601
    %634 = vst [vmem:[%s3 + $0xe0] sm:$0xff] %v602
    %635 = vst [vmem:[%s3 + $0xe8] sm:$0xff] %v603
    %636 = vst [vmem:[%s3 + $0xf0] sm:$0xff] %v604
    %637 = vst [vmem:[%s3 + $0xf8] sm:$0xff] %v605
  $region21: #{decoder_rnn_forward.3} parent=0 // pred_fallthru
    _
  // Predicated region
  $region22: #{decoder_rnn_forward.3} parent=0 // pred_check
    _
  $region23: #{decoder_rnn_forward.3} parent=0 // pred_check_branch
    %639 = sbr.rel (0) target = $region25
  $region24: #{decoder_rnn_forward.3} parent=0 // pred_region
    _
  $region25: #{decoder_rnn_forward.3} parent=0 // pred_fallthru
    _
  // Predicated region
  $region26: #{decoder_rnn_forward.3} parent=0 // pred_check
    _
  $region27: #{decoder_rnn_forward.3} parent=0 // pred_check_branch
    %641 = sbr.rel (0) target = $region29
  $region28: #{decoder_rnn_forward.3} parent=0 // pred_region
    _
  $region29: #{decoder_rnn_forward.3} parent=0 // pred_fallthru
    _

// kernel: decoder_rnn_forward.4
$region0: #{decoder_rnn_forward.4}
  #allocation0 [shape = 'u32[]', space=smem, size = 0x4, offset = 0x4, fixed_abs, tag = 'smem constant byte address 0x4 - core index']
  #allocation1 [shape = 'u32[144,128]{1,0:T(1,128)}', space=vmem, size = 0x12000, scoped, tag = 'internal scratch']
  #allocation2 [shape = 'f32[8,128]{1,0:T(8,128)}', space=vmem, size = 0x1000, scoped, tag = 'scratch operand']
  #allocation3 [shape = 'f32[8,128]{1,0:T(8,128)}', space=vmem, size = 0x1000, scoped, tag = 'scratch operand']
  %s0 = inlined_call_operand.vmem [shape: f32[8,8,512], index: 0, kind: input, shape index: {}]
  %s1 = inlined_call_operand.vmem [shape: bf16[128,512], index: 1, kind: input, shape index: {}]
  %s2 = inlined_call_operand.vmem [shape: bf16[8,8,128], index: 2, kind: output, shape index: {}]
  %s3 = sld [smem:[#allocation0]]
  $region22: #{decoder_rnn_forward.4} parent=0
    _
  %s5 = ssub.s32 1, %s3
  %s6 = scalar_select 0, %s5, %s3
  // Predicated region
  $region2: #{decoder_rnn_forward.4} parent=0 // pred_check
    _
  $region3: #{decoder_rnn_forward.4} parent=0 // pred_check_branch
    %8 = sbr.rel (0) target = $region5
  $region4: #{decoder_rnn_forward.4} parent=0 // pred_region
    _
  $region5: #{decoder_rnn_forward.4} parent=0 // pred_fallthru
    _
  // Predicated region
  $region6: #{decoder_rnn_forward.4} parent=0 // pred_check
    _
  $region7: #{decoder_rnn_forward.4} parent=0 // pred_check_branch
    %10 = sbr.rel (0) target = $region9
  $region8: #{decoder_rnn_forward.4} parent=0 // pred_region
    _
  $region9: #{decoder_rnn_forward.4} parent=0 // pred_fallthru
    _
  %p12 = scmp.eq.s32.totalorder 0, 0
  // Predicated region
  $region10: #{decoder_rnn_forward.4} parent=0 // pred_check
    %p13 = pneg %p12
  $region11: #{decoder_rnn_forward.4} parent=0 // pred_check_branch
    %15 = sbr.rel (%p13) target = $region13
  $region12: #{decoder_rnn_forward.4} parent=0 // pred_region
    %16 = vst [vmem:[#allocation2] sm:$0xff] 0.0
    %17 = vst [vmem:[#allocation3] sm:$0xff] 0.0
  $region13: #{decoder_rnn_forward.4} parent=0 // pred_fallthru
    _
  %v18 = vld [vmem:[#allocation2] sm:$0xff]
  %v19 = vld [vmem:[#allocation3] sm:$0xff]
  %v20 = vld [vmem:[%s0] sm:$0xff]
  %v21 = vld [vmem:[%s0 + $0x8] sm:$0xff]
  %v22 = vld [vmem:[%s0 + $0x10] sm:$0xff]
  %v23 = vld [vmem:[%s0 + $0x18] sm:$0xff]
  %v24 = vpack.c.bf16 %v18, %v18
  %v25 = vld [vmem:[%s1] sm:$0xff]
  %v26 = vld [vmem:[%s1 + $0x8] sm:$0xff]
  %v27 = vld [vmem:[%s1 + $0x10] sm:$0xff]
  %v28 = vld [vmem:[%s1 + $0x18] sm:$0xff]
  %v29 = vld [vmem:[%s1 + $0x20] sm:$0xff]
  %v30 = vld [vmem:[%s1 + $0x28] sm:$0xff]
  %v31 = vld [vmem:[%s1 + $0x30] sm:$0xff]
  %v32 = vld [vmem:[%s1 + $0x38] sm:$0xff]
  %v33 = vld [vmem:[%s1 + $0x40] sm:$0xff]
  %v34 = vld [vmem:[%s1 + $0x48] sm:$0xff]
  %v35 = vld [vmem:[%s1 + $0x50] sm:$0xff]
  %v36 = vld [vmem:[%s1 + $0x58] sm:$0xff]
  %v37 = vld [vmem:[%s1 + $0x60] sm:$0xff]
  %v38 = vld [vmem:[%s1 + $0x68] sm:$0xff]
  %v39 = vld [vmem:[%s1 + $0x70] sm:$0xff]
  %v40 = vld [vmem:[%s1 + $0x78] sm:$0xff]
  %v41 = vld [vmem:[%s1 + $0x80] sm:$0xff]
  %v42 = vld [vmem:[%s1 + $0x88] sm:$0xff]
  %v43 = vld [vmem:[%s1 + $0x90] sm:$0xff]
  %v44 = vld [vmem:[%s1 + $0x98] sm:$0xff]
  %v45 = vld [vmem:[%s1 + $0xa0] sm:$0xff]
  %v46 = vld [vmem:[%s1 + $0xa8] sm:$0xff]
  %v47 = vld [vmem:[%s1 + $0xb0] sm:$0xff]
  %v48 = vld [vmem:[%s1 + $0xb8] sm:$0xff]
  %v49 = vld [vmem:[%s1 + $0xc0] sm:$0xff]
  %v50 = vld [vmem:[%s1 + $0xc8] sm:$0xff]
  %v51 = vld [vmem:[%s1 + $0xd0] sm:$0xff]
  %v52 = vld [vmem:[%s1 + $0xd8] sm:$0xff]
  %v53 = vld [vmem:[%s1 + $0xe0] sm:$0xff]
  %v54 = vld [vmem:[%s1 + $0xe8] sm:$0xff]
  %v55 = vld [vmem:[%s1 + $0xf0] sm:$0xff]
  %v56 = vld [vmem:[%s1 + $0xf8] sm:$0xff]
  %v89 = vunpack.c.l.b16 %v25
  %v90 = vunpack.c.h.b16 %v25
  %v91 = vunpack.c.l.b16 %v26
  %v92 = vunpack.c.h.b16 %v26
  %v93 = vunpack.c.l.b16 %v27
  %v94 = vunpack.c.h.b16 %v27
  %v95 = vunpack.c.l.b16 %v28
  %v96 = vunpack.c.h.b16 %v28
  %v97 = vunpack.c.l.b16 %v29
  %v98 = vunpack.c.h.b16 %v29
  %v99 = vunpack.c.l.b16 %v30
  %v100 = vunpack.c.h.b16 %v30
  %v101 = vunpack.c.l.b16 %v31
  %v102 = vunpack.c.h.b16 %v31
  %v103 = vunpack.c.l.b16 %v32
  %v104 = vunpack.c.h.b16 %v32
  %v105 = vunpack.c.l.b16 %v33
  %v106 = vunpack.c.h.b16 %v33
  %v107 = vunpack.c.l.b16 %v34
  %v108 = vunpack.c.h.b16 %v34
  %v109 = vunpack.c.l.b16 %v35
  %v110 = vunpack.c.h.b16 %v35
  %v111 = vunpack.c.l.b16 %v36
  %v112 = vunpack.c.h.b16 %v36
  %v113 = vunpack.c.l.b16 %v37
  %v114 = vunpack.c.h.b16 %v37
  %v115 = vunpack.c.l.b16 %v38
  %v116 = vunpack.c.h.b16 %v38
  %v117 = vunpack.c.l.b16 %v39
  %v118 = vunpack.c.h.b16 %v39
  %v119 = vunpack.c.l.b16 %v40
  %v120 = vunpack.c.h.b16 %v40
  %v121 = vunpack.c.l.b16 %v41
  %v122 = vunpack.c.h.b16 %v41
  %v123 = vunpack.c.l.b16 %v42
  %v124 = vunpack.c.h.b16 %v42
  %v125 = vunpack.c.l.b16 %v43
  %v126 = vunpack.c.h.b16 %v43
  %v127 = vunpack.c.l.b16 %v44
  %v128 = vunpack.c.h.b16 %v44
  %v129 = vunpack.c.l.b16 %v45
  %v130 = vunpack.c.h.b16 %v45
  %v131 = vunpack.c.l.b16 %v46
  %v132 = vunpack.c.h.b16 %v46
  %v133 = vunpack.c.l.b16 %v47
  %v134 = vunpack.c.h.b16 %v47
  %v135 = vunpack.c.l.b16 %v48
  %v136 = vunpack.c.h.b16 %v48
  %v137 = vunpack.c.l.b16 %v49
  %v138 = vunpack.c.h.b16 %v49
  %v139 = vunpack.c.l.b16 %v50
  %v140 = vunpack.c.h.b16 %v50
  %v141 = vunpack.c.l.b16 %v51
  %v142 = vunpack.c.h.b16 %v51
  %v143 = vunpack.c.l.b16 %v52
  %v144 = vunpack.c.h.b16 %v52
  %v145 = vunpack.c.l.b16 %v53
  %v146 = vunpack.c.h.b16 %v53
  %v147 = vunpack.c.l.b16 %v54
  %v148 = vunpack.c.h.b16 %v54
  %v149 = vunpack.c.l.b16 %v55
  %v150 = vunpack.c.h.b16 %v55
  %v151 = vunpack.c.l.b16 %v56
  %v152 = vunpack.c.h.b16 %v56
  %v153 = vpack.c.b16 %v93, %v89
  %v154 = vpack.c.b16 %v94, %v90
  %v155 = vpack.c.b16 %v95, %v91
  %v156 = vpack.c.b16 %v96, %v92
  %v157 = vpack.c.b16 %v101, %v97
  %v158 = vpack.c.b16 %v102, %v98
  %v159 = vpack.c.b16 %v103, %v99
  %v160 = vpack.c.b16 %v104, %v100
  %v161 = vpack.c.b16 %v109, %v105
  %v162 = vpack.c.b16 %v110, %v106
  %v163 = vpack.c.b16 %v111, %v107
  %v164 = vpack.c.b16 %v112, %v108
  %v165 = vpack.c.b16 %v117, %v113
  %v166 = vpack.c.b16 %v118, %v114
  %v167 = vpack.c.b16 %v119, %v115
  %v168 = vpack.c.b16 %v120, %v116
  %v169 = vpack.c.b16 %v125, %v121
  %v170 = vpack.c.b16 %v126, %v122
  %v171 = vpack.c.b16 %v127, %v123
  %v172 = vpack.c.b16 %v128, %v124
  %v173 = vpack.c.b16 %v133, %v129
  %v174 = vpack.c.b16 %v134, %v130
  %v175 = vpack.c.b16 %v135, %v131
  %v176 = vpack.c.b16 %v136, %v132
  %v177 = vpack.c.b16 %v141, %v137
  %v178 = vpack.c.b16 %v142, %v138
  %v179 = vpack.c.b16 %v143, %v139
  %v180 = vpack.c.b16 %v144, %v140
  %v181 = vpack.c.b16 %v149, %v145
  %v182 = vpack.c.b16 %v150, %v146
  %v183 = vpack.c.b16 %v151, %v147
  %v184 = vpack.c.b16 %v152, %v148
  %217 = vmatprep.subr.bf16.mxu0 %v182
  %218 = vmatpush1.bf16.msra.mxu0 %v181
  %219 = vmatprep.subr.bf16.mxu0 %v178
  %220 = vmatpush1.bf16.msra.mxu0 %v177
  %221 = vmatprep.subr.bf16.mxu0 %v174
  %222 = vmatpush1.bf16.msra.mxu0 %v173
  %223 = vmatprep.subr.bf16.mxu0 %v170
  %224 = vmatpush1.bf16.msra.mxu0 %v169
  %225 = vmatprep.subr.bf16.mxu0 %v166
  %226 = vmatpush1.bf16.msra.mxu0 %v165
  %227 = vmatprep.subr.bf16.mxu0 %v162
  %228 = vmatpush1.bf16.msra.mxu0 %v161
  %229 = vmatprep.subr.bf16.mxu0 %v158
  %230 = vmatpush1.bf16.msra.mxu0 %v157
  %231 = vmatprep.subr.bf16.mxu0 %v154
  %232 = vmatpush1.bf16.msra.mxu0 %v153
  %233 = vmatprep.subr.bf16.mxu0 0
  %234 = vmatpush2.bf16.msra.mxu0 0
  %235 = vmatprep.subr.bf16.mxu0 0
  %236 = vmatpush2.bf16.msra.mxu0 0
  %237 = vmatprep.subr.bf16.mxu0 0
  %238 = vmatpush2.bf16.msra.mxu0 0
  %239 = vmatprep.subr.bf16.mxu0 0
  %240 = vmatpush2.bf16.msra.mxu0 0
  %241 = vmatprep.subr.bf16.mxu0 0
  %242 = vmatpush2.bf16.msra.mxu0 0
  %243 = vmatprep.subr.bf16.mxu0 0
  %244 = vmatpush2.bf16.msra.mxu0 0
  %245 = vmatprep.subr.bf16.mxu0 0
  %246 = vmatpush2.bf16.msra.mxu0 0
  %247 = vmatprep.subr.bf16.mxu0 0
  %248 = vmatpush2.bf16.msra.mxu0 0
  %249 = vmatprep.mubr.bf16.mxu0 0
  %250 = vmatmul.mubr.bf16.gmra.mxu0 %v24
  %v251 = vpop.f32.mrf.mxu0
  %v252 = vadd.f32 0.0, %v251
  %v253 = vpop.f32.mrf.mxu0
  %v254 = vadd.f32 0.0, %v253
  %v255 = vpop.f32.mrf.mxu0
  %v256 = vpop.f32.mrf.mxu0
  %257 = vdwg.mxu0
  %258 = vmatprep.subr.bf16.mxu0 %v184
  %259 = vmatpush1.bf16.msra.mxu0 %v183
  %260 = vmatprep.subr.bf16.mxu0 %v180
  %261 = vmatpush1.bf16.msra.mxu0 %v179
  %262 = vmatprep.subr.bf16.mxu0 %v176
  %263 = vmatpush1.bf16.msra.mxu0 %v175
  %264 = vmatprep.subr.bf16.mxu0 %v172
  %265 = vmatpush1.bf16.msra.mxu0 %v171
  %266 = vmatprep.subr.bf16.mxu0 %v168
  %267 = vmatpush1.bf16.msra.mxu0 %v167
  %268 = vmatprep.subr.bf16.mxu0 %v164
  %269 = vmatpush1.bf16.msra.mxu0 %v163
  %270 = vmatprep.subr.bf16.mxu0 %v160
  %271 = vmatpush1.bf16.msra.mxu0 %v159
  %272 = vmatprep.subr.bf16.mxu0 %v156
  %273 = vmatpush1.bf16.msra.mxu0 %v155
  %274 = vmatprep.subr.bf16.mxu0 0
  %275 = vmatpush2.bf16.msra.mxu0 0
  %276 = vmatprep.subr.bf16.mxu0 0
  %277 = vmatpush2.bf16.msra.mxu0 0
  %278 = vmatprep.subr.bf16.mxu0 0
  %279 = vmatpush2.bf16.msra.mxu0 0
  %280 = vmatprep.subr.bf16.mxu0 0
  %281 = vmatpush2.bf16.msra.mxu0 0
  %282 = vmatprep.subr.bf16.mxu0 0
  %283 = vmatpush2.bf16.msra.mxu0 0
  %284 = vmatprep.subr.bf16.mxu0 0
  %285 = vmatpush2.bf16.msra.mxu0 0
  %286 = vmatprep.subr.bf16.mxu0 0
  %287 = vmatpush2.bf16.msra.mxu0 0
  %288 = vmatprep.subr.bf16.mxu0 0
  %289 = vmatpush2.bf16.msra.mxu0 0
  %290 = vmatprep.mubr.bf16.mxu0 0
  %291 = vmatmul.mubr.bf16.gmra.mxu0 %v24
  %v292 = vpop.f32.mrf.mxu0
  %v293 = vadd.f32 0.0, %v292
  %v294 = vpop.f32.mrf.mxu0
  %v295 = vadd.f32 0.0, %v294
  %v296 = vpop.f32.mrf.mxu0
  %v297 = vpop.f32.mrf.mxu0
  %298 = vdwg.mxu0
  %v299 = vadd.f32 %v20, %v252
  %v300 = vadd.f32 %v21, %v254
  %v301 = vadd.f32 %v22, %v293
  %v302 = vadd.f32 %v23, %v295
  %v303 = vxor.u32 %v299, 2147483648
  %v304 = vmul.f32 %v303, 1.442695
  %v305 = vpow.pop %v304
  %v306 = vadd.f32 %v305, 1.0
  %v307 = vrcp.pop %v306
  %v308 = vmul.f32 1.0, %v307
  %v309 = vxor.u32 %v300, 2147483648
  %v310 = vmul.f32 %v309, 1.442695
  %v311 = vpow.pop %v310
  %v312 = vadd.f32 %v311, 1.0
  %v313 = vrcp.pop %v312
  %v314 = vmul.f32 1.0, %v313
  %v315 = vtanh.pop %v301
  %v316 = vxor.u32 %v302, 2147483648
  %v317 = vmul.f32 %v316, 1.442695
  %v318 = vpow.pop %v317
  %v319 = vadd.f32 %v318, 1.0
  %v320 = vrcp.pop %v319
  %v321 = vmul.f32 1.0, %v320
  %v322 = vmul.f32 %v314, %v19
  %v323 = vmul.f32 %v308, %v315
  %v324 = vadd.f32 %v322, %v323
  %v325 = vtanh.pop %v324
  %v326 = vmul.f32 %v321, %v325
  %v327 = vpack.c.bf16 %v326, %v326
  %328 = vst [vmem:[%s2] sm:$0xf] %v327
  %s329 = scalar_lea.vmem %s0, 32
  %v330 = vld [vmem:[%s329] sm:$0xff]
  %v331 = vld [vmem:[%s329 + $0x8] sm:$0xff]
  %v332 = vld [vmem:[%s329 + $0x10] sm:$0xff]
  %v333 = vld [vmem:[%s329 + $0x18] sm:$0xff]
  %v334 = vld [vmem:[%s1] sm:$0xff]
  %v335 = vld [vmem:[%s1 + $0x8] sm:$0xff]
  %v336 = vld [vmem:[%s1 + $0x10] sm:$0xff]
  %v337 = vld [vmem:[%s1 + $0x18] sm:$0xff]
  %v338 = vld [vmem:[%s1 + $0x20] sm:$0xff]
  %v339 = vld [vmem:[%s1 + $0x28] sm:$0xff]
  %v340 = vld [vmem:[%s1 + $0x30] sm:$0xff]
  %v341 = vld [vmem:[%s1 + $0x38] sm:$0xff]
  %v342 = vld [vmem:[%s1 + $0x40] sm:$0xff]
  %v343 = vld [vmem:[%s1 + $0x48] sm:$0xff]
  %v344 = vld [vmem:[%s1 + $0x50] sm:$0xff]
  %v345 = vld [vmem:[%s1 + $0x58] sm:$0xff]
  %v346 = vld [vmem:[%s1 + $0x60] sm:$0xff]
  %v347 = vld [vmem:[%s1 + $0x68] sm:$0xff]
  %v348 = vld [vmem:[%s1 + $0x70] sm:$0xff]
  %v349 = vld [vmem:[%s1 + $0x78] sm:$0xff]
  %v350 = vld [vmem:[%s1 + $0x80] sm:$0xff]
  %v351 = vld [vmem:[%s1 + $0x88] sm:$0xff]
  %v352 = vld [vmem:[%s1 + $0x90] sm:$0xff]
  %v353 = vld [vmem:[%s1 + $0x98] sm:$0xff]
  %v354 = vld [vmem:[%s1 + $0xa0] sm:$0xff]
  %v355 = vld [vmem:[%s1 + $0xa8] sm:$0xff]
  %v356 = vld [vmem:[%s1 + $0xb0] sm:$0xff]
  %v357 = vld [vmem:[%s1 + $0xb8] sm:$0xff]
  %v358 = vld [vmem:[%s1 + $0xc0] sm:$0xff]
  %v359 = vld [vmem:[%s1 + $0xc8] sm:$0xff]
  %v360 = vld [vmem:[%s1 + $0xd0] sm:$0xff]
  %v361 = vld [vmem:[%s1 + $0xd8] sm:$0xff]
  %v362 = vld [vmem:[%s1 + $0xe0] sm:$0xff]
  %v363 = vld [vmem:[%s1 + $0xe8] sm:$0xff]
  %v364 = vld [vmem:[%s1 + $0xf0] sm:$0xff]
  %v365 = vld [vmem:[%s1 + $0xf8] sm:$0xff]
  %v398 = vunpack.c.l.b16 %v334
  %v399 = vunpack.c.h.b16 %v334
  %v400 = vunpack.c.l.b16 %v335
  %v401 = vunpack.c.h.b16 %v335
  %v402 = vunpack.c.l.b16 %v336
  %v403 = vunpack.c.h.b16 %v336
  %v404 = vunpack.c.l.b16 %v337
  %v405 = vunpack.c.h.b16 %v337
  %v406 = vunpack.c.l.b16 %v338
  %v407 = vunpack.c.h.b16 %v338
  %v408 = vunpack.c.l.b16 %v339
  %v409 = vunpack.c.h.b16 %v339
  %v410 = vunpack.c.l.b16 %v340
  %v411 = vunpack.c.h.b16 %v340
  %v412 = vunpack.c.l.b16 %v341
  %v413 = vunpack.c.h.b16 %v341
  %v414 = vunpack.c.l.b16 %v342
  %v415 = vunpack.c.h.b16 %v342
  %v416 = vunpack.c.l.b16 %v343
  %v417 = vunpack.c.h.b16 %v343
  %v418 = vunpack.c.l.b16 %v344
  %v419 = vunpack.c.h.b16 %v344
  %v420 = vunpack.c.l.b16 %v345
  %v421 = vunpack.c.h.b16 %v345
  %v422 = vunpack.c.l.b16 %v346
  %v423 = vunpack.c.h.b16 %v346
  %v424 = vunpack.c.l.b16 %v347
  %v425 = vunpack.c.h.b16 %v347
  %v426 = vunpack.c.l.b16 %v348
  %v427 = vunpack.c.h.b16 %v348
  %v428 = vunpack.c.l.b16 %v349
  %v429 = vunpack.c.h.b16 %v349
  %v430 = vunpack.c.l.b16 %v350
  %v431 = vunpack.c.h.b16 %v350
  %v432 = vunpack.c.l.b16 %v351
  %v433 = vunpack.c.h.b16 %v351
  %v434 = vunpack.c.l.b16 %v352
  %v435 = vunpack.c.h.b16 %v352
  %v436 = vunpack.c.l.b16 %v353
  %v437 = vunpack.c.h.b16 %v353
  %v438 = vunpack.c.l.b16 %v354
  %v439 = vunpack.c.h.b16 %v354
  %v440 = vunpack.c.l.b16 %v355
  %v441 = vunpack.c.h.b16 %v355
  %v442 = vunpack.c.l.b16 %v356
  %v443 = vunpack.c.h.b16 %v356
  %v444 = vunpack.c.l.b16 %v357
  %v445 = vunpack.c.h.b16 %v357
  %v446 = vunpack.c.l.b16 %v358
  %v447 = vunpack.c.h.b16 %v358
  %v448 = vunpack.c.l.b16 %v359
  %v449 = vunpack.c.h.b16 %v359
  %v450 = vunpack.c.l.b16 %v360
  %v451 = vunpack.c.h.b16 %v360
  %v452 = vunpack.c.l.b16 %v361
  %v453 = vunpack.c.h.b16 %v361
  %v454 = vunpack.c.l.b16 %v362
  %v455 = vunpack.c.h.b16 %v362
  %v456 = vunpack.c.l.b16 %v363
  %v457 = vunpack.c.h.b16 %v363
  %v458 = vunpack.c.l.b16 %v364
  %v459 = vunpack.c.h.b16 %v364
  %v460 = vunpack.c.l.b16 %v365
  %v461 = vunpack.c.h.b16 %v365
  %v462 = vpack.c.b16 %v402, %v398
  %v463 = vpack.c.b16 %v403, %v399
  %v464 = vpack.c.b16 %v404, %v400
  %v465 = vpack.c.b16 %v405, %v401
  %v466 = vpack.c.b16 %v410, %v406
  %v467 = vpack.c.b16 %v411, %v407
  %v468 = vpack.c.b16 %v412, %v408
  %v469 = vpack.c.b16 %v413, %v409
  %v470 = vpack.c.b16 %v418, %v414
  %v471 = vpack.c.b16 %v419, %v415
  %v472 = vpack.c.b16 %v420, %v416
  %v473 = vpack.c.b16 %v421, %v417
  %v474 = vpack.c.b16 %v426, %v422
  %v475 = vpack.c.b16 %v427, %v423
  %v476 = vpack.c.b16 %v428, %v424
  %v477 = vpack.c.b16 %v429, %v425
  %v478 = vpack.c.b16 %v434, %v430
  %v479 = vpack.c.b16 %v435, %v431
  %v480 = vpack.c.b16 %v436, %v432
  %v481 = vpack.c.b16 %v437, %v433
  %v482 = vpack.c.b16 %v442, %v438
  %v483 = vpack.c.b16 %v443, %v439
  %v484 = vpack.c.b16 %v444, %v440
  %v485 = vpack.c.b16 %v445, %v441
  %v486 = vpack.c.b16 %v450, %v446
  %v487 = vpack.c.b16 %v451, %v447
  %v488 = vpack.c.b16 %v452, %v448
  %v489 = vpack.c.b16 %v453, %v449
  %v490 = vpack.c.b16 %v458, %v454
  %v491 = vpack.c.b16 %v459, %v455
  %v492 = vpack.c.b16 %v460, %v456
  %v493 = vpack.c.b16 %v461, %v457
  %526 = vmatprep.subr.bf16.mxu0 %v491
  %527 = vmatpush1.bf16.msra.mxu0 %v490
  %528 = vmatprep.subr.bf16.mxu0 %v487
  %529 = vmatpush1.bf16.msra.mxu0 %v486
  %530 = vmatprep.subr.bf16.mxu0 %v483
  %531 = vmatpush1.bf16.msra.mxu0 %v482
  %532 = vmatprep.subr.bf16.mxu0 %v479
  %533 = vmatpush1.bf16.msra.mxu0 %v478
  %534 = vmatprep.subr.bf16.mxu0 %v475
  %535 = vmatpush1.bf16.msra.mxu0 %v474
  %536 = vmatprep.subr.bf16.mxu0 %v471
  %537 = vmatpush1.bf16.msra.mxu0 %v470
  %538 = vmatprep.subr.bf16.mxu0 %v467
  %539 = vmatpush1.bf16.msra.mxu0 %v466
  %540 = vmatprep.subr.bf16.mxu0 %v463
  %541 = vmatpush1.bf16.msra.mxu0 %v462
  %542 = vmatprep.subr.bf16.mxu0 0
  %543 = vmatpush2.bf16.msra.mxu0 0
  %544 = vmatprep.subr.bf16.mxu0 0
  %545 = vmatpush2.bf16.msra.mxu0 0
  %546 = vmatprep.subr.bf16.mxu0 0
  %547 = vmatpush2.bf16.msra.mxu0 0
  %548 = vmatprep.subr.bf16.mxu0 0
  %549 = vmatpush2.bf16.msra.mxu0 0
  %550 = vmatprep.subr.bf16.mxu0 0
  %551 = vmatpush2.bf16.msra.mxu0 0
  %552 = vmatprep.subr.bf16.mxu0 0
  %553 = vmatpush2.bf16.msra.mxu0 0
  %554 = vmatprep.subr.bf16.mxu0 0
  %555 = vmatpush2.bf16.msra.mxu0 0
  %556 = vmatprep.subr.bf16.mxu0 0
  %557 = vmatpush2.bf16.msra.mxu0 0
  %558 = vmatprep.mubr.bf16.mxu0 0
  %559 = vmatmul.mubr.bf16.gmra.mxu0 %v327
  %v560 = vpop.f32.mrf.mxu0
  %v561 = vadd.f32 0.0, %v560
  %v562 = vpop.f32.mrf.mxu0
  %v563 = vadd.f32 0.0, %v562
  %v564 = vpop.f32.mrf.mxu0
  %v565 = vpop.f32.mrf.mxu0
  %566 = vdwg.mxu0
  %567 = vmatprep.subr.bf16.mxu0 %v493
  %568 = vmatpush1.bf16.msra.mxu0 %v492
  %569 = vmatprep.subr.bf16.mxu0 %v489
  %570 = vmatpush1.bf16.msra.mxu0 %v488
  %571 = vmatprep.subr.bf16.mxu0 %v485
  %572 = vmatpush1.bf16.msra.mxu0 %v484
  %573 = vmatprep.subr.bf16.mxu0 %v481
  %574 = vmatpush1.bf16.msra.mxu0 %v480
  %575 = vmatprep.subr.bf16.mxu0 %v477
  %576 = vmatpush1.bf16.msra.mxu0 %v476
  %577 = vmatprep.subr.bf16.mxu0 %v473
  %578 = vmatpush1.bf16.msra.mxu0 %v472
  %579 = vmatprep.subr.bf16.mxu0 %v469
  %580 = vmatpush1.bf16.msra.mxu0 %v468
  %581 = vmatprep.subr.bf16.mxu0 %v465
  %582 = vmatpush1.bf16.msra.mxu0 %v464
  %583 = vmatprep.subr.bf16.mxu0 0
  %584 = vmatpush2.bf16.msra.mxu0 0
  %585 = vmatprep.subr.bf16.mxu0 0
  %586 = vmatpush2.bf16.msra.mxu0 0
  %587 = vmatprep.subr.bf16.mxu0 0
  %588 = vmatpush2.bf16.msra.mxu0 0
  %589 = vmatprep.subr.bf16.mxu0 0
  %590 = vmatpush2.bf16.msra.mxu0 0
  %591 = vmatprep.subr.bf16.mxu0 0
  %592 = vmatpush2.bf16.msra.mxu0 0
  %593 = vmatprep.subr.bf16.mxu0 0
  %594 = vmatpush2.bf16.msra.mxu0 0
  %595 = vmatprep.subr.bf16.mxu0 0
  %596 = vmatpush2.bf16.msra.mxu0 0
  %597 = vmatprep.subr.bf16.mxu0 0
  %598 = vmatpush2.bf16.msra.mxu0 0
  %599 = vmatprep.mubr.bf16.mxu0 0
  %600 = vmatmul.mubr.bf16.gmra.mxu0 %v327
  %v601 = vpop.f32.mrf.mxu0
  %v602 = vadd.f32 0.0, %v601
  %v603 = vpop.f32.mrf.mxu0
  %v604 = vadd.f32 0.0, %v603
  %v605 = vpop.f32.mrf.mxu0
  %v606 = vpop.f32.mrf.mxu0
  %607 = vdwg.mxu0
  %v608 = vadd.f32 %v330, %v561
  %v609 = vadd.f32 %v331, %v563
  %v610 = vadd.f32 %v332, %v602
  %v611 = vadd.f32 %v333, %v604
  %v612 = vxor.u32 %v608, 2147483648
  %v613 = vmul.f32 %v612, 1.442695
  %v614 = vpow.pop %v613
  %v615 = vadd.f32 %v614, 1.0
  %v616 = vrcp.pop %v615
  %v617 = vmul.f32 1.0, %v616
  %v618 = vxor.u32 %v609, 2147483648
  %v619 = vmul.f32 %v618, 1.442695
  %v620 = vpow.pop %v619
  %v621 = vadd.f32 %v620, 1.0
  %v622 = vrcp.pop %v621
  %v623 = vmul.f32 1.0, %v622
  %v624 = vtanh.pop %v610
  %v625 = vxor.u32 %v611, 2147483648
  %v626 = vmul.f32 %v625, 1.442695
  %v627 = vpow.pop %v626
  %v628 = vadd.f32 %v627, 1.0
  %v629 = vrcp.pop %v628
  %v630 = vmul.f32 1.0, %v629
  %v631 = vmul.f32 %v623, %v324
  %v632 = vmul.f32 %v617, %v624
  %v633 = vadd.f32 %v631, %v632
  %v634 = vtanh.pop %v633
  %v635 = vmul.f32 %v630, %v634
  %v636 = vpack.c.bf16 %v635, %v635
  %s637 = scalar_lea.vmem %s2, 4
  %638 = vst [vmem:[%s637] sm:$0xf] %v636
  %s639 = scalar_lea.vmem %s0, 64
  %v640 = vld [vmem:[%s639] sm:$0xff]
  %v641 = vld [vmem:[%s639 + $0x8] sm:$0xff]
  %v642 = vld [vmem:[%s639 + $0x10] sm:$0xff]
  %v643 = vld [vmem:[%s639 + $0x18] sm:$0xff]
  %v644 = vld [vmem:[%s1] sm:$0xff]
  %v645 = vld [vmem:[%s1 + $0x8] sm:$0xff]
  %v646 = vld [vmem:[%s1 + $0x10] sm:$0xff]
  %v647 = vld [vmem:[%s1 + $0x18] sm:$0xff]
  %v648 = vld [vmem:[%s1 + $0x20] sm:$0xff]
  %v649 = vld [vmem:[%s1 + $0x28] sm:$0xff]
  %v650 = vld [vmem:[%s1 + $0x30] sm:$0xff]
  %v651 = vld [vmem:[%s1 + $0x38] sm:$0xff]
  %v652 = vld [vmem:[%s1 + $0x40] sm:$0xff]
  %v653 = vld [vmem:[%s1 + $0x48] sm:$0xff]
  %v654 = vld [vmem:[%s1 + $0x50] sm:$0xff]
  %v655 = vld [vmem:[%s1 + $0x58] sm:$0xff]
  %v656 = vld [vmem:[%s1 + $0x60] sm:$0xff]
  %v657 = vld [vmem:[%s1 + $0x68] sm:$0xff]
  %v658 = vld [vmem:[%s1 + $0x70] sm:$0xff]
  %v659 = vld [vmem:[%s1 + $0x78] sm:$0xff]
  %v660 = vld [vmem:[%s1 + $0x80] sm:$0xff]
  %v661 = vld [vmem:[%s1 + $0x88] sm:$0xff]
  %v662 = vld [vmem:[%s1 + $0x90] sm:$0xff]
  %v663 = vld [vmem:[%s1 + $0x98] sm:$0xff]
  %v664 = vld [vmem:[%s1 + $0xa0] sm:$0xff]
  %v665 = vld [vmem:[%s1 + $0xa8] sm:$0xff]
  %v666 = vld [vmem:[%s1 + $0xb0] sm:$0xff]
  %v667 = vld [vmem:[%s1 + $0xb8] sm:$0xff]
  %v668 = vld [vmem:[%s1 + $0xc0] sm:$0xff]
  %v669 = vld [vmem:[%s1 + $0xc8] sm:$0xff]
  %v670 = vld [vmem:[%s1 + $0xd0] sm:$0xff]
  %v671 = vld [vmem:[%s1 + $0xd8] sm:$0xff]
  %v672 = vld [vmem:[%s1 + $0xe0] sm:$0xff]
  %v673 = vld [vmem:[%s1 + $0xe8] sm:$0xff]
  %v674 = vld [vmem:[%s1 + $0xf0] sm:$0xff]
  %v675 = vld [vmem:[%s1 + $0xf8] sm:$0xff]
  %v708 = vunpack.c.l.b16 %v644
  %v709 = vunpack.c.h.b16 %v644
  %v710 = vunpack.c.l.b16 %v645
  %v711 = vunpack.c.h.b16 %v645
  %v712 = vunpack.c.l.b16 %v646
  %v713 = vunpack.c.h.b16 %v646
  %v714 = vunpack.c.l.b16 %v647
  %v715 = vunpack.c.h.b16 %v647
  %v716 = vunpack.c.l.b16 %v648
  %v717 = vunpack.c.h.b16 %v648
  %v718 = vunpack.c.l.b16 %v649
  %v719 = vunpack.c.h.b16 %v649
  %v720 = vunpack.c.l.b16 %v650
  %v721 = vunpack.c.h.b16 %v650
  %v722 = vunpack.c.l.b16 %v651
  %v723 = vunpack.c.h.b16 %v651
  %v724 = vunpack.c.l.b16 %v652
  %v725 = vunpack.c.h.b16 %v652
  %v726 = vunpack.c.l.b16 %v653
  %v727 = vunpack.c.h.b16 %v653
  %v728 = vunpack.c.l.b16 %v654
  %v729 = vunpack.c.h.b16 %v654
  %v730 = vunpack.c.l.b16 %v655
  %v731 = vunpack.c.h.b16 %v655
  %v732 = vunpack.c.l.b16 %v656
  %v733 = vunpack.c.h.b16 %v656
  %v734 = vunpack.c.l.b16 %v657
  %v735 = vunpack.c.h.b16 %v657
  %v736 = vunpack.c.l.b16 %v658
  %v737 = vunpack.c.h.b16 %v658
  %v738 = vunpack.c.l.b16 %v659
  %v739 = vunpack.c.h.b16 %v659
  %v740 = vunpack.c.l.b16 %v660
  %v741 = vunpack.c.h.b16 %v660
  %v742 = vunpack.c.l.b16 %v661
  %v743 = vunpack.c.h.b16 %v661
  %v744 = vunpack.c.l.b16 %v662
  %v745 = vunpack.c.h.b16 %v662
  %v746 = vunpack.c.l.b16 %v663
  %v747 = vunpack.c.h.b16 %v663
  %v748 = vunpack.c.l.b16 %v664
  %v749 = vunpack.c.h.b16 %v664
  %v750 = vunpack.c.l.b16 %v665
  %v751 = vunpack.c.h.b16 %v665
  %v752 = vunpack.c.l.b16 %v666
  %v753 = vunpack.c.h.b16 %v666
  %v754 = vunpack.c.l.b16 %v667
  %v755 = vunpack.c.h.b16 %v667
  %v756 = vunpack.c.l.b16 %v668
  %v757 = vunpack.c.h.b16 %v668
  %v758 = vunpack.c.l.b16 %v669
  %v759 = vunpack.c.h.b16 %v669
  %v760 = vunpack.c.l.b16 %v670
  %v761 = vunpack.c.h.b16 %v670
  %v762 = vunpack.c.l.b16 %v671
  %v763 = vunpack.c.h.b16 %v671
  %v764 = vunpack.c.l.b16 %v672
  %v765 = vunpack.c.h.b16 %v672
  %v766 = vunpack.c.l.b16 %v673
  %v767 = vunpack.c.h.b16 %v673
  %v768 = vunpack.c.l.b16 %v674
  %v769 = vunpack.c.h.b16 %v674
  %v770 = vunpack.c.l.b16 %v675
  %v771 = vunpack.c.h.b16 %v675
  %v772 = vpack.c.b16 %v712, %v708
  %v773 = vpack.c.b16 %v713, %v709
  %v774 = vpack.c.b16 %v714, %v710
  %v775 = vpack.c.b16 %v715, %v711
  %v776 = vpack.c.b16 %v720, %v716
  %v777 = vpack.c.b16 %v721, %v717
  %v778 = vpack.c.b16 %v722, %v718
  %v779 = vpack.c.b16 %v723, %v719
  %v780 = vpack.c.b16 %v728, %v724
  %v781 = vpack.c.b16 %v729, %v725
  %v782 = vpack.c.b16 %v730, %v726
  %v783 = vpack.c.b16 %v731, %v727
  %v784 = vpack.c.b16 %v736, %v732
  %v785 = vpack.c.b16 %v737, %v733
  %v786 = vpack.c.b16 %v738, %v734
  %v787 = vpack.c.b16 %v739, %v735
  %v788 = vpack.c.b16 %v744, %v740
  %v789 = vpack.c.b16 %v745, %v741
  %v790 = vpack.c.b16 %v746, %v742
  %v791 = vpack.c.b16 %v747, %v743
  %v792 = vpack.c.b16 %v752, %v748
  %v793 = vpack.c.b16 %v753, %v749
  %v794 = vpack.c.b16 %v754, %v750
  %v795 = vpack.c.b16 %v755, %v751
  %v796 = vpack.c.b16 %v760, %v756
  %v797 = vpack.c.b16 %v761, %v757
  %v798 = vpack.c.b16 %v762, %v758
  %v799 = vpack.c.b16 %v763, %v759
  %v800 = vpack.c.b16 %v768, %v764
  %v801 = vpack.c.b16 %v769, %v765
  %v802 = vpack.c.b16 %v770, %v766
  %v803 = vpack.c.b16 %v771, %v767
  %836 = vmatprep.subr.bf16.mxu0 %v801
  %837 = vmatpush1.bf16.msra.mxu0 %v800
  %838 = vmatprep.subr.bf16.mxu0 %v797
  %839 = vmatpush1.bf16.msra.mxu0 %v796
  %840 = vmatprep.subr.bf16.mxu0 %v793
  %841 = vmatpush1.bf16.msra.mxu0 %v792
  %842 = vmatprep.subr.bf16.mxu0 %v789
  %843 = vmatpush1.bf16.msra.mxu0 %v788
  %844 = vmatprep.subr.bf16.mxu0 %v785
  %845 = vmatpush1.bf16.msra.mxu0 %v784
  %846 = vmatprep.subr.bf16.mxu0 %v781
  %847 = vmatpush1.bf16.msra.mxu0 %v780
  %848 = vmatprep.subr.bf16.mxu0 %v777
  %849 = vmatpush1.bf16.msra.mxu0 %v776
  %850 = vmatprep.subr.bf16.mxu0 %v773
  %851 = vmatpush1.bf16.msra.mxu0 %v772
  %852 = vmatprep.subr.bf16.mxu0 0
  %853 = vmatpush2.bf16.msra.mxu0 0
  %854 = vmatprep.subr.bf16.mxu0 0
  %855 = vmatpush2.bf16.msra.mxu0 0
  %856 = vmatprep.subr.bf16.mxu0 0
  %857 = vmatpush2.bf16.msra.mxu0 0
  %858 = vmatprep.subr.bf16.mxu0 0
  %859 = vmatpush2.bf16.msra.mxu0 0
  %860 = vmatprep.subr.bf16.mxu0 0
  %861 = vmatpush2.bf16.msra.mxu0 0
  %862 = vmatprep.subr.bf16.mxu0 0
  %863 = vmatpush2.bf16.msra.mxu0 0
  %864 = vmatprep.subr.bf16.mxu0 0
  %865 = vmatpush2.bf16.msra.mxu0 0
  %866 = vmatprep.subr.bf16.mxu0 0
  %867 = vmatpush2.bf16.msra.mxu0 0
  %868 = vmatprep.mubr.bf16.mxu0 0
  %869 = vmatmul.mubr.bf16.gmra.mxu0 %v636
  %v870 = vpop.f32.mrf.mxu0
  %v871 = vadd.f32 0.0, %v870
  %v872 = vpop.f32.mrf.mxu0
  %v873 = vadd.f32 0.0, %v872
  %v874 = vpop.f32.mrf.mxu0
  %v875 = vpop.f32.mrf.mxu0
  %876 = vdwg.mxu0
  %877 = vmatprep.subr.bf16.mxu0 %v803
  %878 = vmatpush1.bf16.msra.mxu0 %v802
  %879 = vmatprep.subr.bf16.mxu0 %v799
  %880 = vmatpush1.bf16.msra.mxu0 %v798
  %881 = vmatprep.subr.bf16.mxu0 %v795
  %882 = vmatpush1.bf16.msra.mxu0 %v794
  %883 = vmatprep.subr.bf16.mxu0 %v791
  %884 = vmatpush1.bf16.msra.mxu0 %v790
  %885 = vmatprep.subr.bf16.mxu0 %v787
  %886 = vmatpush1.bf16.msra.mxu0 %v786
  %887 = vmatprep.subr.bf16.mxu0 %v783
  %888 = vmatpush1.bf16.msra.mxu0 %v782
  %889 = vmatprep.subr.bf16.mxu0 %v779
  %890 = vmatpush1.bf16.msra.mxu0 %v778
  %891 = vmatprep.subr.bf16.mxu0 %v775
  %892 = vmatpush1.bf16.msra.mxu0 %v774
  %893 = vmatprep.subr.bf16.mxu0 0
  %894 = vmatpush2.bf16.msra.mxu0 0
  %895 = vmatprep.subr.bf16.mxu0 0
  %896 = vmatpush2.bf16.msra.mxu0 0
  %897 = vmatprep.subr.bf16.mxu0 0
  %898 = vmatpush2.bf16.msra.mxu0 0
  %899 = vmatprep.subr.bf16.mxu0 0
  %900 = vmatpush2.bf16.msra.mxu0 0
  %901 = vmatprep.subr.bf16.mxu0 0
  %902 = vmatpush2.bf16.msra.mxu0 0
  %903 = vmatprep.subr.bf16.mxu0 0
  %904 = vmatpush2.bf16.msra.mxu0 0
  %905 = vmatprep.subr.bf16.mxu0 0
  %906 = vmatpush2.bf16.msra.mxu0 0
  %907 = vmatprep.subr.bf16.mxu0 0
  %908 = vmatpush2.bf16.msra.mxu0 0
  %909 = vmatprep.mubr.bf16.mxu0 0
  %910 = vmatmul.mubr.bf16.gmra.mxu0 %v636
  %v911 = vpop.f32.mrf.mxu0
  %v912 = vadd.f32 0.0, %v911
  %v913 = vpop.f32.mrf.mxu0
  %v914 = vadd.f32 0.0, %v913
  %v915 = vpop.f32.mrf.mxu0
  %v916 = vpop.f32.mrf.mxu0
  %917 = vdwg.mxu0
  %v918 = vadd.f32 %v640, %v871
  %v919 = vadd.f32 %v641, %v873
  %v920 = vadd.f32 %v642, %v912
  %v921 = vadd.f32 %v643, %v914
  %v922 = vxor.u32 %v918, 2147483648
  %v923 = vmul.f32 %v922, 1.442695
  %v924 = vpow.pop %v923
  %v925 = vadd.f32 %v924, 1.0
  %v926 = vrcp.pop %v925
  %v927 = vmul.f32 1.0, %v926
  %v928 = vxor.u32 %v919, 2147483648
  %v929 = vmul.f32 %v928, 1.442695
  %v930 = vpow.pop %v929
  %v931 = vadd.f32 %v930, 1.0
  %v932 = vrcp.pop %v931
  %v933 = vmul.f32 1.0, %v932
  %v934 = vtanh.pop %v920
  %v935 = vxor.u32 %v921, 2147483648
  %v936 = vmul.f32 %v935, 1.442695
  %v937 = vpow.pop %v936
  %v938 = vadd.f32 %v937, 1.0
  %v939 = vrcp.pop %v938
  %v940 = vmul.f32 1.0, %v939
  %v941 = vmul.f32 %v933, %v633
  %v942 = vmul.f32 %v927, %v934
  %v943 = vadd.f32 %v941, %v942
  %v944 = vtanh.pop %v943
  %v945 = vmul.f32 %v940, %v944
  %v946 = vpack.c.bf16 %v945, %v945
  %s947 = scalar_lea.vmem %s2, 8
  %948 = vst [vmem:[%s947] sm:$0xf] %v946
  %s949 = scalar_lea.vmem %s0, 96
  %v950 = vld [vmem:[%s949] sm:$0xff]
  %v951 = vld [vmem:[%s949 + $0x8] sm:$0xff]
  %v952 = vld [vmem:[%s949 + $0x10] sm:$0xff]
  %v953 = vld [vmem:[%s949 + $0x18] sm:$0xff]
  %v954 = vld [vmem:[%s1] sm:$0xff]
  %v955 = vld [vmem:[%s1 + $0x8] sm:$0xff]
  %v956 = vld [vmem:[%s1 + $0x10] sm:$0xff]
  %v957 = vld [vmem:[%s1 + $0x18] sm:$0xff]
  %v958 = vld [vmem:[%s1 + $0x20] sm:$0xff]
  %v959 = vld [vmem:[%s1 + $0x28] sm:$0xff]
  %v960 = vld [vmem:[%s1 + $0x30] sm:$0xff]
  %v961 = vld [vmem:[%s1 + $0x38] sm:$0xff]
  %v962 = vld [vmem:[%s1 + $0x40] sm:$0xff]
  %v963 = vld [vmem:[%s1 + $0x48] sm:$0xff]
  %v964 = vld [vmem:[%s1 + $0x50] sm:$0xff]
  %v965 = vld [vmem:[%s1 + $0x58] sm:$0xff]
  %v966 = vld [vmem:[%s1 + $0x60] sm:$0xff]
  %v967 = vld [vmem:[%s1 + $0x68] sm:$0xff]
  %v968 = vld [vmem:[%s1 + $0x70] sm:$0xff]
  %v969 = vld [vmem:[%s1 + $0x78] sm:$0xff]
  %v970 = vld [vmem:[%s1 + $0x80] sm:$0xff]
  %v971 = vld [vmem:[%s1 + $0x88] sm:$0xff]
  %v972 = vld [vmem:[%s1 + $0x90] sm:$0xff]
  %v973 = vld [vmem:[%s1 + $0x98] sm:$0xff]
  %v974 = vld [vmem:[%s1 + $0xa0] sm:$0xff]
  %v975 = vld [vmem:[%s1 + $0xa8] sm:$0xff]
  %v976 = vld [vmem:[%s1 + $0xb0] sm:$0xff]
  %v977 = vld [vmem:[%s1 + $0xb8] sm:$0xff]
  %v978 = vld [vmem:[%s1 + $0xc0] sm:$0xff]
  %v979 = vld [vmem:[%s1 + $0xc8] sm:$0xff]
  %v980 = vld [vmem:[%s1 + $0xd0] sm:$0xff]
  %v981 = vld [vmem:[%s1 + $0xd8] sm:$0xff]
  %v982 = vld [vmem:[%s1 + $0xe0] sm:$0xff]
  %v983 = vld [vmem:[%s1 + $0xe8] sm:$0xff]
  %v984 = vld [vmem:[%s1 + $0xf0] sm:$0xff]
  %v985 = vld [vmem:[%s1 + $0xf8] sm:$0xff]
  %v1018 = vunpack.c.l.b16 %v954
  %v1019 = vunpack.c.h.b16 %v954
  %v1020 = vunpack.c.l.b16 %v955
  %v1021 = vunpack.c.h.b16 %v955
  %v1022 = vunpack.c.l.b16 %v956
  %v1023 = vunpack.c.h.b16 %v956
  %v1024 = vunpack.c.l.b16 %v957
  %v1025 = vunpack.c.h.b16 %v957
  %v1026 = vunpack.c.l.b16 %v958
  %v1027 = vunpack.c.h.b16 %v958
  %v1028 = vunpack.c.l.b16 %v959
  %v1029 = vunpack.c.h.b16 %v959
  %v1030 = vunpack.c.l.b16 %v960
  %v1031 = vunpack.c.h.b16 %v960
  %v1032 = vunpack.c.l.b16 %v961
  %v1033 = vunpack.c.h.b16 %v961
  %v1034 = vunpack.c.l.b16 %v962
  %v1035 = vunpack.c.h.b16 %v962
  %v1036 = vunpack.c.l.b16 %v963
  %v1037 = vunpack.c.h.b16 %v963
  %v1038 = vunpack.c.l.b16 %v964
  %v1039 = vunpack.c.h.b16 %v964
  %v1040 = vunpack.c.l.b16 %v965
  %v1041 = vunpack.c.h.b16 %v965
  %v1042 = vunpack.c.l.b16 %v966
  %v1043 = vunpack.c.h.b16 %v966
  %v1044 = vunpack.c.l.b16 %v967
  %v1045 = vunpack.c.h.b16 %v967
  %v1046 = vunpack.c.l.b16 %v968
  %v1047 = vunpack.c.h.b16 %v968
  %v1048 = vunpack.c.l.b16 %v969
  %v1049 = vunpack.c.h.b16 %v969
  %v1050 = vunpack.c.l.b16 %v970
  %v1051 = vunpack.c.h.b16 %v970
  %v1052 = vunpack.c.l.b16 %v971
  %v1053 = vunpack.c.h.b16 %v971
  %v1054 = vunpack.c.l.b16 %v972
  %v1055 = vunpack.c.h.b16 %v972
  %v1056 = vunpack.c.l.b16 %v973
  %v1057 = vunpack.c.h.b16 %v973
  %v1058 = vunpack.c.l.b16 %v974
  %v1059 = vunpack.c.h.b16 %v974
  %v1060 = vunpack.c.l.b16 %v975
  %v1061 = vunpack.c.h.b16 %v975
  %v1062 = vunpack.c.l.b16 %v976
  %v1063 = vunpack.c.h.b16 %v976
  %v1064 = vunpack.c.l.b16 %v977
  %v1065 = vunpack.c.h.b16 %v977
  %v1066 = vunpack.c.l.b16 %v978
  %v1067 = vunpack.c.h.b16 %v978
  %v1068 = vunpack.c.l.b16 %v979
  %v1069 = vunpack.c.h.b16 %v979
  %v1070 = vunpack.c.l.b16 %v980
  %v1071 = vunpack.c.h.b16 %v980
  %v1072 = vunpack.c.l.b16 %v981
  %v1073 = vunpack.c.h.b16 %v981
  %v1074 = vunpack.c.l.b16 %v982
  %v1075 = vunpack.c.h.b16 %v982
  %v1076 = vunpack.c.l.b16 %v983
  %v1077 = vunpack.c.h.b16 %v983
  %v1078 = vunpack.c.l.b16 %v984
  %v1079 = vunpack.c.h.b16 %v984
  %v1080 = vunpack.c.l.b16 %v985
  %v1081 = vunpack.c.h.b16 %v985
  %v1082 = vpack.c.b16 %v1022, %v1018
  %v1083 = vpack.c.b16 %v1023, %v1019
  %v1084 = vpack.c.b16 %v1024, %v1020
  %v1085 = vpack.c.b16 %v1025, %v1021
  %v1086 = vpack.c.b16 %v1030, %v1026
  %v1087 = vpack.c.b16 %v1031, %v1027
  %v1088 = vpack.c.b16 %v1032, %v1028
  %v1089 = vpack.c.b16 %v1033, %v1029
  %v1090 = vpack.c.b16 %v1038, %v1034
  %v1091 = vpack.c.b16 %v1039, %v1035
  %v1092 = vpack.c.b16 %v1040, %v1036
  %v1093 = vpack.c.b16 %v1041, %v1037
  %v1094 = vpack.c.b16 %v1046, %v1042
  %v1095 = vpack.c.b16 %v1047, %v1043
  %v1096 = vpack.c.b16 %v1048, %v1044
  %v1097 = vpack.c.b16 %v1049, %v1045
  %v1098 = vpack.c.b16 %v1054, %v1050
  %v1099 = vpack.c.b16 %v1055, %v1051
  %v1100 = vpack.c.b16 %v1056, %v1052
  %v1101 = vpack.c.b16 %v1057, %v1053
  %v1102 = vpack.c.b16 %v1062, %v1058
  %v1103 = vpack.c.b16 %v1063, %v1059
  %v1104 = vpack.c.b16 %v1064, %v1060
  %v1105 = vpack.c.b16 %v1065, %v1061
  %v1106 = vpack.c.b16 %v1070, %v1066
  %v1107 = vpack.c.b16 %v1071, %v1067
  %v1108 = vpack.c.b16 %v1072, %v1068
  %v1109 = vpack.c.b16 %v1073, %v1069
  %v1110 = vpack.c.b16 %v1078, %v1074
  %v1111 = vpack.c.b16 %v1079, %v1075
  %v1112 = vpack.c.b16 %v1080, %v1076
  %v1113 = vpack.c.b16 %v1081, %v1077
  %1146 = vmatprep.subr.bf16.mxu0 %v1111
  %1147 = vmatpush1.bf16.msra.mxu0 %v1110
  %1148 = vmatprep.subr.bf16.mxu0 %v1107
  %1149 = vmatpush1.bf16.msra.mxu0 %v1106
  %1150 = vmatprep.subr.bf16.mxu0 %v1103
  %1151 = vmatpush1.bf16.msra.mxu0 %v1102
  %1152 = vmatprep.subr.bf16.mxu0 %v1099
  %1153 = vmatpush1.bf16.msra.mxu0 %v1098
  %1154 = vmatprep.subr.bf16.mxu0 %v1095
  %1155 = vmatpush1.bf16.msra.mxu0 %v1094
  %1156 = vmatprep.subr.bf16.mxu0 %v1091
  %1157 = vmatpush1.bf16.msra.mxu0 %v1090
  %1158 = vmatprep.subr.bf16.mxu0 %v1087
  %1159 = vmatpush1.bf16.msra.mxu0 %v1086
  %1160 = vmatprep.subr.bf16.mxu0 %v1083
  %1161 = vmatpush1.bf16.msra.mxu0 %v1082
  %1162 = vmatprep.subr.bf16.mxu0 0
  %1163 = vmatpush2.bf16.msra.mxu0 0
  %1164 = vmatprep.subr.bf16.mxu0 0
  %1165 = vmatpush2.bf16.msra.mxu0 0
  %1166 = vmatprep.subr.bf16.mxu0 0
  %1167 = vmatpush2.bf16.msra.mxu0 0
  %1168 = vmatprep.subr.bf16.mxu0 0
  %1169 = vmatpush2.bf16.msra.mxu0 0
  %1170 = vmatprep.subr.bf16.mxu0 0
  %1171 = vmatpush2.bf16.msra.mxu0 0
  %1172 = vmatprep.subr.bf16.mxu0 0
  %1173 = vmatpush2.bf16.msra.mxu0 0
  %1174 = vmatprep.subr.bf16.mxu0 0
  %1175 = vmatpush2.bf16.msra.mxu0 0
  %1176 = vmatprep.subr.bf16.mxu0 0
  %1177 = vmatpush2.bf16.msra.mxu0 0
  %1178 = vmatprep.mubr.bf16.mxu0 0
  %1179 = vmatmul.mubr.bf16.gmra.mxu0 %v946
  %v1180 = vpop.f32.mrf.mxu0
  %v1181 = vadd.f32 0.0, %v1180
  %v1182 = vpop.f32.mrf.mxu0
  %v1183 = vadd.f32 0.0, %v1182
  %v1184 = vpop.f32.mrf.mxu0
  %v1185 = vpop.f32.mrf.mxu0
  %1186 = vdwg.mxu0
  %1187 = vmatprep.subr.bf16.mxu0 %v1113
  %1188 = vmatpush1.bf16.msra.mxu0 %v1112
  %1189 = vmatprep.subr.bf16.mxu0 %v1109
  %1190 = vmatpush1.bf16.msra.mxu0 %v1108
  %1191 = vmatprep.subr.bf16.mxu0 %v1105
  %1192 = vmatpush1.bf16.msra.mxu0 %v1104
  %1193 = vmatprep.subr.bf16.mxu0 %v1101
  %1194 = vmatpush1.bf16.msra.mxu0 %v1100
  %1195 = vmatprep.subr.bf16.mxu0 %v1097
  %1196 = vmatpush1.bf16.msra.mxu0 %v1096
  %1197 = vmatprep.subr.bf16.mxu0 %v1093
  %1198 = vmatpush1.bf16.msra.mxu0 %v1092
  %1199 = vmatprep.subr.bf16.mxu0 %v1089
  %1200 = vmatpush1.bf16.msra.mxu0 %v1088
  %1201 = vmatprep.subr.bf16.mxu0 %v1085
  %1202 = vmatpush1.bf16.msra.mxu0 %v1084
  %1203 = vmatprep.subr.bf16.mxu0 0
  %1204 = vmatpush2.bf16.msra.mxu0 0
  %1205 = vmatprep.subr.bf16.mxu0 0
  %1206 = vmatpush2.bf16.msra.mxu0 0
  %1207 = vmatprep.subr.bf16.mxu0 0
  %1208 = vmatpush2.bf16.msra.mxu0 0
  %1209 = vmatprep.subr.bf16.mxu0 0
  %1210 = vmatpush2.bf16.msra.mxu0 0
  %1211 = vmatprep.subr.bf16.mxu0 0
  %1212 = vmatpush2.bf16.msra.mxu0 0
  %1213 = vmatprep.subr.bf16.mxu0 0
  %1214 = vmatpush2.bf16.msra.mxu0 0
  %1215 = vmatprep.subr.bf16.mxu0 0
  %1216 = vmatpush2.bf16.msra.mxu0 0
  %1217 = vmatprep.subr.bf16.mxu0 0
  %1218 = vmatpush2.bf16.msra.mxu0 0
  %1219 = vmatprep.mubr.bf16.mxu0 0
  %1220 = vmatmul.mubr.bf16.gmra.mxu0 %v946
  %v1221 = vpop.f32.mrf.mxu0
  %v1222 = vadd.f32 0.0, %v1221
  %v1223 = vpop.f32.mrf.mxu0
  %v1224 = vadd.f32 0.0, %v1223
  %v1225 = vpop.f32.mrf.mxu0
  %v1226 = vpop.f32.mrf.mxu0
  %1227 = vdwg.mxu0
  %v1228 = vadd.f32 %v950, %v1181
  %v1229 = vadd.f32 %v951, %v1183
  %v1230 = vadd.f32 %v952, %v1222
  %v1231 = vadd.f32 %v953, %v1224
  %v1232 = vxor.u32 %v1228, 2147483648
  %v1233 = vmul.f32 %v1232, 1.442695
  %v1234 = vpow.pop %v1233
  %v1235 = vadd.f32 %v1234, 1.0
  %v1236 = vrcp.pop %v1235
  %v1237 = vmul.f32 1.0, %v1236
  %v1238 = vxor.u32 %v1229, 2147483648
  %v1239 = vmul.f32 %v1238, 1.442695
  %v1240 = vpow.pop %v1239
  %v1241 = vadd.f32 %v1240, 1.0
  %v1242 = vrcp.pop %v1241
  %v1243 = vmul.f32 1.0, %v1242
  %v1244 = vtanh.pop %v1230
  %v1245 = vxor.u32 %v1231, 2147483648
  %v1246 = vmul.f32 %v1245, 1.442695
  %v1247 = vpow.pop %v1246
  %v1248 = vadd.f32 %v1247, 1.0
  %v1249 = vrcp.pop %v1248
  %v1250 = vmul.f32 1.0, %v1249
  %v1251 = vmul.f32 %v1243, %v943
  %v1252 = vmul.f32 %v1237, %v1244
  %v1253 = vadd.f32 %v1251, %v1252
  %v1254 = vtanh.pop %v1253
  %v1255 = vmul.f32 %v1250, %v1254
  %v1256 = vpack.c.bf16 %v1255, %v1255
  %s1257 = scalar_lea.vmem %s2, 12
  %1258 = vst [vmem:[%s1257] sm:$0xf] %v1256
  %s1259 = scalar_lea.vmem %s0, 128
  %v1260 = vld [vmem:[%s1259] sm:$0xff]
  %v1261 = vld [vmem:[%s1259 + $0x8] sm:$0xff]
  %v1262 = vld [vmem:[%s1259 + $0x10] sm:$0xff]
  %v1263 = vld [vmem:[%s1259 + $0x18] sm:$0xff]
  %v1264 = vld [vmem:[%s1] sm:$0xff]
  %v1265 = vld [vmem:[%s1 + $0x8] sm:$0xff]
  %v1266 = vld [vmem:[%s1 + $0x10] sm:$0xff]
  %v1267 = vld [vmem:[%s1 + $0x18] sm:$0xff]
  %v1268 = vld [vmem:[%s1 + $0x20] sm:$0xff]
  %v1269 = vld [vmem:[%s1 + $0x28] sm:$0xff]
  %v1270 = vld [vmem:[%s1 + $0x30] sm:$0xff]
  %v1271 = vld [vmem:[%s1 + $0x38] sm:$0xff]
  %v1272 = vld [vmem:[%s1 + $0x40] sm:$0xff]
  %v1273 = vld [vmem:[%s1 + $0x48] sm:$0xff]
  %v1274 = vld [vmem:[%s1 + $0x50] sm:$0xff]
  %v1275 = vld [vmem:[%s1 + $0x58] sm:$0xff]
  %v1276 = vld [vmem:[%s1 + $0x60] sm:$0xff]
  %v1277 = vld [vmem:[%s1 + $0x68] sm:$0xff]
  %v1278 = vld [vmem:[%s1 + $0x70] sm:$0xff]
  %v1279 = vld [vmem:[%s1 + $0x78] sm:$0xff]
  %v1280 = vld [vmem:[%s1 + $0x80] sm:$0xff]
  %v1281 = vld [vmem:[%s1 + $0x88] sm:$0xff]
  %v1282 = vld [vmem:[%s1 + $0x90] sm:$0xff]
  %v1283 = vld [vmem:[%s1 + $0x98] sm:$0xff]
  %v1284 = vld [vmem:[%s1 + $0xa0] sm:$0xff]
  %v1285 = vld [vmem:[%s1 + $0xa8] sm:$0xff]
  %v1286 = vld [vmem:[%s1 + $0xb0] sm:$0xff]
  %v1287 = vld [vmem:[%s1 + $0xb8] sm:$0xff]
  %v1288 = vld [vmem:[%s1 + $0xc0] sm:$0xff]
  %v1289 = vld [vmem:[%s1 + $0xc8] sm:$0xff]
  %v1290 = vld [vmem:[%s1 + $0xd0] sm:$0xff]
  %v1291 = vld [vmem:[%s1 + $0xd8] sm:$0xff]
  %v1292 = vld [vmem:[%s1 + $0xe0] sm:$0xff]
  %v1293 = vld [vmem:[%s1 + $0xe8] sm:$0xff]
  %v1294 = vld [vmem:[%s1 + $0xf0] sm:$0xff]
  %v1295 = vld [vmem:[%s1 + $0xf8] sm:$0xff]
  %v1328 = vunpack.c.l.b16 %v1264
  %v1329 = vunpack.c.h.b16 %v1264
  %v1330 = vunpack.c.l.b16 %v1265
  %v1331 = vunpack.c.h.b16 %v1265
  %v1332 = vunpack.c.l.b16 %v1266
  %v1333 = vunpack.c.h.b16 %v1266
  %v1334 = vunpack.c.l.b16 %v1267
  %v1335 = vunpack.c.h.b16 %v1267
  %v1336 = vunpack.c.l.b16 %v1268
  %v1337 = vunpack.c.h.b16 %v1268
  %v1338 = vunpack.c.l.b16 %v1269
  %v1339 = vunpack.c.h.b16 %v1269
  %v1340 = vunpack.c.l.b16 %v1270
  %v1341 = vunpack.c.h.b16 %v1270
  %v1342 = vunpack.c.l.b16 %v1271
  %v1343 = vunpack.c.h.b16 %v1271
  %v1344 = vunpack.c.l.b16 %v1272
  %v1345 = vunpack.c.h.b16 %v1272
  %v1346 = vunpack.c.l.b16 %v1273
  %v1347 = vunpack.c.h.b16 %v1273
  %v1348 = vunpack.c.l.b16 %v1274
  %v1349 = vunpack.c.h.b16 %v1274
  %v1350 = vunpack.c.l.b16 %v1275
  %v1351 = vunpack.c.h.b16 %v1275
  %v1352 = vunpack.c.l.b16 %v1276
  %v1353 = vunpack.c.h.b16 %v1276
  %v1354 = vunpack.c.l.b16 %v1277
  %v1355 = vunpack.c.h.b16 %v1277
  %v1356 = vunpack.c.l.b16 %v1278
  %v1357 = vunpack.c.h.b16 %v1278
  %v1358 = vunpack.c.l.b16 %v1279
  %v1359 = vunpack.c.h.b16 %v1279
  %v1360 = vunpack.c.l.b16 %v1280
  %v1361 = vunpack.c.h.b16 %v1280
  %v1362 = vunpack.c.l.b16 %v1281
  %v1363 = vunpack.c.h.b16 %v1281
  %v1364 = vunpack.c.l.b16 %v1282
  %v1365 = vunpack.c.h.b16 %v1282
  %v1366 = vunpack.c.l.b16 %v1283
  %v1367 = vunpack.c.h.b16 %v1283
  %v1368 = vunpack.c.l.b16 %v1284
  %v1369 = vunpack.c.h.b16 %v1284
  %v1370 = vunpack.c.l.b16 %v1285
  %v1371 = vunpack.c.h.b16 %v1285
  %v1372 = vunpack.c.l.b16 %v1286
  %v1373 = vunpack.c.h.b16 %v1286
  %v1374 = vunpack.c.l.b16 %v1287
  %v1375 = vunpack.c.h.b16 %v1287
  %v1376 = vunpack.c.l.b16 %v1288
  %v1377 = vunpack.c.h.b16 %v1288
  %v1378 = vunpack.c.l.b16 %v1289
  %v1379 = vunpack.c.h.b16 %v1289
  %v1380 = vunpack.c.l.b16 %v1290
  %v1381 = vunpack.c.h.b16 %v1290
  %v1382 = vunpack.c.l.b16 %v1291
  %v1383 = vunpack.c.h.b16 %v1291
  %v1384 = vunpack.c.l.b16 %v1292
  %v1385 = vunpack.c.h.b16 %v1292
  %v1386 = vunpack.c.l.b16 %v1293
  %v1387 = vunpack.c.h.b16 %v1293
  %v1388 = vunpack.c.l.b16 %v1294
  %v1389 = vunpack.c.h.b16 %v1294
  %v1390 = vunpack.c.l.b16 %v1295
  %v1391 = vunpack.c.h.b16 %v1295
  %v1392 = vpack.c.b16 %v1332, %v1328
  %v1393 = vpack.c.b16 %v1333, %v1329
  %v1394 = vpack.c.b16 %v1334, %v1330
  %v1395 = vpack.c.b16 %v1335, %v1331
  %v1396 = vpack.c.b16 %v1340, %v1336
  %v1397 = vpack.c.b16 %v1341, %v1337
  %v1398 = vpack.c.b16 %v1342, %v1338
  %v1399 = vpack.c.b16 %v1343, %v1339
  %v1400 = vpack.c.b16 %v1348, %v1344
  %v1401 = vpack.c.b16 %v1349, %v1345
  %v1402 = vpack.c.b16 %v1350, %v1346
  %v1403 = vpack.c.b16 %v1351, %v1347
  %v1404 = vpack.c.b16 %v1356, %v1352
  %v1405 = vpack.c.b16 %v1357, %v1353
  %v1406 = vpack.c.b16 %v1358, %v1354
  %v1407 = vpack.c.b16 %v1359, %v1355
  %v1408 = vpack.c.b16 %v1364, %v1360
  %v1409 = vpack.c.b16 %v1365, %v1361
  %v1410 = vpack.c.b16 %v1366, %v1362
  %v1411 = vpack.c.b16 %v1367, %v1363
  %v1412 = vpack.c.b16 %v1372, %v1368
  %v1413 = vpack.c.b16 %v1373, %v1369
  %v1414 = vpack.c.b16 %v1374, %v1370
  %v1415 = vpack.c.b16 %v1375, %v1371
  %v1416 = vpack.c.b16 %v1380, %v1376
  %v1417 = vpack.c.b16 %v1381, %v1377
  %v1418 = vpack.c.b16 %v1382, %v1378
  %v1419 = vpack.c.b16 %v1383, %v1379
  %v1420 = vpack.c.b16 %v1388, %v1384
  %v1421 = vpack.c.b16 %v1389, %v1385
  %v1422 = vpack.c.b16 %v1390, %v1386
  %v1423 = vpack.c.b16 %v1391, %v1387
  %1456 = vmatprep.subr.bf16.mxu0 %v1421
  %1457 = vmatpush1.bf16.msra.mxu0 %v1420
  %1458 = vmatprep.subr.bf16.mxu0 %v1417
  %1459 = vmatpush1.bf16.msra.mxu0 %v1416
  %1460 = vmatprep.subr.bf16.mxu0 %v1413
  %1461 = vmatpush1.bf16.msra.mxu0 %v1412
  %1462 = vmatprep.subr.bf16.mxu0 %v1409
  %1463 = vmatpush1.bf16.msra.mxu0 %v1408
  %1464 = vmatprep.subr.bf16.mxu0 %v1405
  %1465 = vmatpush1.bf16.msra.mxu0 %v1404
  %1466 = vmatprep.subr.bf16.mxu0 %v1401
  %1467 = vmatpush1.bf16.msra.mxu0 %v1400
  %1468 = vmatprep.subr.bf16.mxu0 %v1397
  %1469 = vmatpush1.bf16.msra.mxu0 %v1396
  %1470 = vmatprep.subr.bf16.mxu0 %v1393
  %1471 = vmatpush1.bf16.msra.mxu0 %v1392
  %1472 = vmatprep.subr.bf16.mxu0 0
  %1473 = vmatpush2.bf16.msra.mxu0 0
  %1474 = vmatprep.subr.bf16.mxu0 0
  %1475 = vmatpush2.bf16.msra.mxu0 0
  %1476 = vmatprep.subr.bf16.mxu0 0
  %1477 = vmatpush2.bf16.msra.mxu0 0
  %1478 = vmatprep.subr.bf16.mxu0 0
  %1479 = vmatpush2.bf16.msra.mxu0 0
  %1480 = vmatprep.subr.bf16.mxu0 0
  %1481 = vmatpush2.bf16.msra.mxu0 0
  %1482 = vmatprep.subr.bf16.mxu0 0
  %1483 = vmatpush2.bf16.msra.mxu0 0
  %1484 = vmatprep.subr.bf16.mxu0 0
  %1485 = vmatpush2.bf16.msra.mxu0 0
  %1486 = vmatprep.subr.bf16.mxu0 0
  %1487 = vmatpush2.bf16.msra.mxu0 0
  %1488 = vmatprep.mubr.bf16.mxu0 0
  %1489 = vmatmul.mubr.bf16.gmra.mxu0 %v1256
  %v1490 = vpop.f32.mrf.mxu0
  %v1491 = vadd.f32 0.0, %v1490
  %v1492 = vpop.f32.mrf.mxu0
  %v1493 = vadd.f32 0.0, %v1492
  %v1494 = vpop.f32.mrf.mxu0
  %v1495 = vpop.f32.mrf.mxu0
  %1496 = vdwg.mxu0
  %1497 = vmatprep.subr.bf16.mxu0 %v1423
  %1498 = vmatpush1.bf16.msra.mxu0 %v1422
  %1499 = vmatprep.subr.bf16.mxu0 %v1419
  %1500 = vmatpush1.bf16.msra.mxu0 %v1418
  %1501 = vmatprep.subr.bf16.mxu0 %v1415
  %1502 = vmatpush1.bf16.msra.mxu0 %v1414
  %1503 = vmatprep.subr.bf16.mxu0 %v1411
  %1504 = vmatpush1.bf16.msra.mxu0 %v1410
  %1505 = vmatprep.subr.bf16.mxu0 %v1407
  %1506 = vmatpush1.bf16.msra.mxu0 %v1406
  %1507 = vmatprep.subr.bf16.mxu0 %v1403
  %1508 = vmatpush1.bf16.msra.mxu0 %v1402
  %1509 = vmatprep.subr.bf16.mxu0 %v1399
  %1510 = vmatpush1.bf16.msra.mxu0 %v1398
  %1511 = vmatprep.subr.bf16.mxu0 %v1395
  %1512 = vmatpush1.bf16.msra.mxu0 %v1394
  %1513 = vmatprep.subr.bf16.mxu0 0
  %1514 = vmatpush2.bf16.msra.mxu0 0
  %1515 = vmatprep.subr.bf16.mxu0 0
  %1516 = vmatpush2.bf16.msra.mxu0 0
  %1517 = vmatprep.subr.bf16.mxu0 0
  %1518 = vmatpush2.bf16.msra.mxu0 0
  %1519 = vmatprep.subr.bf16.mxu0 0
  %1520 = vmatpush2.bf16.msra.mxu0 0
  %1521 = vmatprep.subr.bf16.mxu0 0
  %1522 = vmatpush2.bf16.msra.mxu0 0
  %1523 = vmatprep.subr.bf16.mxu0 0
  %1524 = vmatpush2.bf16.msra.mxu0 0
  %1525 = vmatprep.subr.bf16.mxu0 0
  %1526 = vmatpush2.bf16.msra.mxu0 0
  %1527 = vmatprep.subr.bf16.mxu0 0
  %1528 = vmatpush2.bf16.msra.mxu0 0
  %1529 = vmatprep.mubr.bf16.mxu0 0
  %1530 = vmatmul.mubr.bf16.gmra.mxu0 %v1256
  %v1531 = vpop.f32.mrf.mxu0
  %v1532 = vadd.f32 0.0, %v1531
  %v1533 = vpop.f32.mrf.mxu0
  %v1534 = vadd.f32 0.0, %v1533
  %v1535 = vpop.f32.mrf.mxu0
  %v1536 = vpop.f32.mrf.mxu0
  %1537 = vdwg.mxu0
  %v1538 = vadd.f32 %v1260, %v1491
  %v1539 = vadd.f32 %v1261, %v1493
  %v1540 = vadd.f32 %v1262, %v1532
  %v1541 = vadd.f32 %v1263, %v1534
  %v1542 = vxor.u32 %v1538, 2147483648
  %v1543 = vmul.f32 %v1542, 1.442695
  %v1544 = vpow.pop %v1543
  %v1545 = vadd.f32 %v1544, 1.0
  %v1546 = vrcp.pop %v1545
  %v1547 = vmul.f32 1.0, %v1546
  %v1548 = vxor.u32 %v1539, 2147483648
  %v1549 = vmul.f32 %v1548, 1.442695
  %v1550 = vpow.pop %v1549
  %v1551 = vadd.f32 %v1550, 1.0
  %v1552 = vrcp.pop %v1551
  %v1553 = vmul.f32 1.0, %v1552
  %v1554 = vtanh.pop %v1540
  %v1555 = vxor.u32 %v1541, 2147483648
  %v1556 = vmul.f32 %v1555, 1.442695
  %v1557 = vpow.pop %v1556
  %v1558 = vadd.f32 %v1557, 1.0
  %v1559 = vrcp.pop %v1558
  %v1560 = vmul.f32 1.0, %v1559
  %v1561 = vmul.f32 %v1553, %v1253
  %v1562 = vmul.f32 %v1547, %v1554
  %v1563 = vadd.f32 %v1561, %v1562
  %v1564 = vtanh.pop %v1563
  %v1565 = vmul.f32 %v1560, %v1564
  %v1566 = vpack.c.bf16 %v1565, %v1565
  %s1567 = scalar_lea.vmem %s2, 16
  %1568 = vst [vmem:[%s1567] sm:$0xf] %v1566
  %s1569 = scalar_lea.vmem %s0, 160
  %v1570 = vld [vmem:[%s1569] sm:$0xff]
  %v1571 = vld [vmem:[%s1569 + $0x8] sm:$0xff]
  %v1572 = vld [vmem:[%s1569 + $0x10] sm:$0xff]
  %v1573 = vld [vmem:[%s1569 + $0x18] sm:$0xff]
  %v1574 = vld [vmem:[%s1] sm:$0xff]
  %v1575 = vld [vmem:[%s1 + $0x8] sm:$0xff]
  %v1576 = vld [vmem:[%s1 + $0x10] sm:$0xff]
  %v1577 = vld [vmem:[%s1 + $0x18] sm:$0xff]
  %v1578 = vld [vmem:[%s1 + $0x20] sm:$0xff]
  %v1579 = vld [vmem:[%s1 + $0x28] sm:$0xff]
  %v1580 = vld [vmem:[%s1 + $0x30] sm:$0xff]
  %v1581 = vld [vmem:[%s1 + $0x38] sm:$0xff]
  %v1582 = vld [vmem:[%s1 + $0x40] sm:$0xff]
  %v1583 = vld [vmem:[%s1 + $0x48] sm:$0xff]
  %v1584 = vld [vmem:[%s1 + $0x50] sm:$0xff]
  %v1585 = vld [vmem:[%s1 + $0x58] sm:$0xff]
  %v1586 = vld [vmem:[%s1 + $0x60] sm:$0xff]
  %v1587 = vld [vmem:[%s1 + $0x68] sm:$0xff]
  %v1588 = vld [vmem:[%s1 + $0x70] sm:$0xff]
  %v1589 = vld [vmem:[%s1 + $0x78] sm:$0xff]
  %v1590 = vld [vmem:[%s1 + $0x80] sm:$0xff]
  %v1591 = vld [vmem:[%s1 + $0x88] sm:$0xff]
  %v1592 = vld [vmem:[%s1 + $0x90] sm:$0xff]
  %v1593 = vld [vmem:[%s1 + $0x98] sm:$0xff]
  %v1594 = vld [vmem:[%s1 + $0xa0] sm:$0xff]
  %v1595 = vld [vmem:[%s1 + $0xa8] sm:$0xff]
  %v1596 = vld [vmem:[%s1 + $0xb0] sm:$0xff]
  %v1597 = vld [vmem:[%s1 + $0xb8] sm:$0xff]
  %v1598 = vld [vmem:[%s1 + $0xc0] sm:$0xff]
  %v1599 = vld [vmem:[%s1 + $0xc8] sm:$0xff]
  %v1600 = vld [vmem:[%s1 + $0xd0] sm:$0xff]
  %v1601 = vld [vmem:[%s1 + $0xd8] sm:$0xff]
  %v1602 = vld [vmem:[%s1 + $0xe0] sm:$0xff]
  %v1603 = vld [vmem:[%s1 + $0xe8] sm:$0xff]
  %v1604 = vld [vmem:[%s1 + $0xf0] sm:$0xff]
  %v1605 = vld [vmem:[%s1 + $0xf8] sm:$0xff]
  %v1638 = vunpack.c.l.b16 %v1574
  %v1639 = vunpack.c.h.b16 %v1574
  %v1640 = vunpack.c.l.b16 %v1575
  %v1641 = vunpack.c.h.b16 %v1575
  %v1642 = vunpack.c.l.b16 %v1576
  %v1643 = vunpack.c.h.b16 %v1576
  %v1644 = vunpack.c.l.b16 %v1577
  %v1645 = vunpack.c.h.b16 %v1577
  %v1646 = vunpack.c.l.b16 %v1578
  %v1647 = vunpack.c.h.b16 %v1578
  %v1648 = vunpack.c.l.b16 %v1579
  %v1649 = vunpack.c.h.b16 %v1579
  %v1650 = vunpack.c.l.b16 %v1580
  %v1651 = vunpack.c.h.b16 %v1580
  %v1652 = vunpack.c.l.b16 %v1581
  %v1653 = vunpack.c.h.b16 %v1581
  %v1654 = vunpack.c.l.b16 %v1582
  %v1655 = vunpack.c.h.b16 %v1582
  %v1656 = vunpack.c.l.b16 %v1583
  %v1657 = vunpack.c.h.b16 %v1583
  %v1658 = vunpack.c.l.b16 %v1584
  %v1659 = vunpack.c.h.b16 %v1584
  %v1660 = vunpack.c.l.b16 %v1585
  %v1661 = vunpack.c.h.b16 %v1585
  %v1662 = vunpack.c.l.b16 %v1586
  %v1663 = vunpack.c.h.b16 %v1586
  %v1664 = vunpack.c.l.b16 %v1587
  %v1665 = vunpack.c.h.b16 %v1587
  %v1666 = vunpack.c.l.b16 %v1588
  %v1667 = vunpack.c.h.b16 %v1588
  %v1668 = vunpack.c.l.b16 %v1589
  %v1669 = vunpack.c.h.b16 %v1589
  %v1670 = vunpack.c.l.b16 %v1590
  %v1671 = vunpack.c.h.b16 %v1590
  %v1672 = vunpack.c.l.b16 %v1591
  %v1673 = vunpack.c.h.b16 %v1591
  %v1674 = vunpack.c.l.b16 %v1592
  %v1675 = vunpack.c.h.b16 %v1592
  %v1676 = vunpack.c.l.b16 %v1593
  %v1677 = vunpack.c.h.b16 %v1593
  %v1678 = vunpack.c.l.b16 %v1594
  %v1679 = vunpack.c.h.b16 %v1594
  %v1680 = vunpack.c.l.b16 %v1595
  %v1681 = vunpack.c.h.b16 %v1595
  %v1682 = vunpack.c.l.b16 %v1596
  %v1683 = vunpack.c.h.b16 %v1596
  %v1684 = vunpack.c.l.b16 %v1597
  %v1685 = vunpack.c.h.b16 %v1597
  %v1686 = vunpack.c.l.b16 %v1598
  %v1687 = vunpack.c.h.b16 %v1598
  %v1688 = vunpack.c.l.b16 %v1599
  %v1689 = vunpack.c.h.b16 %v1599
  %v1690 = vunpack.c.l.b16 %v1600
  %v1691 = vunpack.c.h.b16 %v1600
  %v1692 = vunpack.c.l.b16 %v1601
  %v1693 = vunpack.c.h.b16 %v1601
  %v1694 = vunpack.c.l.b16 %v1602
  %v1695 = vunpack.c.h.b16 %v1602
  %v1696 = vunpack.c.l.b16 %v1603
  %v1697 = vunpack.c.h.b16 %v1603
  %v1698 = vunpack.c.l.b16 %v1604
  %v1699 = vunpack.c.h.b16 %v1604
  %v1700 = vunpack.c.l.b16 %v1605
  %v1701 = vunpack.c.h.b16 %v1605
  %v1702 = vpack.c.b16 %v1642, %v1638
  %v1703 = vpack.c.b16 %v1643, %v1639
  %v1704 = vpack.c.b16 %v1644, %v1640
  %v1705 = vpack.c.b16 %v1645, %v1641
  %v1706 = vpack.c.b16 %v1650, %v1646
  %v1707 = vpack.c.b16 %v1651, %v1647
  %v1708 = vpack.c.b16 %v1652, %v1648
  %v1709 = vpack.c.b16 %v1653, %v1649
  %v1710 = vpack.c.b16 %v1658, %v1654
  %v1711 = vpack.c.b16 %v1659, %v1655
  %v1712 = vpack.c.b16 %v1660, %v1656
  %v1713 = vpack.c.b16 %v1661, %v1657
  %v1714 = vpack.c.b16 %v1666, %v1662
  %v1715 = vpack.c.b16 %v1667, %v1663
  %v1716 = vpack.c.b16 %v1668, %v1664
  %v1717 = vpack.c.b16 %v1669, %v1665
  %v1718 = vpack.c.b16 %v1674, %v1670
  %v1719 = vpack.c.b16 %v1675, %v1671
  %v1720 = vpack.c.b16 %v1676, %v1672
  %v1721 = vpack.c.b16 %v1677, %v1673
  %v1722 = vpack.c.b16 %v1682, %v1678
  %v1723 = vpack.c.b16 %v1683, %v1679
  %v1724 = vpack.c.b16 %v1684, %v1680
  %v1725 = vpack.c.b16 %v1685, %v1681
  %v1726 = vpack.c.b16 %v1690, %v1686
  %v1727 = vpack.c.b16 %v1691, %v1687
  %v1728 = vpack.c.b16 %v1692, %v1688
  %v1729 = vpack.c.b16 %v1693, %v1689
  %v1730 = vpack.c.b16 %v1698, %v1694
  %v1731 = vpack.c.b16 %v1699, %v1695
  %v1732 = vpack.c.b16 %v1700, %v1696
  %v1733 = vpack.c.b16 %v1701, %v1697
  %1766 = vmatprep.subr.bf16.mxu0 %v1731
  %1767 = vmatpush1.bf16.msra.mxu0 %v1730
  %1768 = vmatprep.subr.bf16.mxu0 %v1727
  %1769 = vmatpush1.bf16.msra.mxu0 %v1726
  %1770 = vmatprep.subr.bf16.mxu0 %v1723
  %1771 = vmatpush1.bf16.msra.mxu0 %v1722
  %1772 = vmatprep.subr.bf16.mxu0 %v1719
  %1773 = vmatpush1.bf16.msra.mxu0 %v1718
  %1774 = vmatprep.subr.bf16.mxu0 %v1715
  %1775 = vmatpush1.bf16.msra.mxu0 %v1714
  %1776 = vmatprep.subr.bf16.mxu0 %v1711
  %1777 = vmatpush1.bf16.msra.mxu0 %v1710
  %1778 = vmatprep.subr.bf16.mxu0 %v1707
  %1779 = vmatpush1.bf16.msra.mxu0 %v1706
  %1780 = vmatprep.subr.bf16.mxu0 %v1703
  %1781 = vmatpush1.bf16.msra.mxu0 %v1702
  %1782 = vmatprep.subr.bf16.mxu0 0
  %1783 = vmatpush2.bf16.msra.mxu0 0
  %1784 = vmatprep.subr.bf16.mxu0 0
  %1785 = vmatpush2.bf16.msra.mxu0 0
  %1786 = vmatprep.subr.bf16.mxu0 0
  %1787 = vmatpush2.bf16.msra.mxu0 0
  %1788 = vmatprep.subr.bf16.mxu0 0
  %1789 = vmatpush2.bf16.msra.mxu0 0
  %1790 = vmatprep.subr.bf16.mxu0 0
  %1791 = vmatpush2.bf16.msra.mxu0 0
  %1792 = vmatprep.subr.bf16.mxu0 0
  %1793 = vmatpush2.bf16.msra.mxu0 0
  %1794 = vmatprep.subr.bf16.mxu0 0
  %1795 = vmatpush2.bf16.msra.mxu0 0
  %1796 = vmatprep.subr.bf16.mxu0 0
  %1797 = vmatpush2.bf16.msra.mxu0 0
  %1798 = vmatprep.mubr.bf16.mxu0 0
  %1799 = vmatmul.mubr.bf16.gmra.mxu0 %v1566
  %v1800 = vpop.f32.mrf.mxu0
  %v1801 = vadd.f32 0.0, %v1800
  %v1802 = vpop.f32.mrf.mxu0
  %v1803 = vadd.f32 0.0, %v1802
  %v1804 = vpop.f32.mrf.mxu0
  %v1805 = vpop.f32.mrf.mxu0
  %1806 = vdwg.mxu0
  %1807 = vmatprep.subr.bf16.mxu0 %v1733
  %1808 = vmatpush1.bf16.msra.mxu0 %v1732
  %1809 = vmatprep.subr.bf16.mxu0 %v1729
  %1810 = vmatpush1.bf16.msra.mxu0 %v1728
  %1811 = vmatprep.subr.bf16.mxu0 %v1725
  %1812 = vmatpush1.bf16.msra.mxu0 %v1724
  %1813 = vmatprep.subr.bf16.mxu0 %v1721
  %1814 = vmatpush1.bf16.msra.mxu0 %v1720
  %1815 = vmatprep.subr.bf16.mxu0 %v1717
  %1816 = vmatpush1.bf16.msra.mxu0 %v1716
  %1817 = vmatprep.subr.bf16.mxu0 %v1713
  %1818 = vmatpush1.bf16.msra.mxu0 %v1712
  %1819 = vmatprep.subr.bf16.mxu0 %v1709
  %1820 = vmatpush1.bf16.msra.mxu0 %v1708
  %1821 = vmatprep.subr.bf16.mxu0 %v1705
  %1822 = vmatpush1.bf16.msra.mxu0 %v1704
  %1823 = vmatprep.subr.bf16.mxu0 0
  %1824 = vmatpush2.bf16.msra.mxu0 0
  %1825 = vmatprep.subr.bf16.mxu0 0
  %1826 = vmatpush2.bf16.msra.mxu0 0
  %1827 = vmatprep.subr.bf16.mxu0 0
  %1828 = vmatpush2.bf16.msra.mxu0 0
  %1829 = vmatprep.subr.bf16.mxu0 0
  %1830 = vmatpush2.bf16.msra.mxu0 0
  %1831 = vmatprep.subr.bf16.mxu0 0
  %1832 = vmatpush2.bf16.msra.mxu0 0
  %1833 = vmatprep.subr.bf16.mxu0 0
  %1834 = vmatpush2.bf16.msra.mxu0 0
  %1835 = vmatprep.subr.bf16.mxu0 0
  %1836 = vmatpush2.bf16.msra.mxu0 0
  %1837 = vmatprep.subr.bf16.mxu0 0
  %1838 = vmatpush2.bf16.msra.mxu0 0
  %1839 = vmatprep.mubr.bf16.mxu0 0
  %1840 = vmatmul.mubr.bf16.gmra.mxu0 %v1566
  %v1841 = vpop.f32.mrf.mxu0
  %v1842 = vadd.f32 0.0, %v1841
  %v1843 = vpop.f32.mrf.mxu0
  %v1844 = vadd.f32 0.0, %v1843
  %v1845 = vpop.f32.mrf.mxu0
  %v1846 = vpop.f32.mrf.mxu0
  %1847 = vdwg.mxu0
  %v1848 = vadd.f32 %v1570, %v1801
  %v1849 = vadd.f32 %v1571, %v1803
  %v1850 = vadd.f32 %v1572, %v1842
  %v1851 = vadd.f32 %v1573, %v1844
  %v1852 = vxor.u32 %v1848, 2147483648
  %v1853 = vmul.f32 %v1852, 1.442695
  %v1854 = vpow.pop %v1853
  %v1855 = vadd.f32 %v1854, 1.0
  %v1856 = vrcp.pop %v1855
  %v1857 = vmul.f32 1.0, %v1856
  %v1858 = vxor.u32 %v1849, 2147483648
  %v1859 = vmul.f32 %v1858, 1.442695
  %v1860 = vpow.pop %v1859
  %v1861 = vadd.f32 %v1860, 1.0
  %v1862 = vrcp.pop %v1861
  %v1863 = vmul.f32 1.0, %v1862
  %v1864 = vtanh.pop %v1850
  %v1865 = vxor.u32 %v1851, 2147483648
  %v1866 = vmul.f32 %v1865, 1.442695
  %v1867 = vpow.pop %v1866
  %v1868 = vadd.f32 %v1867, 1.0
  %v1869 = vrcp.pop %v1868
  %v1870 = vmul.f32 1.0, %v1869
  %v1871 = vmul.f32 %v1863, %v1563
  %v1872 = vmul.f32 %v1857, %v1864
  %v1873 = vadd.f32 %v1871, %v1872
  %v1874 = vtanh.pop %v1873
  %v1875 = vmul.f32 %v1870, %v1874
  %v1876 = vpack.c.bf16 %v1875, %v1875
  %s1877 = scalar_lea.vmem %s2, 20
  %1878 = vst [vmem:[%s1877] sm:$0xf] %v1876
  %s1879 = scalar_lea.vmem %s0, 192
  %v1880 = vld [vmem:[%s1879] sm:$0xff]
  %v1881 = vld [vmem:[%s1879 + $0x8] sm:$0xff]
  %v1882 = vld [vmem:[%s1879 + $0x10] sm:$0xff]
  %v1883 = vld [vmem:[%s1879 + $0x18] sm:$0xff]
  %v1884 = vld [vmem:[%s1] sm:$0xff]
  %v1885 = vld [vmem:[%s1 + $0x8] sm:$0xff]
  %v1886 = vld [vmem:[%s1 + $0x10] sm:$0xff]
  %v1887 = vld [vmem:[%s1 + $0x18] sm:$0xff]
  %v1888 = vld [vmem:[%s1 + $0x20] sm:$0xff]
  %v1889 = vld [vmem:[%s1 + $0x28] sm:$0xff]
  %v1890 = vld [vmem:[%s1 + $0x30] sm:$0xff]
  %v1891 = vld [vmem:[%s1 + $0x38] sm:$0xff]
  %v1892 = vld [vmem:[%s1 + $0x40] sm:$0xff]
  %v1893 = vld [vmem:[%s1 + $0x48] sm:$0xff]
  %v1894 = vld [vmem:[%s1 + $0x50] sm:$0xff]
  %v1895 = vld [vmem:[%s1 + $0x58] sm:$0xff]
  %v1896 = vld [vmem:[%s1 + $0x60] sm:$0xff]
  %v1897 = vld [vmem:[%s1 + $0x68] sm:$0xff]
  %v1898 = vld [vmem:[%s1 + $0x70] sm:$0xff]
  %v1899 = vld [vmem:[%s1 + $0x78] sm:$0xff]
  %v1900 = vld [vmem:[%s1 + $0x80] sm:$0xff]
  %v1901 = vld [vmem:[%s1 + $0x88] sm:$0xff]
  %v1902 = vld [vmem:[%s1 + $0x90] sm:$0xff]
  %v1903 = vld [vmem:[%s1 + $0x98] sm:$0xff]
  %v1904 = vld [vmem:[%s1 + $0xa0] sm:$0xff]
  %v1905 = vld [vmem:[%s1 + $0xa8] sm:$0xff]
  %v1906 = vld [vmem:[%s1 + $0xb0] sm:$0xff]
  %v1907 = vld [vmem:[%s1 + $0xb8] sm:$0xff]
  %v1908 = vld [vmem:[%s1 + $0xc0] sm:$0xff]
  %v1909 = vld [vmem:[%s1 + $0xc8] sm:$0xff]
  %v1910 = vld [vmem:[%s1 + $0xd0] sm:$0xff]
  %v1911 = vld [vmem:[%s1 + $0xd8] sm:$0xff]
  %v1912 = vld [vmem:[%s1 + $0xe0] sm:$0xff]
  %v1913 = vld [vmem:[%s1 + $0xe8] sm:$0xff]
  %v1914 = vld [vmem:[%s1 + $0xf0] sm:$0xff]
  %v1915 = vld [vmem:[%s1 + $0xf8] sm:$0xff]
  %v1948 = vunpack.c.l.b16 %v1884
  %v1949 = vunpack.c.h.b16 %v1884
  %v1950 = vunpack.c.l.b16 %v1885
  %v1951 = vunpack.c.h.b16 %v1885
  %v1952 = vunpack.c.l.b16 %v1886
  %v1953 = vunpack.c.h.b16 %v1886
  %v1954 = vunpack.c.l.b16 %v1887
  %v1955 = vunpack.c.h.b16 %v1887
  %v1956 = vunpack.c.l.b16 %v1888
  %v1957 = vunpack.c.h.b16 %v1888
  %v1958 = vunpack.c.l.b16 %v1889
  %v1959 = vunpack.c.h.b16 %v1889
  %v1960 = vunpack.c.l.b16 %v1890
  %v1961 = vunpack.c.h.b16 %v1890
  %v1962 = vunpack.c.l.b16 %v1891
  %v1963 = vunpack.c.h.b16 %v1891
  %v1964 = vunpack.c.l.b16 %v1892
  %v1965 = vunpack.c.h.b16 %v1892
  %v1966 = vunpack.c.l.b16 %v1893
  %v1967 = vunpack.c.h.b16 %v1893
  %v1968 = vunpack.c.l.b16 %v1894
  %v1969 = vunpack.c.h.b16 %v1894
  %v1970 = vunpack.c.l.b16 %v1895
  %v1971 = vunpack.c.h.b16 %v1895
  %v1972 = vunpack.c.l.b16 %v1896
  %v1973 = vunpack.c.h.b16 %v1896
  %v1974 = vunpack.c.l.b16 %v1897
  %v1975 = vunpack.c.h.b16 %v1897
  %v1976 = vunpack.c.l.b16 %v1898
  %v1977 = vunpack.c.h.b16 %v1898
  %v1978 = vunpack.c.l.b16 %v1899
  %v1979 = vunpack.c.h.b16 %v1899
  %v1980 = vunpack.c.l.b16 %v1900
  %v1981 = vunpack.c.h.b16 %v1900
  %v1982 = vunpack.c.l.b16 %v1901
  %v1983 = vunpack.c.h.b16 %v1901
  %v1984 = vunpack.c.l.b16 %v1902
  %v1985 = vunpack.c.h.b16 %v1902
  %v1986 = vunpack.c.l.b16 %v1903
  %v1987 = vunpack.c.h.b16 %v1903
  %v1988 = vunpack.c.l.b16 %v1904
  %v1989 = vunpack.c.h.b16 %v1904
  %v1990 = vunpack.c.l.b16 %v1905
  %v1991 = vunpack.c.h.b16 %v1905
  %v1992 = vunpack.c.l.b16 %v1906
  %v1993 = vunpack.c.h.b16 %v1906
  %v1994 = vunpack.c.l.b16 %v1907
  %v1995 = vunpack.c.h.b16 %v1907
  %v1996 = vunpack.c.l.b16 %v1908
  %v1997 = vunpack.c.h.b16 %v1908
  %v1998 = vunpack.c.l.b16 %v1909
  %v1999 = vunpack.c.h.b16 %v1909
  %v2000 = vunpack.c.l.b16 %v1910
  %v2001 = vunpack.c.h.b16 %v1910
  %v2002 = vunpack.c.l.b16 %v1911
  %v2003 = vunpack.c.h.b16 %v1911
  %v2004 = vunpack.c.l.b16 %v1912
  %v2005 = vunpack.c.h.b16 %v1912
  %v2006 = vunpack.c.l.b16 %v1913
  %v2007 = vunpack.c.h.b16 %v1913
  %v2008 = vunpack.c.l.b16 %v1914
  %v2009 = vunpack.c.h.b16 %v1914
  %v2010 = vunpack.c.l.b16 %v1915
  %v2011 = vunpack.c.h.b16 %v1915
  %v2012 = vpack.c.b16 %v1952, %v1948
  %v2013 = vpack.c.b16 %v1953, %v1949
  %v2014 = vpack.c.b16 %v1954, %v1950
  %v2015 = vpack.c.b16 %v1955, %v1951
  %v2016 = vpack.c.b16 %v1960, %v1956
  %v2017 = vpack.c.b16 %v1961, %v1957
  %v2018 = vpack.c.b16 %v1962, %v1958
  %v2019 = vpack.c.b16 %v1963, %v1959
  %v2020 = vpack.c.b16 %v1968, %v1964
  %v2021 = vpack.c.b16 %v1969, %v1965
  %v2022 = vpack.c.b16 %v1970, %v1966
  %v2023 = vpack.c.b16 %v1971, %v1967
  %v2024 = vpack.c.b16 %v1976, %v1972
  %v2025 = vpack.c.b16 %v1977, %v1973
  %v2026 = vpack.c.b16 %v1978, %v1974
  %v2027 = vpack.c.b16 %v1979, %v1975
  %v2028 = vpack.c.b16 %v1984, %v1980
  %v2029 = vpack.c.b16 %v1985, %v1981
  %v2030 = vpack.c.b16 %v1986, %v1982
  %v2031 = vpack.c.b16 %v1987, %v1983
  %v2032 = vpack.c.b16 %v1992, %v1988
  %v2033 = vpack.c.b16 %v1993, %v1989
  %v2034 = vpack.c.b16 %v1994, %v1990
  %v2035 = vpack.c.b16 %v1995, %v1991
  %v2036 = vpack.c.b16 %v2000, %v1996
  %v2037 = vpack.c.b16 %v2001, %v1997
  %v2038 = vpack.c.b16 %v2002, %v1998
  %v2039 = vpack.c.b16 %v2003, %v1999
  %v2040 = vpack.c.b16 %v2008, %v2004
  %v2041 = vpack.c.b16 %v2009, %v2005
  %v2042 = vpack.c.b16 %v2010, %v2006
  %v2043 = vpack.c.b16 %v2011, %v2007
  %2076 = vmatprep.subr.bf16.mxu0 %v2041
  %2077 = vmatpush1.bf16.msra.mxu0 %v2040
  %2078 = vmatprep.subr.bf16.mxu0 %v2037
  %2079 = vmatpush1.bf16.msra.mxu0 %v2036
  %2080 = vmatprep.subr.bf16.mxu0 %v2033
  %2081 = vmatpush1.bf16.msra.mxu0 %v2032
  %2082 = vmatprep.subr.bf16.mxu0 %v2029
  %2083 = vmatpush1.bf16.msra.mxu0 %v2028
  %2084 = vmatprep.subr.bf16.mxu0 %v2025
  %2085 = vmatpush1.bf16.msra.mxu0 %v2024
  %2086 = vmatprep.subr.bf16.mxu0 %v2021
  %2087 = vmatpush1.bf16.msra.mxu0 %v2020
  %2088 = vmatprep.subr.bf16.mxu0 %v2017
  %2089 = vmatpush1.bf16.msra.mxu0 %v2016
  %2090 = vmatprep.subr.bf16.mxu0 %v2013
  %2091 = vmatpush1.bf16.msra.mxu0 %v2012
  %2092 = vmatprep.subr.bf16.mxu0 0
  %2093 = vmatpush2.bf16.msra.mxu0 0
  %2094 = vmatprep.subr.bf16.mxu0 0
  %2095 = vmatpush2.bf16.msra.mxu0 0
  %2096 = vmatprep.subr.bf16.mxu0 0
  %2097 = vmatpush2.bf16.msra.mxu0 0
  %2098 = vmatprep.subr.bf16.mxu0 0
  %2099 = vmatpush2.bf16.msra.mxu0 0
  %2100 = vmatprep.subr.bf16.mxu0 0
  %2101 = vmatpush2.bf16.msra.mxu0 0
  %2102 = vmatprep.subr.bf16.mxu0 0
  %2103 = vmatpush2.bf16.msra.mxu0 0
  %2104 = vmatprep.subr.bf16.mxu0 0
  %2105 = vmatpush2.bf16.msra.mxu0 0
  %2106 = vmatprep.subr.bf16.mxu0 0
  %2107 = vmatpush2.bf16.msra.mxu0 0
  %2108 = vmatprep.mubr.bf16.mxu0 0
  %2109 = vmatmul.mubr.bf16.gmra.mxu0 %v1876
  %v2110 = vpop.f32.mrf.mxu0
  %v2111 = vadd.f32 0.0, %v2110
  %v2112 = vpop.f32.mrf.mxu0
  %v2113 = vadd.f32 0.0, %v2112
  %v2114 = vpop.f32.mrf.mxu0
  %v2115 = vpop.f32.mrf.mxu0
  %2116 = vdwg.mxu0
  %2117 = vmatprep.subr.bf16.mxu0 %v2043
  %2118 = vmatpush1.bf16.msra.mxu0 %v2042
  %2119 = vmatprep.subr.bf16.mxu0 %v2039
  %2120 = vmatpush1.bf16.msra.mxu0 %v2038
  %2121 = vmatprep.subr.bf16.mxu0 %v2035
  %2122 = vmatpush1.bf16.msra.mxu0 %v2034
  %2123 = vmatprep.subr.bf16.mxu0 %v2031
  %2124 = vmatpush1.bf16.msra.mxu0 %v2030
  %2125 = vmatprep.subr.bf16.mxu0 %v2027
  %2126 = vmatpush1.bf16.msra.mxu0 %v2026
  %2127 = vmatprep.subr.bf16.mxu0 %v2023
  %2128 = vmatpush1.bf16.msra.mxu0 %v2022
  %2129 = vmatprep.subr.bf16.mxu0 %v2019
  %2130 = vmatpush1.bf16.msra.mxu0 %v2018
  %2131 = vmatprep.subr.bf16.mxu0 %v2015
  %2132 = vmatpush1.bf16.msra.mxu0 %v2014
  %2133 = vmatprep.subr.bf16.mxu0 0
  %2134 = vmatpush2.bf16.msra.mxu0 0
  %2135 = vmatprep.subr.bf16.mxu0 0
  %2136 = vmatpush2.bf16.msra.mxu0 0
  %2137 = vmatprep.subr.bf16.mxu0 0
  %2138 = vmatpush2.bf16.msra.mxu0 0
  %2139 = vmatprep.subr.bf16.mxu0 0
  %2140 = vmatpush2.bf16.msra.mxu0 0
  %2141 = vmatprep.subr.bf16.mxu0 0
  %2142 = vmatpush2.bf16.msra.mxu0 0
  %2143 = vmatprep.subr.bf16.mxu0 0
  %2144 = vmatpush2.bf16.msra.mxu0 0
  %2145 = vmatprep.subr.bf16.mxu0 0
  %2146 = vmatpush2.bf16.msra.mxu0 0
  %2147 = vmatprep.subr.bf16.mxu0 0
  %2148 = vmatpush2.bf16.msra.mxu0 0
  %2149 = vmatprep.mubr.bf16.mxu0 0
  %2150 = vmatmul.mubr.bf16.gmra.mxu0 %v1876
  %v2151 = vpop.f32.mrf.mxu0
  %v2152 = vadd.f32 0.0, %v2151
  %v2153 = vpop.f32.mrf.mxu0
  %v2154 = vadd.f32 0.0, %v2153
  %v2155 = vpop.f32.mrf.mxu0
  %v2156 = vpop.f32.mrf.mxu0
  %2157 = vdwg.mxu0
  %v2158 = vadd.f32 %v1880, %v2111
  %v2159 = vadd.f32 %v1881, %v2113
  %v2160 = vadd.f32 %v1882, %v2152
  %v2161 = vadd.f32 %v1883, %v2154
  %v2162 = vxor.u32 %v2158, 2147483648
  %v2163 = vmul.f32 %v2162, 1.442695
  %v2164 = vpow.pop %v2163
  %v2165 = vadd.f32 %v2164, 1.0
  %v2166 = vrcp.pop %v2165
  %v2167 = vmul.f32 1.0, %v2166
  %v2168 = vxor.u32 %v2159, 2147483648
  %v2169 = vmul.f32 %v2168, 1.442695
  %v2170 = vpow.pop %v2169
  %v2171 = vadd.f32 %v2170, 1.0
  %v2172 = vrcp.pop %v2171
  %v2173 = vmul.f32 1.0, %v2172
  %v2174 = vtanh.pop %v2160
  %v2175 = vxor.u32 %v2161, 2147483648
  %v2176 = vmul.f32 %v2175, 1.442695
  %v2177 = vpow.pop %v2176
  %v2178 = vadd.f32 %v2177, 1.0
  %v2179 = vrcp.pop %v2178
  %v2180 = vmul.f32 1.0, %v2179
  %v2181 = vmul.f32 %v2173, %v1873
  %v2182 = vmul.f32 %v2167, %v2174
  %v2183 = vadd.f32 %v2181, %v2182
  %v2184 = vtanh.pop %v2183
  %v2185 = vmul.f32 %v2180, %v2184
  %v2186 = vpack.c.bf16 %v2185, %v2185
  %s2187 = scalar_lea.vmem %s2, 24
  %2188 = vst [vmem:[%s2187] sm:$0xf] %v2186
  %s2189 = scalar_lea.vmem %s0, 224
  %v2190 = vld [vmem:[%s2189] sm:$0xff]
  %v2191 = vld [vmem:[%s2189 + $0x8] sm:$0xff]
  %v2192 = vld [vmem:[%s2189 + $0x10] sm:$0xff]
  %v2193 = vld [vmem:[%s2189 + $0x18] sm:$0xff]
  %v2194 = vld [vmem:[%s1] sm:$0xff]
  %v2195 = vld [vmem:[%s1 + $0x8] sm:$0xff]
  %v2196 = vld [vmem:[%s1 + $0x10] sm:$0xff]
  %v2197 = vld [vmem:[%s1 + $0x18] sm:$0xff]
  %v2198 = vld [vmem:[%s1 + $0x20] sm:$0xff]
  %v2199 = vld [vmem:[%s1 + $0x28] sm:$0xff]
  %v2200 = vld [vmem:[%s1 + $0x30] sm:$0xff]
  %v2201 = vld [vmem:[%s1 + $0x38] sm:$0xff]
  %v2202 = vld [vmem:[%s1 + $0x40] sm:$0xff]
  %v2203 = vld [vmem:[%s1 + $0x48] sm:$0xff]
  %v2204 = vld [vmem:[%s1 + $0x50] sm:$0xff]
  %v2205 = vld [vmem:[%s1 + $0x58] sm:$0xff]
  %v2206 = vld [vmem:[%s1 + $0x60] sm:$0xff]
  %v2207 = vld [vmem:[%s1 + $0x68] sm:$0xff]
  %v2208 = vld [vmem:[%s1 + $0x70] sm:$0xff]
  %v2209 = vld [vmem:[%s1 + $0x78] sm:$0xff]
  %v2210 = vld [vmem:[%s1 + $0x80] sm:$0xff]
  %v2211 = vld [vmem:[%s1 + $0x88] sm:$0xff]
  %v2212 = vld [vmem:[%s1 + $0x90] sm:$0xff]
  %v2213 = vld [vmem:[%s1 + $0x98] sm:$0xff]
  %v2214 = vld [vmem:[%s1 + $0xa0] sm:$0xff]
  %v2215 = vld [vmem:[%s1 + $0xa8] sm:$0xff]
  %v2216 = vld [vmem:[%s1 + $0xb0] sm:$0xff]
  %v2217 = vld [vmem:[%s1 + $0xb8] sm:$0xff]
  %v2218 = vld [vmem:[%s1 + $0xc0] sm:$0xff]
  %v2219 = vld [vmem:[%s1 + $0xc8] sm:$0xff]
  %v2220 = vld [vmem:[%s1 + $0xd0] sm:$0xff]
  %v2221 = vld [vmem:[%s1 + $0xd8] sm:$0xff]
  %v2222 = vld [vmem:[%s1 + $0xe0] sm:$0xff]
  %v2223 = vld [vmem:[%s1 + $0xe8] sm:$0xff]
  %v2224 = vld [vmem:[%s1 + $0xf0] sm:$0xff]
  %v2225 = vld [vmem:[%s1 + $0xf8] sm:$0xff]
  %v2258 = vunpack.c.l.b16 %v2194
  %v2259 = vunpack.c.h.b16 %v2194
  %v2260 = vunpack.c.l.b16 %v2195
  %v2261 = vunpack.c.h.b16 %v2195
  %v2262 = vunpack.c.l.b16 %v2196
  %v2263 = vunpack.c.h.b16 %v2196
  %v2264 = vunpack.c.l.b16 %v2197
  %v2265 = vunpack.c.h.b16 %v2197
  %v2266 = vunpack.c.l.b16 %v2198
  %v2267 = vunpack.c.h.b16 %v2198
  %v2268 = vunpack.c.l.b16 %v2199
  %v2269 = vunpack.c.h.b16 %v2199
  %v2270 = vunpack.c.l.b16 %v2200
  %v2271 = vunpack.c.h.b16 %v2200
  %v2272 = vunpack.c.l.b16 %v2201
  %v2273 = vunpack.c.h.b16 %v2201
  %v2274 = vunpack.c.l.b16 %v2202
  %v2275 = vunpack.c.h.b16 %v2202
  %v2276 = vunpack.c.l.b16 %v2203
  %v2277 = vunpack.c.h.b16 %v2203
  %v2278 = vunpack.c.l.b16 %v2204
  %v2279 = vunpack.c.h.b16 %v2204
  %v2280 = vunpack.c.l.b16 %v2205
  %v2281 = vunpack.c.h.b16 %v2205
  %v2282 = vunpack.c.l.b16 %v2206
  %v2283 = vunpack.c.h.b16 %v2206
  %v2284 = vunpack.c.l.b16 %v2207
  %v2285 = vunpack.c.h.b16 %v2207
  %v2286 = vunpack.c.l.b16 %v2208
  %v2287 = vunpack.c.h.b16 %v2208
  %v2288 = vunpack.c.l.b16 %v2209
  %v2289 = vunpack.c.h.b16 %v2209
  %v2290 = vunpack.c.l.b16 %v2210
  %v2291 = vunpack.c.h.b16 %v2210
  %v2292 = vunpack.c.l.b16 %v2211
  %v2293 = vunpack.c.h.b16 %v2211
  %v2294 = vunpack.c.l.b16 %v2212
  %v2295 = vunpack.c.h.b16 %v2212
  %v2296 = vunpack.c.l.b16 %v2213
  %v2297 = vunpack.c.h.b16 %v2213
  %v2298 = vunpack.c.l.b16 %v2214
  %v2299 = vunpack.c.h.b16 %v2214
  %v2300 = vunpack.c.l.b16 %v2215
  %v2301 = vunpack.c.h.b16 %v2215
  %v2302 = vunpack.c.l.b16 %v2216
  %v2303 = vunpack.c.h.b16 %v2216
  %v2304 = vunpack.c.l.b16 %v2217
  %v2305 = vunpack.c.h.b16 %v2217
  %v2306 = vunpack.c.l.b16 %v2218
  %v2307 = vunpack.c.h.b16 %v2218
  %v2308 = vunpack.c.l.b16 %v2219
  %v2309 = vunpack.c.h.b16 %v2219
  %v2310 = vunpack.c.l.b16 %v2220
  %v2311 = vunpack.c.h.b16 %v2220
  %v2312 = vunpack.c.l.b16 %v2221
  %v2313 = vunpack.c.h.b16 %v2221
  %v2314 = vunpack.c.l.b16 %v2222
  %v2315 = vunpack.c.h.b16 %v2222
  %v2316 = vunpack.c.l.b16 %v2223
  %v2317 = vunpack.c.h.b16 %v2223
  %v2318 = vunpack.c.l.b16 %v2224
  %v2319 = vunpack.c.h.b16 %v2224
  %v2320 = vunpack.c.l.b16 %v2225
  %v2321 = vunpack.c.h.b16 %v2225
  %v2322 = vpack.c.b16 %v2262, %v2258
  %v2323 = vpack.c.b16 %v2263, %v2259
  %v2324 = vpack.c.b16 %v2264, %v2260
  %v2325 = vpack.c.b16 %v2265, %v2261
  %v2326 = vpack.c.b16 %v2270, %v2266
  %v2327 = vpack.c.b16 %v2271, %v2267
  %v2328 = vpack.c.b16 %v2272, %v2268
  %v2329 = vpack.c.b16 %v2273, %v2269
  %v2330 = vpack.c.b16 %v2278, %v2274
  %v2331 = vpack.c.b16 %v2279, %v2275
  %v2332 = vpack.c.b16 %v2280, %v2276
  %v2333 = vpack.c.b16 %v2281, %v2277
  %v2334 = vpack.c.b16 %v2286, %v2282
  %v2335 = vpack.c.b16 %v2287, %v2283
  %v2336 = vpack.c.b16 %v2288, %v2284
  %v2337 = vpack.c.b16 %v2289, %v2285
  %v2338 = vpack.c.b16 %v2294, %v2290
  %v2339 = vpack.c.b16 %v2295, %v2291
  %v2340 = vpack.c.b16 %v2296, %v2292
  %v2341 = vpack.c.b16 %v2297, %v2293
  %v2342 = vpack.c.b16 %v2302, %v2298
  %v2343 = vpack.c.b16 %v2303, %v2299
  %v2344 = vpack.c.b16 %v2304, %v2300
  %v2345 = vpack.c.b16 %v2305, %v2301
  %v2346 = vpack.c.b16 %v2310, %v2306
  %v2347 = vpack.c.b16 %v2311, %v2307
  %v2348 = vpack.c.b16 %v2312, %v2308
  %v2349 = vpack.c.b16 %v2313, %v2309
  %v2350 = vpack.c.b16 %v2318, %v2314
  %v2351 = vpack.c.b16 %v2319, %v2315
  %v2352 = vpack.c.b16 %v2320, %v2316
  %v2353 = vpack.c.b16 %v2321, %v2317
  %2386 = vmatprep.subr.bf16.mxu0 %v2351
  %2387 = vmatpush1.bf16.msra.mxu0 %v2350
  %2388 = vmatprep.subr.bf16.mxu0 %v2347
  %2389 = vmatpush1.bf16.msra.mxu0 %v2346
  %2390 = vmatprep.subr.bf16.mxu0 %v2343
  %2391 = vmatpush1.bf16.msra.mxu0 %v2342
  %2392 = vmatprep.subr.bf16.mxu0 %v2339
  %2393 = vmatpush1.bf16.msra.mxu0 %v2338
  %2394 = vmatprep.subr.bf16.mxu0 %v2335
  %2395 = vmatpush1.bf16.msra.mxu0 %v2334
  %2396 = vmatprep.subr.bf16.mxu0 %v2331
  %2397 = vmatpush1.bf16.msra.mxu0 %v2330
  %2398 = vmatprep.subr.bf16.mxu0 %v2327
  %2399 = vmatpush1.bf16.msra.mxu0 %v2326
  %2400 = vmatprep.subr.bf16.mxu0 %v2323
  %2401 = vmatpush1.bf16.msra.mxu0 %v2322
  %2402 = vmatprep.subr.bf16.mxu0 0
  %2403 = vmatpush2.bf16.msra.mxu0 0
  %2404 = vmatprep.subr.bf16.mxu0 0
  %2405 = vmatpush2.bf16.msra.mxu0 0
  %2406 = vmatprep.subr.bf16.mxu0 0
  %2407 = vmatpush2.bf16.msra.mxu0 0
  %2408 = vmatprep.subr.bf16.mxu0 0
  %2409 = vmatpush2.bf16.msra.mxu0 0
  %2410 = vmatprep.subr.bf16.mxu0 0
  %2411 = vmatpush2.bf16.msra.mxu0 0
  %2412 = vmatprep.subr.bf16.mxu0 0
  %2413 = vmatpush2.bf16.msra.mxu0 0
  %2414 = vmatprep.subr.bf16.mxu0 0
  %2415 = vmatpush2.bf16.msra.mxu0 0
  %2416 = vmatprep.subr.bf16.mxu0 0
  %2417 = vmatpush2.bf16.msra.mxu0 0
  %2418 = vmatprep.mubr.bf16.mxu0 0
  %2419 = vmatmul.mubr.bf16.gmra.mxu0 %v2186
  %v2420 = vpop.f32.mrf.mxu0
  %v2421 = vadd.f32 0.0, %v2420
  %v2422 = vpop.f32.mrf.mxu0
  %v2423 = vadd.f32 0.0, %v2422
  %v2424 = vpop.f32.mrf.mxu0
  %v2425 = vpop.f32.mrf.mxu0
  %2426 = vdwg.mxu0
  %2427 = vmatprep.subr.bf16.mxu0 %v2353
  %2428 = vmatpush1.bf16.msra.mxu0 %v2352
  %2429 = vmatprep.subr.bf16.mxu0 %v2349
  %2430 = vmatpush1.bf16.msra.mxu0 %v2348
  %2431 = vmatprep.subr.bf16.mxu0 %v2345
  %2432 = vmatpush1.bf16.msra.mxu0 %v2344
  %2433 = vmatprep.subr.bf16.mxu0 %v2341
  %2434 = vmatpush1.bf16.msra.mxu0 %v2340
  %2435 = vmatprep.subr.bf16.mxu0 %v2337
  %2436 = vmatpush1.bf16.msra.mxu0 %v2336
  %2437 = vmatprep.subr.bf16.mxu0 %v2333
  %2438 = vmatpush1.bf16.msra.mxu0 %v2332
  %2439 = vmatprep.subr.bf16.mxu0 %v2329
  %2440 = vmatpush1.bf16.msra.mxu0 %v2328
  %2441 = vmatprep.subr.bf16.mxu0 %v2325
  %2442 = vmatpush1.bf16.msra.mxu0 %v2324
  %2443 = vmatprep.subr.bf16.mxu0 0
  %2444 = vmatpush2.bf16.msra.mxu0 0
  %2445 = vmatprep.subr.bf16.mxu0 0
  %2446 = vmatpush2.bf16.msra.mxu0 0
  %2447 = vmatprep.subr.bf16.mxu0 0
  %2448 = vmatpush2.bf16.msra.mxu0 0
  %2449 = vmatprep.subr.bf16.mxu0 0
  %2450 = vmatpush2.bf16.msra.mxu0 0
  %2451 = vmatprep.subr.bf16.mxu0 0
  %2452 = vmatpush2.bf16.msra.mxu0 0
  %2453 = vmatprep.subr.bf16.mxu0 0
  %2454 = vmatpush2.bf16.msra.mxu0 0
  %2455 = vmatprep.subr.bf16.mxu0 0
  %2456 = vmatpush2.bf16.msra.mxu0 0
  %2457 = vmatprep.subr.bf16.mxu0 0
  %2458 = vmatpush2.bf16.msra.mxu0 0
  %2459 = vmatprep.mubr.bf16.mxu0 0
  %2460 = vmatmul.mubr.bf16.gmra.mxu0 %v2186
  %v2461 = vpop.f32.mrf.mxu0
  %v2462 = vadd.f32 0.0, %v2461
  %v2463 = vpop.f32.mrf.mxu0
  %v2464 = vadd.f32 0.0, %v2463
  %v2465 = vpop.f32.mrf.mxu0
  %v2466 = vpop.f32.mrf.mxu0
  %2467 = vdwg.mxu0
  %v2468 = vadd.f32 %v2190, %v2421
  %v2469 = vadd.f32 %v2191, %v2423
  %v2470 = vadd.f32 %v2192, %v2462
  %v2471 = vadd.f32 %v2193, %v2464
  %v2472 = vxor.u32 %v2468, 2147483648
  %v2473 = vmul.f32 %v2472, 1.442695
  %v2474 = vpow.pop %v2473
  %v2475 = vadd.f32 %v2474, 1.0
  %v2476 = vrcp.pop %v2475
  %v2477 = vmul.f32 1.0, %v2476
  %v2478 = vxor.u32 %v2469, 2147483648
  %v2479 = vmul.f32 %v2478, 1.442695
  %v2480 = vpow.pop %v2479
  %v2481 = vadd.f32 %v2480, 1.0
  %v2482 = vrcp.pop %v2481
  %v2483 = vmul.f32 1.0, %v2482
  %v2484 = vtanh.pop %v2470
  %v2485 = vxor.u32 %v2471, 2147483648
  %v2486 = vmul.f32 %v2485, 1.442695
  %v2487 = vpow.pop %v2486
  %v2488 = vadd.f32 %v2487, 1.0
  %v2489 = vrcp.pop %v2488
  %v2490 = vmul.f32 1.0, %v2489
  %v2491 = vmul.f32 %v2483, %v2183
  %v2492 = vmul.f32 %v2477, %v2484
  %v2493 = vadd.f32 %v2491, %v2492
  %v2494 = vtanh.pop %v2493
  %v2495 = vmul.f32 %v2490, %v2494
  %v2496 = vpack.c.bf16 %v2495, %v2495
  %s2497 = scalar_lea.vmem %s2, 28
  %2498 = vst [vmem:[%s2497] sm:$0xf] %v2496
  %2499 = vst [vmem:[#allocation2] sm:$0xff] %v2495
  %2500 = vst [vmem:[#allocation3] sm:$0xff] %v2493
  // Predicated region
  $region14: #{decoder_rnn_forward.4} parent=0 // pred_check
    _
  $region15: #{decoder_rnn_forward.4} parent=0 // pred_check_branch
    %2502 = sbr.rel (0) target = $region17
  $region16: #{decoder_rnn_forward.4} parent=0 // pred_region
    _
  $region17: #{decoder_rnn_forward.4} parent=0 // pred_fallthru
    _
  // Predicated region
  $region18: #{decoder_rnn_forward.4} parent=0 // pred_check
    _
  $region19: #{decoder_rnn_forward.4} parent=0 // pred_check_branch
    %2504 = sbr.rel (0) target = $region21
  $region20: #{decoder_rnn_forward.4} parent=0 // pred_region
    _
  $region21: #{decoder_rnn_forward.4} parent=0 // pred_fallthru
    _

</llo_original>
